<compile_context>
chip_gen: v7x
topology: tpu7x:2x2x1
jax: 0.10.0
libtpu: 0.0.40
codegen_flags: <defaults>
</compile_context>

<pallas_src>
import jax
import jax.numpy as jnp
from jax.experimental import pallas as pl
from jax.experimental.pallas import tpu as pltpu


# --------------------------------------------------------------------------- #
# Fused forward kernel.
# x_ref rows are t-major (row = t*B + b) so the recurrence reads contiguous
# (B, 4H) gate slices; the layer-1 output scratch is batch-leading (B, T, H) so
# the attention reads contiguous, 8-aligned per-batch blocks.
# --------------------------------------------------------------------------- #
def _fused_forward_kernel(
    x_ref,        # (T*B, E)   t-major
    wih0_t_ref,   # (E, 4H)
    whh0_t_ref,   # (H, 4H)
    b0_ref,       # (1, 4H)
    wih1_t_ref,   # (H, 4H)
    whh1_t_ref,   # (H, 4H)
    b1g_ref,      # (1, 4H)
    ws1_t_ref,    # (H, da)
    ws2_t_ref,    # (da, r)
    w1_t_ref,     # (r*H, MH)
    b1m_ref,      # (1, MH)
    w2_t_ref,     # (MH, C)
    b2m_ref,      # (1, C)
    target_ref,   # (B, C)
    loss_ref,     # (1, 1)  out
    labels_ref,   # (B, C)  out
    h0_sc,        # (T*B, H) scratch, t-major layer-0 output sequence
    out_sc,       # (B, T, H) scratch, layer-1 output sequence (batch-leading)
):
    f32 = jnp.float32
    B, C = target_ref.shape
    H = whh0_t_ref.shape[0]
    TB = x_ref.shape[0]
    T = TB // B
    r = ws2_t_ref.shape[1]
    MH = b1m_ref.shape[1]

    whh0_t = whh0_t_ref[...]
    whh1_t = whh1_t_ref[...]

    # ---------------- LSTM cell (PyTorch gate order i, f, g, o) ------------- #
    def gate_step(g, c):
        # Full-tile nonlinearities over the (B, 4H=128) gate tile (one EUP pass
        # each); individual gates are static lane slices of the results.
        sg = jax.nn.sigmoid(g)
        th = jnp.tanh(g)
        i_g = sg[:, 0 * H:1 * H]
        f_g = sg[:, 1 * H:2 * H]
        g_g = th[:, 2 * H:3 * H]
        o_g = sg[:, 3 * H:4 * H]
        c_new = f_g * c + i_g * g_g
        h_new = o_g * jnp.tanh(c_new)
        return h_new, c_new

    # Layer 0: hoisted input projection over the whole sequence, then recurrence.
    gates_in0 = (jnp.dot(x_ref[...], wih0_t_ref[...], preferred_element_type=f32)
                 + b0_ref[...])                                   # (T*B, 4H)
    h = jnp.zeros((B, H), f32)
    c = jnp.zeros((B, H), f32)
    for t in range(T):                                            # static unroll
        g = gates_in0[t * B:(t + 1) * B, :] + jnp.dot(
            h, whh0_t, preferred_element_type=f32)
        h, c = gate_step(g, c)
        h0_sc[t * B:(t + 1) * B, :] = h                           # full-block store

    # Layer 1: hoisted projection of layer-0 outputs, then recurrence.
    gates_in1 = (jnp.dot(h0_sc[...], wih1_t_ref[...], preferred_element_type=f32)
                 + b1g_ref[...])                                  # (T*B, 4H)
    h = jnp.zeros((B, H), f32)
    c = jnp.zeros((B, H), f32)
    for t in range(T):
        g = gates_in1[t * B:(t + 1) * B, :] + jnp.dot(
            h, whh1_t, preferred_element_type=f32)
        h, c = gate_step(g, c)
        out_sc[:, t, :] = h                                       # one (B,H) store

    # --------------------------- self-attention ---------------------------- #
    # A = softmax(Ws2 @ tanh(Ws1 @ out^T), over T);  M = A @ out
    out3 = out_sc[...]                                            # (B, T, H)
    out_flat = out3.reshape(B * T, H)      # layout-trivial collapse (T % 8 == 0)
    t1 = jnp.tanh(jnp.dot(out_flat, ws1_t_ref[...],
                          preferred_element_type=f32))            # (B*T, da)
    s = jnp.dot(t1, ws2_t_ref[...], preferred_element_type=f32)   # (B*T, r)

    m_list = []
    for b in range(B):                      # static in-kernel loop, B is tiny
        s_b = s[b * T:(b + 1) * T, :]       # (T, r) == scores[b].T  (contiguous)
        mmax = jnp.max(s_b, axis=0, keepdims=True)
        e = jnp.exp(s_b - mmax)
        a_b = e / jnp.sum(e, axis=0, keepdims=True)               # softmax over T
        out_b = out_flat[b * T:(b + 1) * T, :]                    # (T, H)
        m_list.append(jnp.dot(a_b.T, out_b, preferred_element_type=f32))  # (r, H)
    M3 = jnp.stack(m_list, axis=0)                                # (B, r, H)

    # ------------------------------ MLP ------------------------------------ #
    # Linear1 on flatten(M) without materializing the flatten: accumulate over
    # the r row-blocks of W1^T (static, aligned slices of the weight ref).
    acc = jnp.zeros((B, MH), f32)
    for rr in range(r):                                           # static unroll
        acc = acc + jnp.dot(M3[:, rr, :],
                            w1_t_ref[rr * H:(rr + 1) * H, :],
                            preferred_element_type=f32)
    h1 = jnp.maximum(acc + b1m_ref[...], 0.0)                     # (B, MH)
    logits = (jnp.dot(h1, w2_t_ref[...], preferred_element_type=f32)
              + b2m_ref[...])                                     # (B, C)

    # --------------- softmax labels + CE(logits, argmax(target)) ----------- #
    target = target_ref[...]
    mx = jnp.max(logits, axis=-1, keepdims=True)
    ex = jnp.exp(logits - mx)
    se = jnp.sum(ex, axis=-1, keepdims=True)
    labels_ref[...] = ex / se
    col = jax.lax.broadcasted_iota(jnp.int32, (B, C), 1)
    tmax = jnp.max(target, axis=-1, keepdims=True)
    amax = jnp.min(jnp.where(target == tmax, col, C), axis=-1, keepdims=True)
    onehot = (col == amax).astype(f32)
    logsumexp = jnp.log(se) + mx
    picked = jnp.sum(onehot * logits, axis=-1, keepdims=True)
    nll = logsumexp - picked                                      # (B, 1)
    loss_ref[...] = jnp.sum(nll, axis=0, keepdims=True) / B


# --------------------------------------------------------------------------- #
# Host wrapper: embedding gather + weight transposes are XLA glue; everything
# else runs inside the single fused kernel.
# --------------------------------------------------------------------------- #
def text_sentiment_rnn_forward(params, text, target):
    B, T = text.shape
    E = params["embedding"].shape[1]
    H = params["whh0"].shape[1]
    da = params["Ws1"].shape[0]
    r = params["Ws2"].shape[0]
    MH = params["mlp_w1"].shape[0]
    C = params["mlp_w2"].shape[0]

    embedded = params["embedding"][text]                           # (B, T, E) gather
    x_flat = jnp.transpose(embedded, (1, 0, 2)).reshape(T * B, E)  # t-major rows

    wih0_t = params["wih0"].T                                      # (E, 4H)
    whh0_t = params["whh0"].T                                      # (H, 4H)
    b0 = (params["bih0"] + params["bhh0"]).reshape(1, 4 * H)
    wih1_t = params["wih1"].T                                      # (H, 4H)
    whh1_t = params["whh1"].T                                      # (H, 4H)
    b1g = (params["bih1"] + params["bhh1"]).reshape(1, 4 * H)
    ws1_t = params["Ws1"].T                                        # (H, da)
    ws2_t = params["Ws2"].T                                        # (da, r)
    w1_t = params["mlp_w1"].T                                      # (r*H, MH)
    b1m = params["mlp_b1"].reshape(1, MH)
    w2_t = params["mlp_w2"].T                                      # (MH, C)
    b2m = params["mlp_b2"].reshape(1, C)

    def full(shape):
        return pl.BlockSpec(shape, lambda i, _s=shape: (0,) * len(_s))

    loss, labels = pl.pallas_call(
        _fused_forward_kernel,
        out_shape=(jax.ShapeDtypeStruct((1, 1), jnp.float32),
                   jax.ShapeDtypeStruct((B, C), jnp.float32)),
        grid=(1,),
        in_specs=[
            full((T * B, E)),
            full((E, 4 * H)), full((H, 4 * H)), full((1, 4 * H)),
            full((H, 4 * H)), full((H, 4 * H)), full((1, 4 * H)),
            full((H, da)), full((da, r)),
            full((r * H, MH)), full((1, MH)),
            full((MH, C)), full((1, C)),
            full((B, C)),
        ],
        out_specs=(full((1, 1)), full((B, C))),
        scratch_shapes=[
            pltpu.VMEM((T * B, H), jnp.float32),   # layer-0 output sequence
            pltpu.VMEM((B, T, H), jnp.float32),    # layer-1 output sequence
        ],
        compiler_params=pltpu.CompilerParams(
            dimension_semantics=("arbitrary",)),
    )(x_flat, wih0_t, whh0_t, b0, wih1_t, whh1_t, b1g,
      ws1_t, ws2_t, w1_t, b1m, w2_t, b2m, target)
    return loss[0, 0], labels


def init_params(key, vocab_size, embed_dim, hidden_size, param_da, param_r,
                mlp_hidden_size, num_class):
    ks = jax.random.split(key, 16)
    H = hidden_size
    bound = 1.0 / float(jnp.sqrt(jnp.float32(H)))

    def unif(k, shape):
        return jax.random.uniform(k, shape, jnp.float32, -bound, bound)

    return {
        "embedding": jax.random.normal(ks[0], (vocab_size, embed_dim), jnp.float32),
        "wih0": unif(ks[1], (4 * H, embed_dim)),
        "whh0": unif(ks[2], (4 * H, H)),
        "bih0": unif(ks[3], (4 * H,)),
        "bhh0": unif(ks[4], (4 * H,)),
        "wih1": unif(ks[5], (4 * H, H)),
        "whh1": unif(ks[6], (4 * H, H)),
        "bih1": unif(ks[7], (4 * H,)),
        "bhh1": unif(ks[8], (4 * H,)),
        "Ws1": jax.random.normal(ks[9], (param_da, H), jnp.float32),
        "Ws2": jax.random.normal(ks[10], (param_r, param_da), jnp.float32),
        "mlp_w1": unif(ks[11], (mlp_hidden_size, param_r * H)),
        "mlp_b1": unif(ks[12], (mlp_hidden_size,)),
        "mlp_w2": unif(ks[13], (num_class, mlp_hidden_size)),
        "mlp_b2": unif(ks[14], (num_class,)),
    }


if __name__ == "__main__":
    # Small shapes consistent with the module (2-layer unidirectional LSTM + attention).
    B, T = 2, 8
    vocab_size = 50
    embed_dim = 32
    hidden_size = 32
    param_da = 32
    param_r = 8
    mlp_hidden_size = 32
    num_class = 8

    key = jax.random.PRNGKey(0)
    k_param, k_text, k_tgt = jax.random.split(key, 3)
    params = init_params(k_param, vocab_size, embed_dim, hidden_size,
                         param_da, param_r, mlp_hidden_size, num_class)
    text = jax.random.randint(k_text, (B, T), 0, vocab_size, dtype=jnp.int32)
    target = jax.nn.one_hot(
        jax.random.randint(k_tgt, (B,), 0, num_class), num_class, dtype=jnp.float32)

    fwd = jax.jit(text_sentiment_rnn_forward)
    loss, labels = fwd(params, text, target)
    jax.block_until_ready((loss, labels))
    assert labels.shape == (B, num_class)
    assert loss.shape == ()
    print("KERNEL_OK")
</pallas_src>

<mosaic_0001>
module attributes {stable_mosaic.version = 11 : i64} {
  func.func @_fused_forward_kernel(%arg0: i32, %arg1: memref<16x32xf32, #tpu.memory_space<vmem>>, %arg2: memref<32x128xf32, #tpu.memory_space<vmem>>, %arg3: memref<32x128xf32, #tpu.memory_space<vmem>>, %arg4: memref<1x128xf32, #tpu.memory_space<vmem>>, %arg5: memref<32x128xf32, #tpu.memory_space<vmem>>, %arg6: memref<32x128xf32, #tpu.memory_space<vmem>>, %arg7: memref<1x128xf32, #tpu.memory_space<vmem>>, %arg8: memref<32x32xf32, #tpu.memory_space<vmem>>, %arg9: memref<32x8xf32, #tpu.memory_space<vmem>>, %arg10: memref<256x32xf32, #tpu.memory_space<vmem>>, %arg11: memref<1x32xf32, #tpu.memory_space<vmem>>, %arg12: memref<32x8xf32, #tpu.memory_space<vmem>>, %arg13: memref<1x8xf32, #tpu.memory_space<vmem>>, %arg14: memref<2x8xf32, #tpu.memory_space<vmem>>, %arg15: memref<1x1xf32, #tpu.memory_space<vmem>>, %arg16: memref<2x8xf32, #tpu.memory_space<vmem>>, %arg17: memref<16x32xf32, #tpu.memory_space<vmem>>, %arg18: memref<2x8x32xf32, #tpu.memory_space<vmem>>) attributes {dimension_semantics = [#tpu.dimension_semantics<arbitrary>], iteration_bounds = array<i64: 1>, scalar_prefetch = 0 : i64, scratch_operands = 2 : i64, tpu.core_type = #tpu.core_type<tc>, window_params = [{pipeline_mode = #tpu.pipeline_mode<synchronous>, transform_indices = @transform_0, window_bounds = array<i64: 16, 32>}, {pipeline_mode = #tpu.pipeline_mode<synchronous>, transform_indices = @transform_1, window_bounds = array<i64: 32, 128>}, {pipeline_mode = #tpu.pipeline_mode<synchronous>, transform_indices = @transform_2, window_bounds = array<i64: 32, 128>}, {pipeline_mode = #tpu.pipeline_mode<synchronous>, transform_indices = @transform_3, window_bounds = array<i64: 1, 128>}, {pipeline_mode = #tpu.pipeline_mode<synchronous>, transform_indices = @transform_4, window_bounds = array<i64: 32, 128>}, {pipeline_mode = #tpu.pipeline_mode<synchronous>, transform_indices = @transform_5, window_bounds = array<i64: 32, 128>}, {pipeline_mode = #tpu.pipeline_mode<synchronous>, transform_indices = @transform_6, window_bounds = array<i64: 1, 128>}, {pipeline_mode = #tpu.pipeline_mode<synchronous>, transform_indices = @transform_7, window_bounds = array<i64: 32, 32>}, {pipeline_mode = #tpu.pipeline_mode<synchronous>, transform_indices = @transform_8, window_bounds = array<i64: 32, 8>}, {pipeline_mode = #tpu.pipeline_mode<synchronous>, transform_indices = @transform_9, window_bounds = array<i64: 256, 32>}, {pipeline_mode = #tpu.pipeline_mode<synchronous>, transform_indices = @transform_10, window_bounds = array<i64: 1, 32>}, {pipeline_mode = #tpu.pipeline_mode<synchronous>, transform_indices = @transform_11, window_bounds = array<i64: 32, 8>}, {pipeline_mode = #tpu.pipeline_mode<synchronous>, transform_indices = @transform_12, window_bounds = array<i64: 1, 8>}, {pipeline_mode = #tpu.pipeline_mode<synchronous>, transform_indices = @transform_13, window_bounds = array<i64: 2, 8>}, {pipeline_mode = #tpu.pipeline_mode<synchronous>, transform_indices = @transform_14, window_bounds = array<i64: 1, 1>}, {pipeline_mode = #tpu.pipeline_mode<synchronous>, transform_indices = @transform_15, window_bounds = array<i64: 2, 8>}]} {
    %c0 = arith.constant 0 : index
    %c0_0 = arith.constant 0 : index
    %0 = vector.load %arg3[%c0, %c0_0] : memref<32x128xf32, #tpu.memory_space<vmem>>, vector<32x128xf32>
    %c0_1 = arith.constant 0 : index
    %c0_2 = arith.constant 0 : index
    %1 = vector.load %arg6[%c0_1, %c0_2] : memref<32x128xf32, #tpu.memory_space<vmem>>, vector<32x128xf32>
    %c0_3 = arith.constant 0 : index
    %c0_4 = arith.constant 0 : index
    %2 = vector.load %arg1[%c0_3, %c0_4] : memref<16x32xf32, #tpu.memory_space<vmem>>, vector<16x32xf32>
    %c0_5 = arith.constant 0 : index
    %c0_6 = arith.constant 0 : index
    %3 = vector.load %arg2[%c0_5, %c0_6] : memref<32x128xf32, #tpu.memory_space<vmem>>, vector<32x128xf32>
    %cst = arith.constant dense<0.000000e+00> : vector<16x128xf32>
    %4 = tpu.matmul %2, %3, %cst {dimension_numbers = #tpu.dot_dimension_numbers<[1], [0], [0], [1], [0, 0, 1, 1], [], []>} : vector<16x32xf32>, vector<32x128xf32>, vector<16x128xf32> -> vector<16x128xf32>
    %c0_7 = arith.constant 0 : index
    %c0_8 = arith.constant 0 : index
    %5 = vector.load %arg4[%c0_7, %c0_8] : memref<1x128xf32, #tpu.memory_space<vmem>>, vector<1x128xf32>
    %6 = vector.broadcast %5 : vector<1x128xf32> to vector<16x128xf32>
    %7 = arith.addf %4, %6 : vector<16x128xf32>
    %cst_9 = arith.constant 0.000000e+00 : f32
    %8 = vector.broadcast %cst_9 : f32 to vector<2x32xf32>
    %cst_10 = arith.constant 0.000000e+00 : f32
    %9 = vector.broadcast %cst_10 : f32 to vector<2x32xf32>
    %10 = vector.extract_strided_slice %7 {offsets = [0, 0], sizes = [2, 128], strides = [1, 1]} : vector<16x128xf32> to vector<2x128xf32>
    %cst_11 = arith.constant dense<0.000000e+00> : vector<2x128xf32>
    %11 = tpu.matmul %8, %0, %cst_11 {dimension_numbers = #tpu.dot_dimension_numbers<[1], [0], [0], [1], [0, 0, 1, 1], [], []>} : vector<2x32xf32>, vector<32x128xf32>, vector<2x128xf32> -> vector<2x128xf32>
    %12 = arith.addf %10, %11 : vector<2x128xf32>
    %13 = arith.negf %12 : vector<2x128xf32>
    %14 = math.exp %13 : vector<2x128xf32>
    %cst_12 = arith.constant 1.000000e+00 : f32
    %15 = vector.broadcast %cst_12 : f32 to vector<2x128xf32>
    %16 = arith.addf %15, %14 : vector<2x128xf32>
    %17 = arith.divf %15, %16 : vector<2x128xf32>
    %18 = math.tanh %12 : vector<2x128xf32>
    %19 = vector.extract_strided_slice %17 {offsets = [0, 0], sizes = [2, 32], strides = [1, 1]} : vector<2x128xf32> to vector<2x32xf32>
    %20 = vector.extract_strided_slice %17 {offsets = [0, 32], sizes = [2, 32], strides = [1, 1]} : vector<2x128xf32> to vector<2x32xf32>
    %21 = vector.extract_strided_slice %18 {offsets = [0, 64], sizes = [2, 32], strides = [1, 1]} : vector<2x128xf32> to vector<2x32xf32>
    %22 = vector.extract_strided_slice %17 {offsets = [0, 96], sizes = [2, 32], strides = [1, 1]} : vector<2x128xf32> to vector<2x32xf32>
    %23 = arith.mulf %20, %9 : vector<2x32xf32>
    %24 = arith.mulf %19, %21 : vector<2x32xf32>
    %25 = arith.addf %23, %24 : vector<2x32xf32>
    %26 = math.tanh %25 : vector<2x32xf32>
    %27 = arith.mulf %22, %26 : vector<2x32xf32>
    %c0_13 = arith.constant 0 : index
    %c0_14 = arith.constant 0 : index
    %28 = vector.load %arg17[%c0_13, %c0_14] : memref<16x32xf32, #tpu.memory_space<vmem>>, vector<2x32xf32>
    tpu.vector_store %arg17[%c0_13, %c0_14], %27 {strides = array<i32>} : memref<16x32xf32, #tpu.memory_space<vmem>>, vector<2x32xf32>,
    %29 = vector.extract_strided_slice %7 {offsets = [2, 0], sizes = [2, 128], strides = [1, 1]} : vector<16x128xf32> to vector<2x128xf32>
    %cst_15 = arith.constant dense<0.000000e+00> : vector<2x128xf32>
    %30 = tpu.matmul %27, %0, %cst_15 {dimension_numbers = #tpu.dot_dimension_numbers<[1], [0], [0], [1], [0, 0, 1, 1], [], []>} : vector<2x32xf32>, vector<32x128xf32>, vector<2x128xf32> -> vector<2x128xf32>
    %31 = arith.addf %29, %30 : vector<2x128xf32>
    %32 = arith.negf %31 : vector<2x128xf32>
    %33 = math.exp %32 : vector<2x128xf32>
    %cst_16 = arith.constant 1.000000e+00 : f32
    %34 = vector.broadcast %cst_16 : f32 to vector<2x128xf32>
    %35 = arith.addf %34, %33 : vector<2x128xf32>
    %36 = arith.divf %34, %35 : vector<2x128xf32>
    %37 = math.tanh %31 : vector<2x128xf32>
    %38 = vector.extract_strided_slice %36 {offsets = [0, 0], sizes = [2, 32], strides = [1, 1]} : vector<2x128xf32> to vector<2x32xf32>
    %39 = vector.extract_strided_slice %36 {offsets = [0, 32], sizes = [2, 32], strides = [1, 1]} : vector<2x128xf32> to vector<2x32xf32>
    %40 = vector.extract_strided_slice %37 {offsets = [0, 64], sizes = [2, 32], strides = [1, 1]} : vector<2x128xf32> to vector<2x32xf32>
    %41 = vector.extract_strided_slice %36 {offsets = [0, 96], sizes = [2, 32], strides = [1, 1]} : vector<2x128xf32> to vector<2x32xf32>
    %42 = arith.mulf %39, %25 : vector<2x32xf32>
    %43 = arith.mulf %38, %40 : vector<2x32xf32>
    %44 = arith.addf %42, %43 : vector<2x32xf32>
    %45 = math.tanh %44 : vector<2x32xf32>
    %46 = arith.mulf %41, %45 : vector<2x32xf32>
    %c2 = arith.constant 2 : index
    %c0_17 = arith.constant 0 : index
    %47 = vector.load %arg17[%c2, %c0_17] : memref<16x32xf32, #tpu.memory_space<vmem>>, vector<2x32xf32>
    tpu.vector_store %arg17[%c2, %c0_17], %46 {strides = array<i32>} : memref<16x32xf32, #tpu.memory_space<vmem>>, vector<2x32xf32>,
    %48 = vector.extract_strided_slice %7 {offsets = [4, 0], sizes = [2, 128], strides = [1, 1]} : vector<16x128xf32> to vector<2x128xf32>
    %cst_18 = arith.constant dense<0.000000e+00> : vector<2x128xf32>
    %49 = tpu.matmul %46, %0, %cst_18 {dimension_numbers = #tpu.dot_dimension_numbers<[1], [0], [0], [1], [0, 0, 1, 1], [], []>} : vector<2x32xf32>, vector<32x128xf32>, vector<2x128xf32> -> vector<2x128xf32>
    %50 = arith.addf %48, %49 : vector<2x128xf32>
    %51 = arith.negf %50 : vector<2x128xf32>
    %52 = math.exp %51 : vector<2x128xf32>
    %cst_19 = arith.constant 1.000000e+00 : f32
    %53 = vector.broadcast %cst_19 : f32 to vector<2x128xf32>
    %54 = arith.addf %53, %52 : vector<2x128xf32>
    %55 = arith.divf %53, %54 : vector<2x128xf32>
    %56 = math.tanh %50 : vector<2x128xf32>
    %57 = vector.extract_strided_slice %55 {offsets = [0, 0], sizes = [2, 32], strides = [1, 1]} : vector<2x128xf32> to vector<2x32xf32>
    %58 = vector.extract_strided_slice %55 {offsets = [0, 32], sizes = [2, 32], strides = [1, 1]} : vector<2x128xf32> to vector<2x32xf32>
    %59 = vector.extract_strided_slice %56 {offsets = [0, 64], sizes = [2, 32], strides = [1, 1]} : vector<2x128xf32> to vector<2x32xf32>
    %60 = vector.extract_strided_slice %55 {offsets = [0, 96], sizes = [2, 32], strides = [1, 1]} : vector<2x128xf32> to vector<2x32xf32>
    %61 = arith.mulf %58, %44 : vector<2x32xf32>
    %62 = arith.mulf %57, %59 : vector<2x32xf32>
    %63 = arith.addf %61, %62 : vector<2x32xf32>
    %64 = math.tanh %63 : vector<2x32xf32>
    %65 = arith.mulf %60, %64 : vector<2x32xf32>
    %c4 = arith.constant 4 : index
    %c0_20 = arith.constant 0 : index
    %66 = vector.load %arg17[%c4, %c0_20] : memref<16x32xf32, #tpu.memory_space<vmem>>, vector<2x32xf32>
    tpu.vector_store %arg17[%c4, %c0_20], %65 {strides = array<i32>} : memref<16x32xf32, #tpu.memory_space<vmem>>, vector<2x32xf32>,
    %67 = vector.extract_strided_slice %7 {offsets = [6, 0], sizes = [2, 128], strides = [1, 1]} : vector<16x128xf32> to vector<2x128xf32>
    %cst_21 = arith.constant dense<0.000000e+00> : vector<2x128xf32>
    %68 = tpu.matmul %65, %0, %cst_21 {dimension_numbers = #tpu.dot_dimension_numbers<[1], [0], [0], [1], [0, 0, 1, 1], [], []>} : vector<2x32xf32>, vector<32x128xf32>, vector<2x128xf32> -> vector<2x128xf32>
    %69 = arith.addf %67, %68 : vector<2x128xf32>
    %70 = arith.negf %69 : vector<2x128xf32>
    %71 = math.exp %70 : vector<2x128xf32>
    %cst_22 = arith.constant 1.000000e+00 : f32
    %72 = vector.broadcast %cst_22 : f32 to vector<2x128xf32>
    %73 = arith.addf %72, %71 : vector<2x128xf32>
    %74 = arith.divf %72, %73 : vector<2x128xf32>
    %75 = math.tanh %69 : vector<2x128xf32>
    %76 = vector.extract_strided_slice %74 {offsets = [0, 0], sizes = [2, 32], strides = [1, 1]} : vector<2x128xf32> to vector<2x32xf32>
    %77 = vector.extract_strided_slice %74 {offsets = [0, 32], sizes = [2, 32], strides = [1, 1]} : vector<2x128xf32> to vector<2x32xf32>
    %78 = vector.extract_strided_slice %75 {offsets = [0, 64], sizes = [2, 32], strides = [1, 1]} : vector<2x128xf32> to vector<2x32xf32>
    %79 = vector.extract_strided_slice %74 {offsets = [0, 96], sizes = [2, 32], strides = [1, 1]} : vector<2x128xf32> to vector<2x32xf32>
    %80 = arith.mulf %77, %63 : vector<2x32xf32>
    %81 = arith.mulf %76, %78 : vector<2x32xf32>
    %82 = arith.addf %80, %81 : vector<2x32xf32>
    %83 = math.tanh %82 : vector<2x32xf32>
    %84 = arith.mulf %79, %83 : vector<2x32xf32>
    %c6 = arith.constant 6 : index
    %c0_23 = arith.constant 0 : index
    %85 = vector.load %arg17[%c6, %c0_23] : memref<16x32xf32, #tpu.memory_space<vmem>>, vector<2x32xf32>
    tpu.vector_store %arg17[%c6, %c0_23], %84 {strides = array<i32>} : memref<16x32xf32, #tpu.memory_space<vmem>>, vector<2x32xf32>,
    %86 = vector.extract_strided_slice %7 {offsets = [8, 0], sizes = [2, 128], strides = [1, 1]} : vector<16x128xf32> to vector<2x128xf32>
    %cst_24 = arith.constant dense<0.000000e+00> : vector<2x128xf32>
    %87 = tpu.matmul %84, %0, %cst_24 {dimension_numbers = #tpu.dot_dimension_numbers<[1], [0], [0], [1], [0, 0, 1, 1], [], []>} : vector<2x32xf32>, vector<32x128xf32>, vector<2x128xf32> -> vector<2x128xf32>
    %88 = arith.addf %86, %87 : vector<2x128xf32>
    %89 = arith.negf %88 : vector<2x128xf32>
    %90 = math.exp %89 : vector<2x128xf32>
    %cst_25 = arith.constant 1.000000e+00 : f32
    %91 = vector.broadcast %cst_25 : f32 to vector<2x128xf32>
    %92 = arith.addf %91, %90 : vector<2x128xf32>
    %93 = arith.divf %91, %92 : vector<2x128xf32>
    %94 = math.tanh %88 : vector<2x128xf32>
    %95 = vector.extract_strided_slice %93 {offsets = [0, 0], sizes = [2, 32], strides = [1, 1]} : vector<2x128xf32> to vector<2x32xf32>
    %96 = vector.extract_strided_slice %93 {offsets = [0, 32], sizes = [2, 32], strides = [1, 1]} : vector<2x128xf32> to vector<2x32xf32>
    %97 = vector.extract_strided_slice %94 {offsets = [0, 64], sizes = [2, 32], strides = [1, 1]} : vector<2x128xf32> to vector<2x32xf32>
    %98 = vector.extract_strided_slice %93 {offsets = [0, 96], sizes = [2, 32], strides = [1, 1]} : vector<2x128xf32> to vector<2x32xf32>
    %99 = arith.mulf %96, %82 : vector<2x32xf32>
    %100 = arith.mulf %95, %97 : vector<2x32xf32>
    %101 = arith.addf %99, %100 : vector<2x32xf32>
    %102 = math.tanh %101 : vector<2x32xf32>
    %103 = arith.mulf %98, %102 : vector<2x32xf32>
    %c8 = arith.constant 8 : index
    %c0_26 = arith.constant 0 : index
    %104 = vector.load %arg17[%c8, %c0_26] : memref<16x32xf32, #tpu.memory_space<vmem>>, vector<2x32xf32>
    tpu.vector_store %arg17[%c8, %c0_26], %103 {strides = array<i32>} : memref<16x32xf32, #tpu.memory_space<vmem>>, vector<2x32xf32>,
    %105 = vector.extract_strided_slice %7 {offsets = [10, 0], sizes = [2, 128], strides = [1, 1]} : vector<16x128xf32> to vector<2x128xf32>
    %cst_27 = arith.constant dense<0.000000e+00> : vector<2x128xf32>
    %106 = tpu.matmul %103, %0, %cst_27 {dimension_numbers = #tpu.dot_dimension_numbers<[1], [0], [0], [1], [0, 0, 1, 1], [], []>} : vector<2x32xf32>, vector<32x128xf32>, vector<2x128xf32> -> vector<2x128xf32>
    %107 = arith.addf %105, %106 : vector<2x128xf32>
    %108 = arith.negf %107 : vector<2x128xf32>
    %109 = math.exp %108 : vector<2x128xf32>
    %cst_28 = arith.constant 1.000000e+00 : f32
    %110 = vector.broadcast %cst_28 : f32 to vector<2x128xf32>
    %111 = arith.addf %110, %109 : vector<2x128xf32>
    %112 = arith.divf %110, %111 : vector<2x128xf32>
    %113 = math.tanh %107 : vector<2x128xf32>
    %114 = vector.extract_strided_slice %112 {offsets = [0, 0], sizes = [2, 32], strides = [1, 1]} : vector<2x128xf32> to vector<2x32xf32>
    %115 = vector.extract_strided_slice %112 {offsets = [0, 32], sizes = [2, 32], strides = [1, 1]} : vector<2x128xf32> to vector<2x32xf32>
    %116 = vector.extract_strided_slice %113 {offsets = [0, 64], sizes = [2, 32], strides = [1, 1]} : vector<2x128xf32> to vector<2x32xf32>
    %117 = vector.extract_strided_slice %112 {offsets = [0, 96], sizes = [2, 32], strides = [1, 1]} : vector<2x128xf32> to vector<2x32xf32>
    %118 = arith.mulf %115, %101 : vector<2x32xf32>
    %119 = arith.mulf %114, %116 : vector<2x32xf32>
    %120 = arith.addf %118, %119 : vector<2x32xf32>
    %121 = math.tanh %120 : vector<2x32xf32>
    %122 = arith.mulf %117, %121 : vector<2x32xf32>
    %c10 = arith.constant 10 : index
    %c0_29 = arith.constant 0 : index
    %123 = vector.load %arg17[%c10, %c0_29] : memref<16x32xf32, #tpu.memory_space<vmem>>, vector<2x32xf32>
    tpu.vector_store %arg17[%c10, %c0_29], %122 {strides = array<i32>} : memref<16x32xf32, #tpu.memory_space<vmem>>, vector<2x32xf32>,
    %124 = vector.extract_strided_slice %7 {offsets = [12, 0], sizes = [2, 128], strides = [1, 1]} : vector<16x128xf32> to vector<2x128xf32>
    %cst_30 = arith.constant dense<0.000000e+00> : vector<2x128xf32>
    %125 = tpu.matmul %122, %0, %cst_30 {dimension_numbers = #tpu.dot_dimension_numbers<[1], [0], [0], [1], [0, 0, 1, 1], [], []>} : vector<2x32xf32>, vector<32x128xf32>, vector<2x128xf32> -> vector<2x128xf32>
    %126 = arith.addf %124, %125 : vector<2x128xf32>
    %127 = arith.negf %126 : vector<2x128xf32>
    %128 = math.exp %127 : vector<2x128xf32>
    %cst_31 = arith.constant 1.000000e+00 : f32
    %129 = vector.broadcast %cst_31 : f32 to vector<2x128xf32>
    %130 = arith.addf %129, %128 : vector<2x128xf32>
    %131 = arith.divf %129, %130 : vector<2x128xf32>
    %132 = math.tanh %126 : vector<2x128xf32>
    %133 = vector.extract_strided_slice %131 {offsets = [0, 0], sizes = [2, 32], strides = [1, 1]} : vector<2x128xf32> to vector<2x32xf32>
    %134 = vector.extract_strided_slice %131 {offsets = [0, 32], sizes = [2, 32], strides = [1, 1]} : vector<2x128xf32> to vector<2x32xf32>
    %135 = vector.extract_strided_slice %132 {offsets = [0, 64], sizes = [2, 32], strides = [1, 1]} : vector<2x128xf32> to vector<2x32xf32>
    %136 = vector.extract_strided_slice %131 {offsets = [0, 96], sizes = [2, 32], strides = [1, 1]} : vector<2x128xf32> to vector<2x32xf32>
    %137 = arith.mulf %134, %120 : vector<2x32xf32>
    %138 = arith.mulf %133, %135 : vector<2x32xf32>
    %139 = arith.addf %137, %138 : vector<2x32xf32>
    %140 = math.tanh %139 : vector<2x32xf32>
    %141 = arith.mulf %136, %140 : vector<2x32xf32>
    %c12 = arith.constant 12 : index
    %c0_32 = arith.constant 0 : index
    %142 = vector.load %arg17[%c12, %c0_32] : memref<16x32xf32, #tpu.memory_space<vmem>>, vector<2x32xf32>
    tpu.vector_store %arg17[%c12, %c0_32], %141 {strides = array<i32>} : memref<16x32xf32, #tpu.memory_space<vmem>>, vector<2x32xf32>,
    %143 = vector.extract_strided_slice %7 {offsets = [14, 0], sizes = [2, 128], strides = [1, 1]} : vector<16x128xf32> to vector<2x128xf32>
    %cst_33 = arith.constant dense<0.000000e+00> : vector<2x128xf32>
    %144 = tpu.matmul %141, %0, %cst_33 {dimension_numbers = #tpu.dot_dimension_numbers<[1], [0], [0], [1], [0, 0, 1, 1], [], []>} : vector<2x32xf32>, vector<32x128xf32>, vector<2x128xf32> -> vector<2x128xf32>
    %145 = arith.addf %143, %144 : vector<2x128xf32>
    %146 = arith.negf %145 : vector<2x128xf32>
    %147 = math.exp %146 : vector<2x128xf32>
    %cst_34 = arith.constant 1.000000e+00 : f32
    %148 = vector.broadcast %cst_34 : f32 to vector<2x128xf32>
    %149 = arith.addf %148, %147 : vector<2x128xf32>
    %150 = arith.divf %148, %149 : vector<2x128xf32>
    %151 = math.tanh %145 : vector<2x128xf32>
    %152 = vector.extract_strided_slice %150 {offsets = [0, 0], sizes = [2, 32], strides = [1, 1]} : vector<2x128xf32> to vector<2x32xf32>
    %153 = vector.extract_strided_slice %150 {offsets = [0, 32], sizes = [2, 32], strides = [1, 1]} : vector<2x128xf32> to vector<2x32xf32>
    %154 = vector.extract_strided_slice %151 {offsets = [0, 64], sizes = [2, 32], strides = [1, 1]} : vector<2x128xf32> to vector<2x32xf32>
    %155 = vector.extract_strided_slice %150 {offsets = [0, 96], sizes = [2, 32], strides = [1, 1]} : vector<2x128xf32> to vector<2x32xf32>
    %156 = arith.mulf %153, %139 : vector<2x32xf32>
    %157 = arith.mulf %152, %154 : vector<2x32xf32>
    %158 = arith.addf %156, %157 : vector<2x32xf32>
    %159 = math.tanh %158 : vector<2x32xf32>
    %160 = arith.mulf %155, %159 : vector<2x32xf32>
    %c14 = arith.constant 14 : index
    %c0_35 = arith.constant 0 : index
    %161 = vector.load %arg17[%c14, %c0_35] : memref<16x32xf32, #tpu.memory_space<vmem>>, vector<2x32xf32>
    tpu.vector_store %arg17[%c14, %c0_35], %160 {strides = array<i32>} : memref<16x32xf32, #tpu.memory_space<vmem>>, vector<2x32xf32>,
    %c0_36 = arith.constant 0 : index
    %c0_37 = arith.constant 0 : index
    %162 = vector.load %arg17[%c0_36, %c0_37] : memref<16x32xf32, #tpu.memory_space<vmem>>, vector<16x32xf32>
    %c0_38 = arith.constant 0 : index
    %c0_39 = arith.constant 0 : index
    %163 = vector.load %arg5[%c0_38, %c0_39] : memref<32x128xf32, #tpu.memory_space<vmem>>, vector<32x128xf32>
    %cst_40 = arith.constant dense<0.000000e+00> : vector<16x128xf32>
    %164 = tpu.matmul %162, %163, %cst_40 {dimension_numbers = #tpu.dot_dimension_numbers<[1], [0], [0], [1], [0, 0, 1, 1], [], []>} : vector<16x32xf32>, vector<32x128xf32>, vector<16x128xf32> -> vector<16x128xf32>
    %c0_41 = arith.constant 0 : index
    %c0_42 = arith.constant 0 : index
    %165 = vector.load %arg7[%c0_41, %c0_42] : memref<1x128xf32, #tpu.memory_space<vmem>>, vector<1x128xf32>
    %166 = vector.broadcast %165 : vector<1x128xf32> to vector<16x128xf32>
    %167 = arith.addf %164, %166 : vector<16x128xf32>
    %cst_43 = arith.constant 0.000000e+00 : f32
    %168 = vector.broadcast %cst_43 : f32 to vector<2x32xf32>
    %cst_44 = arith.constant 0.000000e+00 : f32
    %169 = vector.broadcast %cst_44 : f32 to vector<2x32xf32>
    %170 = vector.extract_strided_slice %167 {offsets = [0, 0], sizes = [2, 128], strides = [1, 1]} : vector<16x128xf32> to vector<2x128xf32>
    %cst_45 = arith.constant dense<0.000000e+00> : vector<2x128xf32>
    %171 = tpu.matmul %168, %1, %cst_45 {dimension_numbers = #tpu.dot_dimension_numbers<[1], [0], [0], [1], [0, 0, 1, 1], [], []>} : vector<2x32xf32>, vector<32x128xf32>, vector<2x128xf32> -> vector<2x128xf32>
    %172 = arith.addf %170, %171 : vector<2x128xf32>
    %173 = arith.negf %172 : vector<2x128xf32>
    %174 = math.exp %173 : vector<2x128xf32>
    %cst_46 = arith.constant 1.000000e+00 : f32
    %175 = vector.broadcast %cst_46 : f32 to vector<2x128xf32>
    %176 = arith.addf %175, %174 : vector<2x128xf32>
    %177 = arith.divf %175, %176 : vector<2x128xf32>
    %178 = math.tanh %172 : vector<2x128xf32>
    %179 = vector.extract_strided_slice %177 {offsets = [0, 0], sizes = [2, 32], strides = [1, 1]} : vector<2x128xf32> to vector<2x32xf32>
    %180 = vector.extract_strided_slice %177 {offsets = [0, 32], sizes = [2, 32], strides = [1, 1]} : vector<2x128xf32> to vector<2x32xf32>
    %181 = vector.extract_strided_slice %178 {offsets = [0, 64], sizes = [2, 32], strides = [1, 1]} : vector<2x128xf32> to vector<2x32xf32>
    %182 = vector.extract_strided_slice %177 {offsets = [0, 96], sizes = [2, 32], strides = [1, 1]} : vector<2x128xf32> to vector<2x32xf32>
    %183 = arith.mulf %180, %169 : vector<2x32xf32>
    %184 = arith.mulf %179, %181 : vector<2x32xf32>
    %185 = arith.addf %183, %184 : vector<2x32xf32>
    %186 = math.tanh %185 : vector<2x32xf32>
    %187 = arith.mulf %182, %186 : vector<2x32xf32>
    %c0_47 = arith.constant 0 : index
    %c0_48 = arith.constant 0 : index
    %c0_49 = arith.constant 0 : index
    %188 = vector.load %arg18[%c0_47, %c0_48, %c0_49] : memref<2x8x32xf32, #tpu.memory_space<vmem>>, vector<2x1x32xf32>
    %189 = vector.shape_cast %188 : vector<2x1x32xf32> to vector<2x32xf32>
    %190 = vector.shape_cast %187 : vector<2x32xf32> to vector<2x1x32xf32>
    tpu.vector_store %arg18[%c0_47, %c0_48, %c0_49], %190 {strides = array<i32>} : memref<2x8x32xf32, #tpu.memory_space<vmem>>, vector<2x1x32xf32>,
    %191 = vector.extract_strided_slice %167 {offsets = [2, 0], sizes = [2, 128], strides = [1, 1]} : vector<16x128xf32> to vector<2x128xf32>
    %cst_50 = arith.constant dense<0.000000e+00> : vector<2x128xf32>
    %192 = tpu.matmul %187, %1, %cst_50 {dimension_numbers = #tpu.dot_dimension_numbers<[1], [0], [0], [1], [0, 0, 1, 1], [], []>} : vector<2x32xf32>, vector<32x128xf32>, vector<2x128xf32> -> vector<2x128xf32>
    %193 = arith.addf %191, %192 : vector<2x128xf32>
    %194 = arith.negf %193 : vector<2x128xf32>
    %195 = math.exp %194 : vector<2x128xf32>
    %cst_51 = arith.constant 1.000000e+00 : f32
    %196 = vector.broadcast %cst_51 : f32 to vector<2x128xf32>
    %197 = arith.addf %196, %195 : vector<2x128xf32>
    %198 = arith.divf %196, %197 : vector<2x128xf32>
    %199 = math.tanh %193 : vector<2x128xf32>
    %200 = vector.extract_strided_slice %198 {offsets = [0, 0], sizes = [2, 32], strides = [1, 1]} : vector<2x128xf32> to vector<2x32xf32>
    %201 = vector.extract_strided_slice %198 {offsets = [0, 32], sizes = [2, 32], strides = [1, 1]} : vector<2x128xf32> to vector<2x32xf32>
    %202 = vector.extract_strided_slice %199 {offsets = [0, 64], sizes = [2, 32], strides = [1, 1]} : vector<2x128xf32> to vector<2x32xf32>
    %203 = vector.extract_strided_slice %198 {offsets = [0, 96], sizes = [2, 32], strides = [1, 1]} : vector<2x128xf32> to vector<2x32xf32>
    %204 = arith.mulf %201, %185 : vector<2x32xf32>
    %205 = arith.mulf %200, %202 : vector<2x32xf32>
    %206 = arith.addf %204, %205 : vector<2x32xf32>
    %207 = math.tanh %206 : vector<2x32xf32>
    %208 = arith.mulf %203, %207 : vector<2x32xf32>
    %c0_52 = arith.constant 0 : index
    %c1 = arith.constant 1 : index
    %c0_53 = arith.constant 0 : index
    %209 = vector.load %arg18[%c0_52, %c1, %c0_53] : memref<2x8x32xf32, #tpu.memory_space<vmem>>, vector<2x1x32xf32>
    %210 = vector.shape_cast %209 : vector<2x1x32xf32> to vector<2x32xf32>
    %211 = vector.shape_cast %208 : vector<2x32xf32> to vector<2x1x32xf32>
    tpu.vector_store %arg18[%c0_52, %c1, %c0_53], %211 {strides = array<i32>} : memref<2x8x32xf32, #tpu.memory_space<vmem>>, vector<2x1x32xf32>,
    %212 = vector.extract_strided_slice %167 {offsets = [4, 0], sizes = [2, 128], strides = [1, 1]} : vector<16x128xf32> to vector<2x128xf32>
    %cst_54 = arith.constant dense<0.000000e+00> : vector<2x128xf32>
    %213 = tpu.matmul %208, %1, %cst_54 {dimension_numbers = #tpu.dot_dimension_numbers<[1], [0], [0], [1], [0, 0, 1, 1], [], []>} : vector<2x32xf32>, vector<32x128xf32>, vector<2x128xf32> -> vector<2x128xf32>
    %214 = arith.addf %212, %213 : vector<2x128xf32>
    %215 = arith.negf %214 : vector<2x128xf32>
    %216 = math.exp %215 : vector<2x128xf32>
    %cst_55 = arith.constant 1.000000e+00 : f32
    %217 = vector.broadcast %cst_55 : f32 to vector<2x128xf32>
    %218 = arith.addf %217, %216 : vector<2x128xf32>
    %219 = arith.divf %217, %218 : vector<2x128xf32>
    %220 = math.tanh %214 : vector<2x128xf32>
    %221 = vector.extract_strided_slice %219 {offsets = [0, 0], sizes = [2, 32], strides = [1, 1]} : vector<2x128xf32> to vector<2x32xf32>
    %222 = vector.extract_strided_slice %219 {offsets = [0, 32], sizes = [2, 32], strides = [1, 1]} : vector<2x128xf32> to vector<2x32xf32>
    %223 = vector.extract_strided_slice %220 {offsets = [0, 64], sizes = [2, 32], strides = [1, 1]} : vector<2x128xf32> to vector<2x32xf32>
    %224 = vector.extract_strided_slice %219 {offsets = [0, 96], sizes = [2, 32], strides = [1, 1]} : vector<2x128xf32> to vector<2x32xf32>
    %225 = arith.mulf %222, %206 : vector<2x32xf32>
    %226 = arith.mulf %221, %223 : vector<2x32xf32>
    %227 = arith.addf %225, %226 : vector<2x32xf32>
    %228 = math.tanh %227 : vector<2x32xf32>
    %229 = arith.mulf %224, %228 : vector<2x32xf32>
    %c0_56 = arith.constant 0 : index
    %c2_57 = arith.constant 2 : index
    %c0_58 = arith.constant 0 : index
    %230 = vector.load %arg18[%c0_56, %c2_57, %c0_58] : memref<2x8x32xf32, #tpu.memory_space<vmem>>, vector<2x1x32xf32>
    %231 = vector.shape_cast %230 : vector<2x1x32xf32> to vector<2x32xf32>
    %232 = vector.shape_cast %229 : vector<2x32xf32> to vector<2x1x32xf32>
    tpu.vector_store %arg18[%c0_56, %c2_57, %c0_58], %232 {strides = array<i32>} : memref<2x8x32xf32, #tpu.memory_space<vmem>>, vector<2x1x32xf32>,
    %233 = vector.extract_strided_slice %167 {offsets = [6, 0], sizes = [2, 128], strides = [1, 1]} : vector<16x128xf32> to vector<2x128xf32>
    %cst_59 = arith.constant dense<0.000000e+00> : vector<2x128xf32>
    %234 = tpu.matmul %229, %1, %cst_59 {dimension_numbers = #tpu.dot_dimension_numbers<[1], [0], [0], [1], [0, 0, 1, 1], [], []>} : vector<2x32xf32>, vector<32x128xf32>, vector<2x128xf32> -> vector<2x128xf32>
    %235 = arith.addf %233, %234 : vector<2x128xf32>
    %236 = arith.negf %235 : vector<2x128xf32>
    %237 = math.exp %236 : vector<2x128xf32>
    %cst_60 = arith.constant 1.000000e+00 : f32
    %238 = vector.broadcast %cst_60 : f32 to vector<2x128xf32>
    %239 = arith.addf %238, %237 : vector<2x128xf32>
    %240 = arith.divf %238, %239 : vector<2x128xf32>
    %241 = math.tanh %235 : vector<2x128xf32>
    %242 = vector.extract_strided_slice %240 {offsets = [0, 0], sizes = [2, 32], strides = [1, 1]} : vector<2x128xf32> to vector<2x32xf32>
    %243 = vector.extract_strided_slice %240 {offsets = [0, 32], sizes = [2, 32], strides = [1, 1]} : vector<2x128xf32> to vector<2x32xf32>
    %244 = vector.extract_strided_slice %241 {offsets = [0, 64], sizes = [2, 32], strides = [1, 1]} : vector<2x128xf32> to vector<2x32xf32>
    %245 = vector.extract_strided_slice %240 {offsets = [0, 96], sizes = [2, 32], strides = [1, 1]} : vector<2x128xf32> to vector<2x32xf32>
    %246 = arith.mulf %243, %227 : vector<2x32xf32>
    %247 = arith.mulf %242, %244 : vector<2x32xf32>
    %248 = arith.addf %246, %247 : vector<2x32xf32>
    %249 = math.tanh %248 : vector<2x32xf32>
    %250 = arith.mulf %245, %249 : vector<2x32xf32>
    %c0_61 = arith.constant 0 : index
    %c3 = arith.constant 3 : index
    %c0_62 = arith.constant 0 : index
    %251 = vector.load %arg18[%c0_61, %c3, %c0_62] : memref<2x8x32xf32, #tpu.memory_space<vmem>>, vector<2x1x32xf32>
    %252 = vector.shape_cast %251 : vector<2x1x32xf32> to vector<2x32xf32>
    %253 = vector.shape_cast %250 : vector<2x32xf32> to vector<2x1x32xf32>
    tpu.vector_store %arg18[%c0_61, %c3, %c0_62], %253 {strides = array<i32>} : memref<2x8x32xf32, #tpu.memory_space<vmem>>, vector<2x1x32xf32>,
    %254 = vector.extract_strided_slice %167 {offsets = [8, 0], sizes = [2, 128], strides = [1, 1]} : vector<16x128xf32> to vector<2x128xf32>
    %cst_63 = arith.constant dense<0.000000e+00> : vector<2x128xf32>
    %255 = tpu.matmul %250, %1, %cst_63 {dimension_numbers = #tpu.dot_dimension_numbers<[1], [0], [0], [1], [0, 0, 1, 1], [], []>} : vector<2x32xf32>, vector<32x128xf32>, vector<2x128xf32> -> vector<2x128xf32>
    %256 = arith.addf %254, %255 : vector<2x128xf32>
    %257 = arith.negf %256 : vector<2x128xf32>
    %258 = math.exp %257 : vector<2x128xf32>
    %cst_64 = arith.constant 1.000000e+00 : f32
    %259 = vector.broadcast %cst_64 : f32 to vector<2x128xf32>
    %260 = arith.addf %259, %258 : vector<2x128xf32>
    %261 = arith.divf %259, %260 : vector<2x128xf32>
    %262 = math.tanh %256 : vector<2x128xf32>
    %263 = vector.extract_strided_slice %261 {offsets = [0, 0], sizes = [2, 32], strides = [1, 1]} : vector<2x128xf32> to vector<2x32xf32>
    %264 = vector.extract_strided_slice %261 {offsets = [0, 32], sizes = [2, 32], strides = [1, 1]} : vector<2x128xf32> to vector<2x32xf32>
    %265 = vector.extract_strided_slice %262 {offsets = [0, 64], sizes = [2, 32], strides = [1, 1]} : vector<2x128xf32> to vector<2x32xf32>
    %266 = vector.extract_strided_slice %261 {offsets = [0, 96], sizes = [2, 32], strides = [1, 1]} : vector<2x128xf32> to vector<2x32xf32>
    %267 = arith.mulf %264, %248 : vector<2x32xf32>
    %268 = arith.mulf %263, %265 : vector<2x32xf32>
    %269 = arith.addf %267, %268 : vector<2x32xf32>
    %270 = math.tanh %269 : vector<2x32xf32>
    %271 = arith.mulf %266, %270 : vector<2x32xf32>
    %c0_65 = arith.constant 0 : index
    %c4_66 = arith.constant 4 : index
    %c0_67 = arith.constant 0 : index
    %272 = vector.load %arg18[%c0_65, %c4_66, %c0_67] : memref<2x8x32xf32, #tpu.memory_space<vmem>>, vector<2x1x32xf32>
    %273 = vector.shape_cast %272 : vector<2x1x32xf32> to vector<2x32xf32>
    %274 = vector.shape_cast %271 : vector<2x32xf32> to vector<2x1x32xf32>
    tpu.vector_store %arg18[%c0_65, %c4_66, %c0_67], %274 {strides = array<i32>} : memref<2x8x32xf32, #tpu.memory_space<vmem>>, vector<2x1x32xf32>,
    %275 = vector.extract_strided_slice %167 {offsets = [10, 0], sizes = [2, 128], strides = [1, 1]} : vector<16x128xf32> to vector<2x128xf32>
    %cst_68 = arith.constant dense<0.000000e+00> : vector<2x128xf32>
    %276 = tpu.matmul %271, %1, %cst_68 {dimension_numbers = #tpu.dot_dimension_numbers<[1], [0], [0], [1], [0, 0, 1, 1], [], []>} : vector<2x32xf32>, vector<32x128xf32>, vector<2x128xf32> -> vector<2x128xf32>
    %277 = arith.addf %275, %276 : vector<2x128xf32>
    %278 = arith.negf %277 : vector<2x128xf32>
    %279 = math.exp %278 : vector<2x128xf32>
    %cst_69 = arith.constant 1.000000e+00 : f32
    %280 = vector.broadcast %cst_69 : f32 to vector<2x128xf32>
    %281 = arith.addf %280, %279 : vector<2x128xf32>
    %282 = arith.divf %280, %281 : vector<2x128xf32>
    %283 = math.tanh %277 : vector<2x128xf32>
    %284 = vector.extract_strided_slice %282 {offsets = [0, 0], sizes = [2, 32], strides = [1, 1]} : vector<2x128xf32> to vector<2x32xf32>
    %285 = vector.extract_strided_slice %282 {offsets = [0, 32], sizes = [2, 32], strides = [1, 1]} : vector<2x128xf32> to vector<2x32xf32>
    %286 = vector.extract_strided_slice %283 {offsets = [0, 64], sizes = [2, 32], strides = [1, 1]} : vector<2x128xf32> to vector<2x32xf32>
    %287 = vector.extract_strided_slice %282 {offsets = [0, 96], sizes = [2, 32], strides = [1, 1]} : vector<2x128xf32> to vector<2x32xf32>
    %288 = arith.mulf %285, %269 : vector<2x32xf32>
    %289 = arith.mulf %284, %286 : vector<2x32xf32>
    %290 = arith.addf %288, %289 : vector<2x32xf32>
    %291 = math.tanh %290 : vector<2x32xf32>
    %292 = arith.mulf %287, %291 : vector<2x32xf32>
    %c0_70 = arith.constant 0 : index
    %c5 = arith.constant 5 : index
    %c0_71 = arith.constant 0 : index
    %293 = vector.load %arg18[%c0_70, %c5, %c0_71] : memref<2x8x32xf32, #tpu.memory_space<vmem>>, vector<2x1x32xf32>
    %294 = vector.shape_cast %293 : vector<2x1x32xf32> to vector<2x32xf32>
    %295 = vector.shape_cast %292 : vector<2x32xf32> to vector<2x1x32xf32>
    tpu.vector_store %arg18[%c0_70, %c5, %c0_71], %295 {strides = array<i32>} : memref<2x8x32xf32, #tpu.memory_space<vmem>>, vector<2x1x32xf32>,
    %296 = vector.extract_strided_slice %167 {offsets = [12, 0], sizes = [2, 128], strides = [1, 1]} : vector<16x128xf32> to vector<2x128xf32>
    %cst_72 = arith.constant dense<0.000000e+00> : vector<2x128xf32>
    %297 = tpu.matmul %292, %1, %cst_72 {dimension_numbers = #tpu.dot_dimension_numbers<[1], [0], [0], [1], [0, 0, 1, 1], [], []>} : vector<2x32xf32>, vector<32x128xf32>, vector<2x128xf32> -> vector<2x128xf32>
    %298 = arith.addf %296, %297 : vector<2x128xf32>
    %299 = arith.negf %298 : vector<2x128xf32>
    %300 = math.exp %299 : vector<2x128xf32>
    %cst_73 = arith.constant 1.000000e+00 : f32
    %301 = vector.broadcast %cst_73 : f32 to vector<2x128xf32>
    %302 = arith.addf %301, %300 : vector<2x128xf32>
    %303 = arith.divf %301, %302 : vector<2x128xf32>
    %304 = math.tanh %298 : vector<2x128xf32>
    %305 = vector.extract_strided_slice %303 {offsets = [0, 0], sizes = [2, 32], strides = [1, 1]} : vector<2x128xf32> to vector<2x32xf32>
    %306 = vector.extract_strided_slice %303 {offsets = [0, 32], sizes = [2, 32], strides = [1, 1]} : vector<2x128xf32> to vector<2x32xf32>
    %307 = vector.extract_strided_slice %304 {offsets = [0, 64], sizes = [2, 32], strides = [1, 1]} : vector<2x128xf32> to vector<2x32xf32>
    %308 = vector.extract_strided_slice %303 {offsets = [0, 96], sizes = [2, 32], strides = [1, 1]} : vector<2x128xf32> to vector<2x32xf32>
    %309 = arith.mulf %306, %290 : vector<2x32xf32>
    %310 = arith.mulf %305, %307 : vector<2x32xf32>
    %311 = arith.addf %309, %310 : vector<2x32xf32>
    %312 = math.tanh %311 : vector<2x32xf32>
    %313 = arith.mulf %308, %312 : vector<2x32xf32>
    %c0_74 = arith.constant 0 : index
    %c6_75 = arith.constant 6 : index
    %c0_76 = arith.constant 0 : index
    %314 = vector.load %arg18[%c0_74, %c6_75, %c0_76] : memref<2x8x32xf32, #tpu.memory_space<vmem>>, vector<2x1x32xf32>
    %315 = vector.shape_cast %314 : vector<2x1x32xf32> to vector<2x32xf32>
    %316 = vector.shape_cast %313 : vector<2x32xf32> to vector<2x1x32xf32>
    tpu.vector_store %arg18[%c0_74, %c6_75, %c0_76], %316 {strides = array<i32>} : memref<2x8x32xf32, #tpu.memory_space<vmem>>, vector<2x1x32xf32>,
    %317 = vector.extract_strided_slice %167 {offsets = [14, 0], sizes = [2, 128], strides = [1, 1]} : vector<16x128xf32> to vector<2x128xf32>
    %cst_77 = arith.constant dense<0.000000e+00> : vector<2x128xf32>
    %318 = tpu.matmul %313, %1, %cst_77 {dimension_numbers = #tpu.dot_dimension_numbers<[1], [0], [0], [1], [0, 0, 1, 1], [], []>} : vector<2x32xf32>, vector<32x128xf32>, vector<2x128xf32> -> vector<2x128xf32>
    %319 = arith.addf %317, %318 : vector<2x128xf32>
    %320 = arith.negf %319 : vector<2x128xf32>
    %321 = math.exp %320 : vector<2x128xf32>
    %cst_78 = arith.constant 1.000000e+00 : f32
    %322 = vector.broadcast %cst_78 : f32 to vector<2x128xf32>
    %323 = arith.addf %322, %321 : vector<2x128xf32>
    %324 = arith.divf %322, %323 : vector<2x128xf32>
    %325 = math.tanh %319 : vector<2x128xf32>
    %326 = vector.extract_strided_slice %324 {offsets = [0, 0], sizes = [2, 32], strides = [1, 1]} : vector<2x128xf32> to vector<2x32xf32>
    %327 = vector.extract_strided_slice %324 {offsets = [0, 32], sizes = [2, 32], strides = [1, 1]} : vector<2x128xf32> to vector<2x32xf32>
    %328 = vector.extract_strided_slice %325 {offsets = [0, 64], sizes = [2, 32], strides = [1, 1]} : vector<2x128xf32> to vector<2x32xf32>
    %329 = vector.extract_strided_slice %324 {offsets = [0, 96], sizes = [2, 32], strides = [1, 1]} : vector<2x128xf32> to vector<2x32xf32>
    %330 = arith.mulf %327, %311 : vector<2x32xf32>
    %331 = arith.mulf %326, %328 : vector<2x32xf32>
    %332 = arith.addf %330, %331 : vector<2x32xf32>
    %333 = math.tanh %332 : vector<2x32xf32>
    %334 = arith.mulf %329, %333 : vector<2x32xf32>
    %c0_79 = arith.constant 0 : index
    %c7 = arith.constant 7 : index
    %c0_80 = arith.constant 0 : index
    %335 = vector.load %arg18[%c0_79, %c7, %c0_80] : memref<2x8x32xf32, #tpu.memory_space<vmem>>, vector<2x1x32xf32>
    %336 = vector.shape_cast %335 : vector<2x1x32xf32> to vector<2x32xf32>
    %337 = vector.shape_cast %334 : vector<2x32xf32> to vector<2x1x32xf32>
    tpu.vector_store %arg18[%c0_79, %c7, %c0_80], %337 {strides = array<i32>} : memref<2x8x32xf32, #tpu.memory_space<vmem>>, vector<2x1x32xf32>,
    %c0_81 = arith.constant 0 : index
    %c0_82 = arith.constant 0 : index
    %c0_83 = arith.constant 0 : index
    %338 = vector.load %arg18[%c0_81, %c0_82, %c0_83] : memref<2x8x32xf32, #tpu.memory_space<vmem>>, vector<2x8x32xf32>
    %339 = vector.shape_cast %338 : vector<2x8x32xf32> to vector<16x32xf32>
    %c0_84 = arith.constant 0 : index
    %c0_85 = arith.constant 0 : index
    %340 = vector.load %arg8[%c0_84, %c0_85] : memref<32x32xf32, #tpu.memory_space<vmem>>, vector<32x32xf32>
    %cst_86 = arith.constant dense<0.000000e+00> : vector<16x32xf32>
    %341 = tpu.matmul %339, %340, %cst_86 {dimension_numbers = #tpu.dot_dimension_numbers<[1], [0], [0], [1], [0, 0, 1, 1], [], []>} : vector<16x32xf32>, vector<32x32xf32>, vector<16x32xf32> -> vector<16x32xf32>
    %342 = math.tanh %341 : vector<16x32xf32>
    %c0_87 = arith.constant 0 : index
    %c0_88 = arith.constant 0 : index
    %343 = vector.load %arg9[%c0_87, %c0_88] : memref<32x8xf32, #tpu.memory_space<vmem>>, vector<32x8xf32>
    %cst_89 = arith.constant dense<0.000000e+00> : vector<16x8xf32>
    %344 = tpu.matmul %342, %343, %cst_89 {dimension_numbers = #tpu.dot_dimension_numbers<[1], [0], [0], [1], [0, 0, 1, 1], [], []>} : vector<16x32xf32>, vector<32x8xf32>, vector<16x8xf32> -> vector<16x8xf32>
    %345 = vector.extract_strided_slice %344 {offsets = [0, 0], sizes = [8, 8], strides = [1, 1]} : vector<16x8xf32> to vector<8x8xf32>
    %cst_90 = arith.constant dense<0xFF800000> : vector<8xf32>
    %346 = vector.multi_reduction <maximumf>, %345, %cst_90 [0] : vector<8x8xf32> to vector<8xf32>
    %347 = vector.shape_cast %346 : vector<8xf32> to vector<1x8xf32>
    %348 = vector.broadcast %347 : vector<1x8xf32> to vector<8x8xf32>
    %349 = arith.subf %345, %348 : vector<8x8xf32>
    %350 = math.exp %349 : vector<8x8xf32>
    %cst_91 = arith.constant dense<0.000000e+00> : vector<8xf32>
    %351 = vector.multi_reduction <add>, %350, %cst_91 [0] : vector<8x8xf32> to vector<8xf32>
    %352 = vector.shape_cast %351 : vector<8xf32> to vector<1x8xf32>
    %353 = vector.broadcast %352 : vector<1x8xf32> to vector<8x8xf32>
    %354 = arith.divf %350, %353 : vector<8x8xf32>
    %355 = vector.extract_strided_slice %339 {offsets = [0, 0], sizes = [8, 32], strides = [1, 1]} : vector<16x32xf32> to vector<8x32xf32>
    %356 = tpu.transpose %354, [1, 0] : vector<8x8xf32> -> vector<8x8xf32>
    %cst_92 = arith.constant dense<0.000000e+00> : vector<8x32xf32>
    %357 = tpu.matmul %356, %355, %cst_92 {dimension_numbers = #tpu.dot_dimension_numbers<[1], [0], [0], [1], [0, 0, 1, 1], [], []>} : vector<8x8xf32>, vector<8x32xf32>, vector<8x32xf32> -> vector<8x32xf32>
    %358 = vector.extract_strided_slice %344 {offsets = [8, 0], sizes = [8, 8], strides = [1, 1]} : vector<16x8xf32> to vector<8x8xf32>
    %cst_93 = arith.constant dense<0xFF800000> : vector<8xf32>
    %359 = vector.multi_reduction <maximumf>, %358, %cst_93 [0] : vector<8x8xf32> to vector<8xf32>
    %360 = vector.shape_cast %359 : vector<8xf32> to vector<1x8xf32>
    %361 = vector.broadcast %360 : vector<1x8xf32> to vector<8x8xf32>
    %362 = arith.subf %358, %361 : vector<8x8xf32>
    %363 = math.exp %362 : vector<8x8xf32>
    %cst_94 = arith.constant dense<0.000000e+00> : vector<8xf32>
    %364 = vector.multi_reduction <add>, %363, %cst_94 [0] : vector<8x8xf32> to vector<8xf32>
    %365 = vector.shape_cast %364 : vector<8xf32> to vector<1x8xf32>
    %366 = vector.broadcast %365 : vector<1x8xf32> to vector<8x8xf32>
    %367 = arith.divf %363, %366 : vector<8x8xf32>
    %368 = vector.extract_strided_slice %339 {offsets = [8, 0], sizes = [8, 32], strides = [1, 1]} : vector<16x32xf32> to vector<8x32xf32>
    %369 = tpu.transpose %367, [1, 0] : vector<8x8xf32> -> vector<8x8xf32>
    %cst_95 = arith.constant dense<0.000000e+00> : vector<8x32xf32>
    %370 = tpu.matmul %369, %368, %cst_95 {dimension_numbers = #tpu.dot_dimension_numbers<[1], [0], [0], [1], [0, 0, 1, 1], [], []>} : vector<8x8xf32>, vector<8x32xf32>, vector<8x32xf32> -> vector<8x32xf32>
    %371 = vector.shape_cast %357 : vector<8x32xf32> to vector<1x8x32xf32>
    %372 = vector.shape_cast %370 : vector<8x32xf32> to vector<1x8x32xf32>
    %373 = tpu.concatenate %371, %372 in 0 : vector<1x8x32xf32>, vector<1x8x32xf32> -> vector<2x8x32xf32>
    %cst_96 = arith.constant 0.000000e+00 : f32
    %374 = vector.broadcast %cst_96 : f32 to vector<2x32xf32>
    %375 = vector.extract_strided_slice %373 {offsets = [0, 0, 0], sizes = [2, 1, 32], strides = [1, 1, 1]} : vector<2x8x32xf32> to vector<2x1x32xf32>
    %376 = vector.shape_cast %375 : vector<2x1x32xf32> to vector<2x32xf32>
    %c0_97 = arith.constant 0 : index
    %c0_98 = arith.constant 0 : index
    %377 = vector.load %arg10[%c0_97, %c0_98] : memref<256x32xf32, #tpu.memory_space<vmem>>, vector<32x32xf32>
    %cst_99 = arith.constant dense<0.000000e+00> : vector<2x32xf32>
    %378 = tpu.matmul %376, %377, %cst_99 {dimension_numbers = #tpu.dot_dimension_numbers<[1], [0], [0], [1], [0, 0, 1, 1], [], []>} : vector<2x32xf32>, vector<32x32xf32>, vector<2x32xf32> -> vector<2x32xf32>
    %379 = arith.addf %374, %378 : vector<2x32xf32>
    %380 = vector.extract_strided_slice %373 {offsets = [0, 1, 0], sizes = [2, 1, 32], strides = [1, 1, 1]} : vector<2x8x32xf32> to vector<2x1x32xf32>
    %381 = vector.shape_cast %380 : vector<2x1x32xf32> to vector<2x32xf32>
    %c32 = arith.constant 32 : index
    %c0_100 = arith.constant 0 : index
    %382 = vector.load %arg10[%c32, %c0_100] : memref<256x32xf32, #tpu.memory_space<vmem>>, vector<32x32xf32>
    %cst_101 = arith.constant dense<0.000000e+00> : vector<2x32xf32>
    %383 = tpu.matmul %381, %382, %cst_101 {dimension_numbers = #tpu.dot_dimension_numbers<[1], [0], [0], [1], [0, 0, 1, 1], [], []>} : vector<2x32xf32>, vector<32x32xf32>, vector<2x32xf32> -> vector<2x32xf32>
    %384 = arith.addf %379, %383 : vector<2x32xf32>
    %385 = vector.extract_strided_slice %373 {offsets = [0, 2, 0], sizes = [2, 1, 32], strides = [1, 1, 1]} : vector<2x8x32xf32> to vector<2x1x32xf32>
    %386 = vector.shape_cast %385 : vector<2x1x32xf32> to vector<2x32xf32>
    %c64 = arith.constant 64 : index
    %c0_102 = arith.constant 0 : index
    %387 = vector.load %arg10[%c64, %c0_102] : memref<256x32xf32, #tpu.memory_space<vmem>>, vector<32x32xf32>
    %cst_103 = arith.constant dense<0.000000e+00> : vector<2x32xf32>
    %388 = tpu.matmul %386, %387, %cst_103 {dimension_numbers = #tpu.dot_dimension_numbers<[1], [0], [0], [1], [0, 0, 1, 1], [], []>} : vector<2x32xf32>, vector<32x32xf32>, vector<2x32xf32> -> vector<2x32xf32>
    %389 = arith.addf %384, %388 : vector<2x32xf32>
    %390 = vector.extract_strided_slice %373 {offsets = [0, 3, 0], sizes = [2, 1, 32], strides = [1, 1, 1]} : vector<2x8x32xf32> to vector<2x1x32xf32>
    %391 = vector.shape_cast %390 : vector<2x1x32xf32> to vector<2x32xf32>
    %c96 = arith.constant 96 : index
    %c0_104 = arith.constant 0 : index
    %392 = vector.load %arg10[%c96, %c0_104] : memref<256x32xf32, #tpu.memory_space<vmem>>, vector<32x32xf32>
    %cst_105 = arith.constant dense<0.000000e+00> : vector<2x32xf32>
    %393 = tpu.matmul %391, %392, %cst_105 {dimension_numbers = #tpu.dot_dimension_numbers<[1], [0], [0], [1], [0, 0, 1, 1], [], []>} : vector<2x32xf32>, vector<32x32xf32>, vector<2x32xf32> -> vector<2x32xf32>
    %394 = arith.addf %389, %393 : vector<2x32xf32>
    %395 = vector.extract_strided_slice %373 {offsets = [0, 4, 0], sizes = [2, 1, 32], strides = [1, 1, 1]} : vector<2x8x32xf32> to vector<2x1x32xf32>
    %396 = vector.shape_cast %395 : vector<2x1x32xf32> to vector<2x32xf32>
    %c128 = arith.constant 128 : index
    %c0_106 = arith.constant 0 : index
    %397 = vector.load %arg10[%c128, %c0_106] : memref<256x32xf32, #tpu.memory_space<vmem>>, vector<32x32xf32>
    %cst_107 = arith.constant dense<0.000000e+00> : vector<2x32xf32>
    %398 = tpu.matmul %396, %397, %cst_107 {dimension_numbers = #tpu.dot_dimension_numbers<[1], [0], [0], [1], [0, 0, 1, 1], [], []>} : vector<2x32xf32>, vector<32x32xf32>, vector<2x32xf32> -> vector<2x32xf32>
    %399 = arith.addf %394, %398 : vector<2x32xf32>
    %400 = vector.extract_strided_slice %373 {offsets = [0, 5, 0], sizes = [2, 1, 32], strides = [1, 1, 1]} : vector<2x8x32xf32> to vector<2x1x32xf32>
    %401 = vector.shape_cast %400 : vector<2x1x32xf32> to vector<2x32xf32>
    %c160 = arith.constant 160 : index
    %c0_108 = arith.constant 0 : index
    %402 = vector.load %arg10[%c160, %c0_108] : memref<256x32xf32, #tpu.memory_space<vmem>>, vector<32x32xf32>
    %cst_109 = arith.constant dense<0.000000e+00> : vector<2x32xf32>
    %403 = tpu.matmul %401, %402, %cst_109 {dimension_numbers = #tpu.dot_dimension_numbers<[1], [0], [0], [1], [0, 0, 1, 1], [], []>} : vector<2x32xf32>, vector<32x32xf32>, vector<2x32xf32> -> vector<2x32xf32>
    %404 = arith.addf %399, %403 : vector<2x32xf32>
    %405 = vector.extract_strided_slice %373 {offsets = [0, 6, 0], sizes = [2, 1, 32], strides = [1, 1, 1]} : vector<2x8x32xf32> to vector<2x1x32xf32>
    %406 = vector.shape_cast %405 : vector<2x1x32xf32> to vector<2x32xf32>
    %c192 = arith.constant 192 : index
    %c0_110 = arith.constant 0 : index
    %407 = vector.load %arg10[%c192, %c0_110] : memref<256x32xf32, #tpu.memory_space<vmem>>, vector<32x32xf32>
    %cst_111 = arith.constant dense<0.000000e+00> : vector<2x32xf32>
    %408 = tpu.matmul %406, %407, %cst_111 {dimension_numbers = #tpu.dot_dimension_numbers<[1], [0], [0], [1], [0, 0, 1, 1], [], []>} : vector<2x32xf32>, vector<32x32xf32>, vector<2x32xf32> -> vector<2x32xf32>
    %409 = arith.addf %404, %408 : vector<2x32xf32>
    %410 = vector.extract_strided_slice %373 {offsets = [0, 7, 0], sizes = [2, 1, 32], strides = [1, 1, 1]} : vector<2x8x32xf32> to vector<2x1x32xf32>
    %411 = vector.shape_cast %410 : vector<2x1x32xf32> to vector<2x32xf32>
    %c224 = arith.constant 224 : index
    %c0_112 = arith.constant 0 : index
    %412 = vector.load %arg10[%c224, %c0_112] : memref<256x32xf32, #tpu.memory_space<vmem>>, vector<32x32xf32>
    %cst_113 = arith.constant dense<0.000000e+00> : vector<2x32xf32>
    %413 = tpu.matmul %411, %412, %cst_113 {dimension_numbers = #tpu.dot_dimension_numbers<[1], [0], [0], [1], [0, 0, 1, 1], [], []>} : vector<2x32xf32>, vector<32x32xf32>, vector<2x32xf32> -> vector<2x32xf32>
    %414 = arith.addf %409, %413 : vector<2x32xf32>
    %c0_114 = arith.constant 0 : index
    %c0_115 = arith.constant 0 : index
    %415 = vector.load %arg11[%c0_114, %c0_115] : memref<1x32xf32, #tpu.memory_space<vmem>>, vector<1x32xf32>
    %416 = vector.broadcast %415 : vector<1x32xf32> to vector<2x32xf32>
    %417 = arith.addf %414, %416 : vector<2x32xf32>
    %cst_116 = arith.constant 0.000000e+00 : f32
    %418 = vector.broadcast %cst_116 : f32 to vector<2x32xf32>
    %419 = arith.maximumf %417, %418 : vector<2x32xf32>
    %c0_117 = arith.constant 0 : index
    %c0_118 = arith.constant 0 : index
    %420 = vector.load %arg12[%c0_117, %c0_118] : memref<32x8xf32, #tpu.memory_space<vmem>>, vector<32x8xf32>
    %cst_119 = arith.constant dense<0.000000e+00> : vector<2x8xf32>
    %421 = tpu.matmul %419, %420, %cst_119 {dimension_numbers = #tpu.dot_dimension_numbers<[1], [0], [0], [1], [0, 0, 1, 1], [], []>} : vector<2x32xf32>, vector<32x8xf32>, vector<2x8xf32> -> vector<2x8xf32>
    %c0_120 = arith.constant 0 : index
    %c0_121 = arith.constant 0 : index
    %422 = vector.load %arg13[%c0_120, %c0_121] : memref<1x8xf32, #tpu.memory_space<vmem>>, vector<1x8xf32>
    %423 = vector.broadcast %422 : vector<1x8xf32> to vector<2x8xf32>
    %424 = arith.addf %421, %423 : vector<2x8xf32>
    %c0_122 = arith.constant 0 : index
    %c0_123 = arith.constant 0 : index
    %425 = vector.load %arg14[%c0_122, %c0_123] : memref<2x8xf32, #tpu.memory_space<vmem>>, vector<2x8xf32>
    %cst_124 = arith.constant dense<0xFF800000> : vector<2xf32>
    %426 = vector.multi_reduction <maximumf>, %424, %cst_124 [1] : vector<2x8xf32> to vector<2xf32>
    %427 = vector.shape_cast %426 : vector<2xf32> to vector<2x1xf32>
    %428 = vector.broadcast %427 : vector<2x1xf32> to vector<2x8xf32>
    %429 = arith.subf %424, %428 : vector<2x8xf32>
    %430 = math.exp %429 : vector<2x8xf32>
    %cst_125 = arith.constant dense<0.000000e+00> : vector<2xf32>
    %431 = vector.multi_reduction <add>, %430, %cst_125 [1] : vector<2x8xf32> to vector<2xf32>
    %432 = vector.shape_cast %431 : vector<2xf32> to vector<2x1xf32>
    %433 = vector.broadcast %432 : vector<2x1xf32> to vector<2x8xf32>
    %434 = arith.divf %430, %433 : vector<2x8xf32>
    %c0_126 = arith.constant 0 : index
    %c0_127 = arith.constant 0 : index
    %435 = vector.load %arg16[%c0_126, %c0_127] : memref<2x8xf32, #tpu.memory_space<vmem>>, vector<2x8xf32>
    tpu.vector_store %arg16[%c0_126, %c0_127], %434 {strides = array<i32>} : memref<2x8xf32, #tpu.memory_space<vmem>>, vector<2x8xf32>,
    %436 = tpu.iota {dimensions = array<i32: 1>} : vector<2x8xi32>
    %cst_128 = arith.constant dense<0xFF800000> : vector<2xf32>
    %437 = vector.multi_reduction <maximumf>, %425, %cst_128 [1] : vector<2x8xf32> to vector<2xf32>
    %438 = vector.shape_cast %437 : vector<2xf32> to vector<2x1xf32>
    %439 = vector.broadcast %438 : vector<2x1xf32> to vector<2x8xf32>
    %440 = arith.cmpf oeq, %425, %439 : vector<2x8xf32>
    %c8_i32 = arith.constant 8 : i32
    %441 = vector.broadcast %c8_i32 : i32 to vector<2x8xi32>
    %442 = arith.select %440, %436, %441 : vector<2x8xi1>, vector<2x8xi32>
    %cst_129 = arith.constant dense<2147483647> : vector<2xi32>
    %443 = vector.multi_reduction <minsi>, %442, %cst_129 [1] : vector<2x8xi32> to vector<2xi32>
    %444 = vector.shape_cast %443 : vector<2xi32> to vector<2x1xi32>
    %445 = vector.broadcast %444 : vector<2x1xi32> to vector<2x8xi32>
    %446 = arith.cmpi eq, %436, %445 : vector<2x8xi32>
    %447 = arith.extui %446 : vector<2x8xi1> to vector<2x8xi32>
    %448 = arith.sitofp %447 : vector<2x8xi32> to vector<2x8xf32>
    %449 = math.log %432 : vector<2x1xf32>
    %450 = arith.addf %449, %427 : vector<2x1xf32>
    %451 = arith.mulf %448, %424 : vector<2x8xf32>
    %cst_130 = arith.constant dense<0.000000e+00> : vector<2xf32>
    %452 = vector.multi_reduction <add>, %451, %cst_130 [1] : vector<2x8xf32> to vector<2xf32>
    %453 = vector.shape_cast %452 : vector<2xf32> to vector<2x1xf32>
    %454 = arith.subf %450, %453 : vector<2x1xf32>
    %cst_131 = arith.constant dense<0.000000e+00> : vector<1xf32>
    %455 = vector.multi_reduction <add>, %454, %cst_131 [0] : vector<2x1xf32> to vector<1xf32>
    %456 = vector.shape_cast %455 : vector<1xf32> to vector<1x1xf32>
    %cst_132 = arith.constant 2.000000e+00 : f32
    %457 = vector.broadcast %cst_132 : f32 to vector<1x1xf32>
    %458 = arith.divf %456, %457 : vector<1x1xf32>
    %c0_133 = arith.constant 0 : index
    %c0_134 = arith.constant 0 : index
    %459 = vector.load %arg15[%c0_133, %c0_134] : memref<1x1xf32, #tpu.memory_space<vmem>>, vector<1x1xf32>
    tpu.vector_store %arg15[%c0_133, %c0_134], %458 {strides = array<i32>} : memref<1x1xf32, #tpu.memory_space<vmem>>, vector<1x1xf32>,
    return
  }
  func.func @transform_0(%arg0: i32) -> (i32, i32) {
    %c0_i32 = arith.constant 0 : i32
    %c0_i32_0 = arith.constant 0 : i32
    %c0_i32_1 = arith.constant 0 : i32
    return %c0_i32, %c0_i32_0 : i32, i32
  }
  func.func @transform_1(%arg0: i32) -> (i32, i32) {
    %c0_i32 = arith.constant 0 : i32
    %c0_i32_0 = arith.constant 0 : i32
    %c0_i32_1 = arith.constant 0 : i32
    return %c0_i32, %c0_i32_0 : i32, i32
  }
  func.func @transform_2(%arg0: i32) -> (i32, i32) {
    %c0_i32 = arith.constant 0 : i32
    %c0_i32_0 = arith.constant 0 : i32
    %c0_i32_1 = arith.constant 0 : i32
    return %c0_i32, %c0_i32_0 : i32, i32
  }
  func.func @transform_3(%arg0: i32) -> (i32, i32) {
    %c0_i32 = arith.constant 0 : i32
    %c0_i32_0 = arith.constant 0 : i32
    %c0_i32_1 = arith.constant 0 : i32
    return %c0_i32, %c0_i32_0 : i32, i32
  }
  func.func @transform_4(%arg0: i32) -> (i32, i32) {
    %c0_i32 = arith.constant 0 : i32
    %c0_i32_0 = arith.constant 0 : i32
    %c0_i32_1 = arith.constant 0 : i32
    return %c0_i32, %c0_i32_0 : i32, i32
  }
  func.func @transform_5(%arg0: i32) -> (i32, i32) {
    %c0_i32 = arith.constant 0 : i32
    %c0_i32_0 = arith.constant 0 : i32
    %c0_i32_1 = arith.constant 0 : i32
    return %c0_i32, %c0_i32_0 : i32, i32
  }
  func.func @transform_6(%arg0: i32) -> (i32, i32) {
    %c0_i32 = arith.constant 0 : i32
    %c0_i32_0 = arith.constant 0 : i32
    %c0_i32_1 = arith.constant 0 : i32
    return %c0_i32, %c0_i32_0 : i32, i32
  }
  func.func @transform_7(%arg0: i32) -> (i32, i32) {
    %c0_i32 = arith.constant 0 : i32
    %c0_i32_0 = arith.constant 0 : i32
    %c0_i32_1 = arith.constant 0 : i32
    return %c0_i32, %c0_i32_0 : i32, i32
  }
  func.func @transform_8(%arg0: i32) -> (i32, i32) {
    %c0_i32 = arith.constant 0 : i32
    %c0_i32_0 = arith.constant 0 : i32
    %c0_i32_1 = arith.constant 0 : i32
    return %c0_i32, %c0_i32_0 : i32, i32
  }
  func.func @transform_9(%arg0: i32) -> (i32, i32) {
    %c0_i32 = arith.constant 0 : i32
    %c0_i32_0 = arith.constant 0 : i32
    %c0_i32_1 = arith.constant 0 : i32
    return %c0_i32, %c0_i32_0 : i32, i32
  }
  func.func @transform_10(%arg0: i32) -> (i32, i32) {
    %c0_i32 = arith.constant 0 : i32
    %c0_i32_0 = arith.constant 0 : i32
    %c0_i32_1 = arith.constant 0 : i32
    return %c0_i32, %c0_i32_0 : i32, i32
  }
  func.func @transform_11(%arg0: i32) -> (i32, i32) {
    %c0_i32 = arith.constant 0 : i32
    %c0_i32_0 = arith.constant 0 : i32
    %c0_i32_1 = arith.constant 0 : i32
    return %c0_i32, %c0_i32_0 : i32, i32
  }
  func.func @transform_12(%arg0: i32) -> (i32, i32) {
    %c0_i32 = arith.constant 0 : i32
    %c0_i32_0 = arith.constant 0 : i32
    %c0_i32_1 = arith.constant 0 : i32
    return %c0_i32, %c0_i32_0 : i32, i32
  }
  func.func @transform_13(%arg0: i32) -> (i32, i32) {
    %c0_i32 = arith.constant 0 : i32
    %c0_i32_0 = arith.constant 0 : i32
    %c0_i32_1 = arith.constant 0 : i32
    return %c0_i32, %c0_i32_0 : i32, i32
  }
  func.func @transform_14(%arg0: i32) -> (i32, i32) {
    %c0_i32 = arith.constant 0 : i32
    %c0_i32_0 = arith.constant 0 : i32
    %c0_i32_1 = arith.constant 0 : i32
    return %c0_i32, %c0_i32_0 : i32, i32
  }
  func.func @transform_15(%arg0: i32) -> (i32, i32) {
    %c0_i32 = arith.constant 0 : i32
    %c0_i32_0 = arith.constant 0 : i32
    %c0_i32_1 = arith.constant 0 : i32
    return %c0_i32, %c0_i32_0 : i32, i32
  }
}

</mosaic_0001>

<llo_original>
// kernel: text_sentiment_rnn_forward.1
$region0: #{text_sentiment_rnn_forward.1}
  #allocation0 [shape = 'u32[]', space=smem, size = 0x4, offset = 0x4, fixed_abs, tag = 'smem constant byte address 0x4 - core index']
  #allocation1 [shape = 'u32[144,128]{1,0:T(1,128)}', space=vmem, size = 0x12000, scoped, tag = 'internal scratch']
  #allocation2 [shape = 'f32[16,32]{1,0:T(8,128)}', space=vmem, size = 0x2000, scoped, tag = 'scratch operand']
  #allocation3 [shape = 'f32[2,8,32]{2,1,0:T(8,128)}', space=vmem, size = 0x2000, scoped, tag = 'scratch operand']
  %s0 = inlined_call_operand.vmem [shape: f32[16,32], index: 0, kind: input, shape index: {}]
  %s1 = inlined_call_operand.vmem [shape: f32[32,128], index: 1, kind: input, shape index: {}]
  %s2 = inlined_call_operand.vmem [shape: f32[32,128], index: 2, kind: input, shape index: {}]
  %s3 = inlined_call_operand.vmem [shape: f32[1,128], index: 3, kind: input, shape index: {}]
  %s4 = inlined_call_operand.vmem [shape: f32[32,128], index: 4, kind: input, shape index: {}]
  %s5 = inlined_call_operand.vmem [shape: f32[32,128], index: 5, kind: input, shape index: {}]
  %s6 = inlined_call_operand.vmem [shape: f32[1,128], index: 6, kind: input, shape index: {}]
  %s7 = inlined_call_operand.vmem [shape: f32[32,32], index: 7, kind: input, shape index: {}]
  %s8 = inlined_call_operand.vmem [shape: f32[32,8], index: 8, kind: input, shape index: {}]
  %s9 = inlined_call_operand.vmem [shape: f32[256,32], index: 9, kind: input, shape index: {}]
  %s10 = inlined_call_operand.vmem [shape: f32[1,32], index: 10, kind: input, shape index: {}]
  %s11 = inlined_call_operand.vmem [shape: f32[32,8], index: 11, kind: input, shape index: {}]
  %s12 = inlined_call_operand.vmem [shape: f32[1,8], index: 12, kind: input, shape index: {}]
  %s13 = inlined_call_operand.vmem [shape: f32[2,8], index: 13, kind: input, shape index: {}]
  %s14 = inlined_call_operand.hbm [shape: f32[1,1], index: 14, kind: output, shape index: {0}]
  %s15 = inlined_call_operand.hbm [shape: f32[2,8], index: 15, kind: output, shape index: {1}]
  %16 = xla_tuple %s14, %s15
  %s17 = sld [smem:[#allocation0]]
  $region74: #{text_sentiment_rnn_forward.1} parent=0
    _
  %s19 = ssub.s32 1, %s17
  %s20 = scalar_select 0, %s19, %s17
  $region1: #{text_sentiment_rnn_forward.1} parent=0
    #allocation4 [shape = 'u8[512]{0}', space=vmem, size = 0x400, scoped, tag = 'output window, operand 0, single buffered']
    #allocation5 [shape = 's32[1]{0}', space=sflag, size = 0x4, scoped, tag = 'scoped memory for text_sentiment_rnn_forward.1']
    #allocation6 [shape = 'u8[1024]{0}', space=vmem, size = 0x400, scoped, tag = 'output window, operand 1, single buffered']
    #allocation7 [shape = 's32[1]{0}', space=sflag, size = 0x4, scoped, tag = 'scoped memory for text_sentiment_rnn_forward.1']
    %21 = vsyncpa [#allocation5], 0
    %22 = vsyncpa [#allocation7], 0
    // Predicated region
    $region2: #{text_sentiment_rnn_forward.1} parent=1 // pred_check
      _
    $region3: #{text_sentiment_rnn_forward.1} parent=1 // pred_check_branch
      %24 = sbr.rel (0) target = $region5
    $region4: #{text_sentiment_rnn_forward.1} parent=1 // pred_region
      _
    $region5: #{text_sentiment_rnn_forward.1} parent=1 // pred_fallthru
      _
    // Predicated region
    $region6: #{text_sentiment_rnn_forward.1} parent=1 // pred_check
      _
    $region7: #{text_sentiment_rnn_forward.1} parent=1 // pred_check_branch
      %26 = sbr.rel (0) target = $region9
    $region8: #{text_sentiment_rnn_forward.1} parent=1 // pred_region
      _
    $region9: #{text_sentiment_rnn_forward.1} parent=1 // pred_fallthru
      _
    // Predicated region
    $region10: #{text_sentiment_rnn_forward.1} parent=1 // pred_check
      _
    $region11: #{text_sentiment_rnn_forward.1} parent=1 // pred_check_branch
      %28 = sbr.rel (0) target = $region13
    $region12: #{text_sentiment_rnn_forward.1} parent=1 // pred_region
      _
    $region13: #{text_sentiment_rnn_forward.1} parent=1 // pred_fallthru
      _
    // Predicated region
    $region14: #{text_sentiment_rnn_forward.1} parent=1 // pred_check
      _
    $region15: #{text_sentiment_rnn_forward.1} parent=1 // pred_check_branch
      %30 = sbr.rel (0) target = $region17
    $region16: #{text_sentiment_rnn_forward.1} parent=1 // pred_region
      _
    $region17: #{text_sentiment_rnn_forward.1} parent=1 // pred_fallthru
      _
    // Predicated region
    $region18: #{text_sentiment_rnn_forward.1} parent=1 // pred_check
      _
    $region19: #{text_sentiment_rnn_forward.1} parent=1 // pred_check_branch
      %32 = sbr.rel (0) target = $region21
    $region20: #{text_sentiment_rnn_forward.1} parent=1 // pred_region
      _
    $region21: #{text_sentiment_rnn_forward.1} parent=1 // pred_fallthru
      _
    // Predicated region
    $region22: #{text_sentiment_rnn_forward.1} parent=1 // pred_check
      _
    $region23: #{text_sentiment_rnn_forward.1} parent=1 // pred_check_branch
      %34 = sbr.rel (0) target = $region25
    $region24: #{text_sentiment_rnn_forward.1} parent=1 // pred_region
      _
    $region25: #{text_sentiment_rnn_forward.1} parent=1 // pred_fallthru
      _
    // Predicated region
    $region26: #{text_sentiment_rnn_forward.1} parent=1 // pred_check
      _
    $region27: #{text_sentiment_rnn_forward.1} parent=1 // pred_check_branch
      %36 = sbr.rel (0) target = $region29
    $region28: #{text_sentiment_rnn_forward.1} parent=1 // pred_region
      _
    $region29: #{text_sentiment_rnn_forward.1} parent=1 // pred_fallthru
      _
    // Predicated region
    $region30: #{text_sentiment_rnn_forward.1} parent=1 // pred_check
      _
    $region31: #{text_sentiment_rnn_forward.1} parent=1 // pred_check_branch
      %38 = sbr.rel (0) target = $region33
    $region32: #{text_sentiment_rnn_forward.1} parent=1 // pred_region
      _
    $region33: #{text_sentiment_rnn_forward.1} parent=1 // pred_fallthru
      _
    // Predicated region
    $region34: #{text_sentiment_rnn_forward.1} parent=1 // pred_check
      _
    $region35: #{text_sentiment_rnn_forward.1} parent=1 // pred_check_branch
      %40 = sbr.rel (0) target = $region37
    $region36: #{text_sentiment_rnn_forward.1} parent=1 // pred_region
      _
    $region37: #{text_sentiment_rnn_forward.1} parent=1 // pred_fallthru
      _
    // Predicated region
    $region38: #{text_sentiment_rnn_forward.1} parent=1 // pred_check
      _
    $region39: #{text_sentiment_rnn_forward.1} parent=1 // pred_check_branch
      %42 = sbr.rel (0) target = $region41
    $region40: #{text_sentiment_rnn_forward.1} parent=1 // pred_region
      _
    $region41: #{text_sentiment_rnn_forward.1} parent=1 // pred_fallthru
      _
    // Predicated region
    $region42: #{text_sentiment_rnn_forward.1} parent=1 // pred_check
      _
    $region43: #{text_sentiment_rnn_forward.1} parent=1 // pred_check_branch
      %44 = sbr.rel (0) target = $region45
    $region44: #{text_sentiment_rnn_forward.1} parent=1 // pred_region
      _
    $region45: #{text_sentiment_rnn_forward.1} parent=1 // pred_fallthru
      _
    // Predicated region
    $region46: #{text_sentiment_rnn_forward.1} parent=1 // pred_check
      _
    $region47: #{text_sentiment_rnn_forward.1} parent=1 // pred_check_branch
      %46 = sbr.rel (0) target = $region49
    $region48: #{text_sentiment_rnn_forward.1} parent=1 // pred_region
      _
    $region49: #{text_sentiment_rnn_forward.1} parent=1 // pred_fallthru
      _
    // Predicated region
    $region50: #{text_sentiment_rnn_forward.1} parent=1 // pred_check
      _
    $region51: #{text_sentiment_rnn_forward.1} parent=1 // pred_check_branch
      %48 = sbr.rel (0) target = $region53
    $region52: #{text_sentiment_rnn_forward.1} parent=1 // pred_region
      _
    $region53: #{text_sentiment_rnn_forward.1} parent=1 // pred_fallthru
      _
    // Predicated region
    $region54: #{text_sentiment_rnn_forward.1} parent=1 // pred_check
      _
    $region55: #{text_sentiment_rnn_forward.1} parent=1 // pred_check_branch
      %50 = sbr.rel (0) target = $region57
    $region56: #{text_sentiment_rnn_forward.1} parent=1 // pred_region
      _
    $region57: #{text_sentiment_rnn_forward.1} parent=1 // pred_fallthru
      _
    %v51 = vld [vmem:[%s2] sm:$0xff]
    %v52 = vld [vmem:[%s2 + $0x8] sm:$0xff]
    %v53 = vld [vmem:[%s2 + $0x10] sm:$0xff]
    %v54 = vld [vmem:[%s2 + $0x18] sm:$0xff]
    %v55 = vld [vmem:[%s5] sm:$0xff]
    %v56 = vld [vmem:[%s5 + $0x8] sm:$0xff]
    %v57 = vld [vmem:[%s5 + $0x10] sm:$0xff]
    %v58 = vld [vmem:[%s5 + $0x18] sm:$0xff]
    %v59 = vld [vmem:[%s0] sm:$0xff]
    %v60 = vld [vmem:[%s0 + $0x8] sm:$0xff]
    %v61 = vld [vmem:[%s1] sm:$0xff]
    %v62 = vld [vmem:[%s1 + $0x8] sm:$0xff]
    %v63 = vld [vmem:[%s1 + $0x10] sm:$0xff]
    %v64 = vld [vmem:[%s1 + $0x18] sm:$0xff]
    %v65 = vld [vmem:[%s3] sm:$0x1]
    %v67 = vlaneseq
    %v68 = vshrl.u32 %v67, 7
    %v69 = vsub.s32 0, %v68
    %v70 = vrot.slane %v65, %v69
    %vm72 = vcmask 261120
    %v74 = vsel %vm72, %v59, 0
    %v77 = vsel %vm72, %v60, 0
    %79 = vmatprep.subr.mxu0 0.0
    %80 = vmatpush1.msra.mxu0 %v61
    %81 = vmatprep.subr.mxu0 0.0
    %82 = vmatpush1.msra.mxu0 %v62
    %83 = vmatprep.subr.mxu0 0.0
    %84 = vmatpush1.msra.mxu0 %v63
    %85 = vmatprep.subr.mxu0 0.0
    %86 = vmatpush1.msra.mxu0 %v64
    %87 = vmatprep.subr.mxu0 0.0
    %88 = vmatpush1.msra.mxu0 0.0
    %89 = vmatprep.subr.mxu0 0.0
    %90 = vmatpush1.msra.mxu0 0.0
    %91 = vmatprep.subr.mxu0 0.0
    %92 = vmatpush1.msra.mxu0 0.0
    %93 = vmatprep.subr.mxu0 0.0
    %94 = vmatpush1.msra.mxu0 0.0
    %95 = vmatprep.subr.mxu0 0.0
    %96 = vmatpush1.msra.mxu0 0.0
    %97 = vmatprep.subr.mxu0 0.0
    %98 = vmatpush1.msra.mxu0 0.0
    %99 = vmatprep.subr.mxu0 0.0
    %100 = vmatpush1.msra.mxu0 0.0
    %101 = vmatprep.subr.mxu0 0.0
    %102 = vmatpush1.msra.mxu0 0.0
    %103 = vmatprep.subr.mxu0 0.0
    %104 = vmatpush1.msra.mxu0 0.0
    %105 = vmatprep.subr.mxu0 0.0
    %106 = vmatpush1.msra.mxu0 0.0
    %107 = vmatprep.subr.mxu0 0.0
    %108 = vmatpush1.msra.mxu0 0.0
    %109 = vmatprep.subr.mxu0 0.0
    %110 = vmatpush1.msra.mxu0 0.0
    %111 = vmatprep.subr.mxu0 0.0
    %112 = vmatpush1.msra.mxu0 0.0
    %113 = vmatprep.subr.mxu0 0.0
    %114 = vmatpush1.msra.mxu0 0.0
    %115 = vmatprep.subr.mxu0 0.0
    %116 = vmatpush1.msra.mxu0 0.0
    %117 = vmatprep.subr.mxu0 0.0
    %118 = vmatpush1.msra.mxu0 0.0
    %119 = vmatprep.subr.mxu0 0.0
    %120 = vmatpush1.msra.mxu0 0.0
    %121 = vmatprep.subr.mxu0 0.0
    %122 = vmatpush1.msra.mxu0 0.0
    %123 = vmatprep.subr.mxu0 0.0
    %124 = vmatpush1.msra.mxu0 0.0
    %125 = vmatprep.subr.mxu0 0.0
    %126 = vmatpush1.msra.mxu0 0.0
    %127 = vmatprep.subr.mxu0 0.0
    %128 = vmatpush1.msra.mxu0 0.0
    %129 = vmatprep.subr.mxu0 0.0
    %130 = vmatpush1.msra.mxu0 0.0
    %131 = vmatprep.subr.mxu0 0.0
    %132 = vmatpush1.msra.mxu0 0.0
    %133 = vmatprep.subr.mxu0 0.0
    %134 = vmatpush1.msra.mxu0 0.0
    %135 = vmatprep.subr.mxu0 0.0
    %136 = vmatpush1.msra.mxu0 0.0
    %137 = vmatprep.subr.mxu0 0.0
    %138 = vmatpush1.msra.mxu0 0.0
    %139 = vmatprep.subr.mxu0 0.0
    %140 = vmatpush1.msra.mxu0 0.0
    %141 = vmatprep.subr.mxu0 0.0
    %142 = vmatpush1.msra.mxu0 0.0
    %143 = vmatprep.mubr.f32.mxu0 0.0
    %144 = vmatmul.mubr.f32.gmra.mrb[0].mxu0 %v74
    %v145 = vpop.f32.mrb[0].mxu0
    %v146 = vadd.f32 %v70, %v145
    %v147 = vpop.f32.mrb[0].mxu0
    %148 = vmatprep.mubr.f32.mxu0 0.0
    %149 = vmatmul.mubr.f32.gmra.mrb[0].mxu0 %v77
    %v150 = vpop.f32.mrb[0].mxu0
    %v151 = vadd.f32 %v70, %v150
    %v152 = vpop.f32.mrb[0].mxu0
    %153 = vdwg.mxu0
    %v155 = vsel %vm72, 0.0, 0
    %157 = vmatprep.subr.mxu0 0.0
    %158 = vmatpush1.msra.mxu0 %v51
    %159 = vmatprep.subr.mxu0 0.0
    %160 = vmatpush1.msra.mxu0 %v52
    %161 = vmatprep.subr.mxu0 0.0
    %162 = vmatpush1.msra.mxu0 %v53
    %163 = vmatprep.subr.mxu0 0.0
    %164 = vmatpush1.msra.mxu0 %v54
    %165 = vmatprep.subr.mxu0 0.0
    %166 = vmatpush1.msra.mxu0 0.0
    %167 = vmatprep.subr.mxu0 0.0
    %168 = vmatpush1.msra.mxu0 0.0
    %169 = vmatprep.subr.mxu0 0.0
    %170 = vmatpush1.msra.mxu0 0.0
    %171 = vmatprep.subr.mxu0 0.0
    %172 = vmatpush1.msra.mxu0 0.0
    %173 = vmatprep.subr.mxu0 0.0
    %174 = vmatpush1.msra.mxu0 0.0
    %175 = vmatprep.subr.mxu0 0.0
    %176 = vmatpush1.msra.mxu0 0.0
    %177 = vmatprep.subr.mxu0 0.0
    %178 = vmatpush1.msra.mxu0 0.0
    %179 = vmatprep.subr.mxu0 0.0
    %180 = vmatpush1.msra.mxu0 0.0
    %181 = vmatprep.subr.mxu0 0.0
    %182 = vmatpush1.msra.mxu0 0.0
    %183 = vmatprep.subr.mxu0 0.0
    %184 = vmatpush1.msra.mxu0 0.0
    %185 = vmatprep.subr.mxu0 0.0
    %186 = vmatpush1.msra.mxu0 0.0
    %187 = vmatprep.subr.mxu0 0.0
    %188 = vmatpush1.msra.mxu0 0.0
    %189 = vmatprep.subr.mxu0 0.0
    %190 = vmatpush1.msra.mxu0 0.0
    %191 = vmatprep.subr.mxu0 0.0
    %192 = vmatpush1.msra.mxu0 0.0
    %193 = vmatprep.subr.mxu0 0.0
    %194 = vmatpush1.msra.mxu0 0.0
    %195 = vmatprep.subr.mxu0 0.0
    %196 = vmatpush1.msra.mxu0 0.0
    %197 = vmatprep.subr.mxu0 0.0
    %198 = vmatpush1.msra.mxu0 0.0
    %199 = vmatprep.subr.mxu0 0.0
    %200 = vmatpush1.msra.mxu0 0.0
    %201 = vmatprep.subr.mxu0 0.0
    %202 = vmatpush1.msra.mxu0 0.0
    %203 = vmatprep.subr.mxu0 0.0
    %204 = vmatpush1.msra.mxu0 0.0
    %205 = vmatprep.subr.mxu0 0.0
    %206 = vmatpush1.msra.mxu0 0.0
    %207 = vmatprep.subr.mxu0 0.0
    %208 = vmatpush1.msra.mxu0 0.0
    %209 = vmatprep.subr.mxu0 0.0
    %210 = vmatpush1.msra.mxu0 0.0
    %211 = vmatprep.subr.mxu0 0.0
    %212 = vmatpush1.msra.mxu0 0.0
    %213 = vmatprep.subr.mxu0 0.0
    %214 = vmatpush1.msra.mxu0 0.0
    %215 = vmatprep.subr.mxu0 0.0
    %216 = vmatpush1.msra.mxu0 0.0
    %217 = vmatprep.subr.mxu0 0.0
    %218 = vmatpush1.msra.mxu0 0.0
    %219 = vmatprep.subr.mxu0 0.0
    %220 = vmatpush1.msra.mxu0 0.0
    %221 = vmatprep.mubr.f32.mxu0 0.0
    %222 = vmatmul.mubr.f32.gmra.mrb[0].mxu0 %v155
    %v223 = vpop.f32.mrb[0].mxu0
    %v224 = vadd.f32 0.0, %v223
    %v225 = vpop.f32.mrb[0].mxu0
    %226 = vdwg.mxu0
    %v227 = vadd.f32 %v146, %v224
    %v228 = vxor.u32 %v227, 2147483648
    %v229 = vmul.f32 %v228, 1.442695
    %v230 = vpow.pop %v229
    %v231 = vadd.f32 %v230, 1.0
    %v232 = vrcp.pop %v231
    %v233 = vmul.f32 1.0, %v232
    %v234 = vtanh.pop %v227
    %v235 = vmul.f32 %v233, 0.0
    %237 = vrot.lane.b32.xlu0 %v234, 64
    %v238 = vpop.permute.xlu0 %237
    %v240 = vmul.f32 %v233, %v238
    %242 = vrot.lane.b32.xlu0 %v240, 32
    %v243 = vpop.permute.xlu0 %242
    %v245 = vadd.f32 %v235, %v243
    %v246 = vtanh.pop %v245
    %248 = vrot.lane.b32.xlu0 %v246, 64
    %v249 = vpop.permute.xlu0 %248
    %v251 = vmul.f32 %v233, %v249
    %253 = vrot.lane.b32.xlu0 %v251, 32
    %v254 = vpop.permute.xlu0 %253
    %vm256 = vcmask 254976
    %257 = vst.msk [vmem:[#allocation2] sm:$0x3] %vm256, %v254
    %v258 = vsel %vm72, %v254, 0
    %260 = vmatprep.subr.mxu0 0.0
    %261 = vmatpush1.msra.mxu0 %v51
    %262 = vmatprep.subr.mxu0 0.0
    %263 = vmatpush1.msra.mxu0 %v52
    %264 = vmatprep.subr.mxu0 0.0
    %265 = vmatpush1.msra.mxu0 %v53
    %266 = vmatprep.subr.mxu0 0.0
    %267 = vmatpush1.msra.mxu0 %v54
    %268 = vmatprep.subr.mxu0 0.0
    %269 = vmatpush1.msra.mxu0 0.0
    %270 = vmatprep.subr.mxu0 0.0
    %271 = vmatpush1.msra.mxu0 0.0
    %272 = vmatprep.subr.mxu0 0.0
    %273 = vmatpush1.msra.mxu0 0.0
    %274 = vmatprep.subr.mxu0 0.0
    %275 = vmatpush1.msra.mxu0 0.0
    %276 = vmatprep.subr.mxu0 0.0
    %277 = vmatpush1.msra.mxu0 0.0
    %278 = vmatprep.subr.mxu0 0.0
    %279 = vmatpush1.msra.mxu0 0.0
    %280 = vmatprep.subr.mxu0 0.0
    %281 = vmatpush1.msra.mxu0 0.0
    %282 = vmatprep.subr.mxu0 0.0
    %283 = vmatpush1.msra.mxu0 0.0
    %284 = vmatprep.subr.mxu0 0.0
    %285 = vmatpush1.msra.mxu0 0.0
    %286 = vmatprep.subr.mxu0 0.0
    %287 = vmatpush1.msra.mxu0 0.0
    %288 = vmatprep.subr.mxu0 0.0
    %289 = vmatpush1.msra.mxu0 0.0
    %290 = vmatprep.subr.mxu0 0.0
    %291 = vmatpush1.msra.mxu0 0.0
    %292 = vmatprep.subr.mxu0 0.0
    %293 = vmatpush1.msra.mxu0 0.0
    %294 = vmatprep.subr.mxu0 0.0
    %295 = vmatpush1.msra.mxu0 0.0
    %296 = vmatprep.subr.mxu0 0.0
    %297 = vmatpush1.msra.mxu0 0.0
    %298 = vmatprep.subr.mxu0 0.0
    %299 = vmatpush1.msra.mxu0 0.0
    %300 = vmatprep.subr.mxu0 0.0
    %301 = vmatpush1.msra.mxu0 0.0
    %302 = vmatprep.subr.mxu0 0.0
    %303 = vmatpush1.msra.mxu0 0.0
    %304 = vmatprep.subr.mxu0 0.0
    %305 = vmatpush1.msra.mxu0 0.0
    %306 = vmatprep.subr.mxu0 0.0
    %307 = vmatpush1.msra.mxu0 0.0
    %308 = vmatprep.subr.mxu0 0.0
    %309 = vmatpush1.msra.mxu0 0.0
    %310 = vmatprep.subr.mxu0 0.0
    %311 = vmatpush1.msra.mxu0 0.0
    %312 = vmatprep.subr.mxu0 0.0
    %313 = vmatpush1.msra.mxu0 0.0
    %314 = vmatprep.subr.mxu0 0.0
    %315 = vmatpush1.msra.mxu0 0.0
    %316 = vmatprep.subr.mxu0 0.0
    %317 = vmatpush1.msra.mxu0 0.0
    %318 = vmatprep.subr.mxu0 0.0
    %319 = vmatpush1.msra.mxu0 0.0
    %320 = vmatprep.subr.mxu0 0.0
    %321 = vmatpush1.msra.mxu0 0.0
    %322 = vmatprep.subr.mxu0 0.0
    %323 = vmatpush1.msra.mxu0 0.0
    %324 = vmatprep.mubr.f32.mxu0 0.0
    %325 = vmatmul.mubr.f32.gmra.mrb[0].mxu0 %v258
    %v326 = vpop.f32.mrb[0].mxu0
    %v327 = vadd.f32 0.0, %v326
    %v328 = vpop.f32.mrb[0].mxu0
    %329 = vdwg.mxu0
    %v331 = vrot.slane %v327, 6
    %v333 = vadd.f32 %v146, %v331
    %v334 = vxor.u32 %v333, 2147483648
    %v335 = vmul.f32 %v334, 1.442695
    %v336 = vpow.pop %v335
    %v337 = vadd.f32 %v336, 1.0
    %v338 = vrcp.pop %v337
    %v339 = vmul.f32 1.0, %v338
    %v340 = vtanh.pop %v333
    %v342 = vrot.slane %v245, 6
    %v344 = vmul.f32 %v339, %v342
    %346 = vrot.lane.b32.xlu0 %v340, 64
    %v347 = vpop.permute.xlu0 %346
    %v349 = vmul.f32 %v339, %v347
    %351 = vrot.lane.b32.xlu0 %v349, 32
    %v352 = vpop.permute.xlu0 %351
    %v354 = vadd.f32 %v344, %v352
    %v355 = vtanh.pop %v354
    %357 = vrot.lane.b32.xlu0 %v355, 64
    %v358 = vpop.permute.xlu0 %357
    %v360 = vmul.f32 %v339, %v358
    %362 = vrot.lane.b32.xlu0 %v360, 32
    %v363 = vpop.permute.xlu0 %362
    %vm365 = vcmask 257026
    %366 = vst.msk [vmem:[#allocation2] sm:$0xc] %vm365, %v363
    %v367 = vrot.slane %v360, 2
    %368 = vrot.lane.b32.xlu0 %v367, 32
    %v369 = vpop.permute.xlu0 %368
    %v370 = vsel %vm72, %v369, 0
    %372 = vmatprep.subr.mxu0 0.0
    %373 = vmatpush1.msra.mxu0 %v51
    %374 = vmatprep.subr.mxu0 0.0
    %375 = vmatpush1.msra.mxu0 %v52
    %376 = vmatprep.subr.mxu0 0.0
    %377 = vmatpush1.msra.mxu0 %v53
    %378 = vmatprep.subr.mxu0 0.0
    %379 = vmatpush1.msra.mxu0 %v54
    %380 = vmatprep.subr.mxu0 0.0
    %381 = vmatpush1.msra.mxu0 0.0
    %382 = vmatprep.subr.mxu0 0.0
    %383 = vmatpush1.msra.mxu0 0.0
    %384 = vmatprep.subr.mxu0 0.0
    %385 = vmatpush1.msra.mxu0 0.0
    %386 = vmatprep.subr.mxu0 0.0
    %387 = vmatpush1.msra.mxu0 0.0
    %388 = vmatprep.subr.mxu0 0.0
    %389 = vmatpush1.msra.mxu0 0.0
    %390 = vmatprep.subr.mxu0 0.0
    %391 = vmatpush1.msra.mxu0 0.0
    %392 = vmatprep.subr.mxu0 0.0
    %393 = vmatpush1.msra.mxu0 0.0
    %394 = vmatprep.subr.mxu0 0.0
    %395 = vmatpush1.msra.mxu0 0.0
    %396 = vmatprep.subr.mxu0 0.0
    %397 = vmatpush1.msra.mxu0 0.0
    %398 = vmatprep.subr.mxu0 0.0
    %399 = vmatpush1.msra.mxu0 0.0
    %400 = vmatprep.subr.mxu0 0.0
    %401 = vmatpush1.msra.mxu0 0.0
    %402 = vmatprep.subr.mxu0 0.0
    %403 = vmatpush1.msra.mxu0 0.0
    %404 = vmatprep.subr.mxu0 0.0
    %405 = vmatpush1.msra.mxu0 0.0
    %406 = vmatprep.subr.mxu0 0.0
    %407 = vmatpush1.msra.mxu0 0.0
    %408 = vmatprep.subr.mxu0 0.0
    %409 = vmatpush1.msra.mxu0 0.0
    %410 = vmatprep.subr.mxu0 0.0
    %411 = vmatpush1.msra.mxu0 0.0
    %412 = vmatprep.subr.mxu0 0.0
    %413 = vmatpush1.msra.mxu0 0.0
    %414 = vmatprep.subr.mxu0 0.0
    %415 = vmatpush1.msra.mxu0 0.0
    %416 = vmatprep.subr.mxu0 0.0
    %417 = vmatpush1.msra.mxu0 0.0
    %418 = vmatprep.subr.mxu0 0.0
    %419 = vmatpush1.msra.mxu0 0.0
    %420 = vmatprep.subr.mxu0 0.0
    %421 = vmatpush1.msra.mxu0 0.0
    %422 = vmatprep.subr.mxu0 0.0
    %423 = vmatpush1.msra.mxu0 0.0
    %424 = vmatprep.subr.mxu0 0.0
    %425 = vmatpush1.msra.mxu0 0.0
    %426 = vmatprep.subr.mxu0 0.0
    %427 = vmatpush1.msra.mxu0 0.0
    %428 = vmatprep.subr.mxu0 0.0
    %429 = vmatpush1.msra.mxu0 0.0
    %430 = vmatprep.subr.mxu0 0.0
    %431 = vmatpush1.msra.mxu0 0.0
    %432 = vmatprep.subr.mxu0 0.0
    %433 = vmatpush1.msra.mxu0 0.0
    %434 = vmatprep.subr.mxu0 0.0
    %435 = vmatpush1.msra.mxu0 0.0
    %436 = vmatprep.mubr.f32.mxu0 0.0
    %437 = vmatmul.mubr.f32.gmra.mrb[0].mxu0 %v370
    %v438 = vpop.f32.mrb[0].mxu0
    %v439 = vadd.f32 0.0, %v438
    %v440 = vpop.f32.mrb[0].mxu0
    %441 = vdwg.mxu0
    %v443 = vrot.slane %v439, 4
    %v445 = vadd.f32 %v146, %v443
    %v446 = vxor.u32 %v445, 2147483648
    %v447 = vmul.f32 %v446, 1.442695
    %v448 = vpow.pop %v447
    %v449 = vadd.f32 %v448, 1.0
    %v450 = vrcp.pop %v449
    %v451 = vmul.f32 1.0, %v450
    %v452 = vtanh.pop %v445
    %v454 = vrot.slane %v354, 6
    %v456 = vmul.f32 %v451, %v454
    %458 = vrot.lane.b32.xlu0 %v452, 64
    %v459 = vpop.permute.xlu0 %458
    %v461 = vmul.f32 %v451, %v459
    %463 = vrot.lane.b32.xlu0 %v461, 32
    %v464 = vpop.permute.xlu0 %463
    %v466 = vadd.f32 %v456, %v464
    %v467 = vtanh.pop %v466
    %469 = vrot.lane.b32.xlu0 %v467, 64
    %v470 = vpop.permute.xlu0 %469
    %v472 = vmul.f32 %v451, %v470
    %474 = vrot.lane.b32.xlu0 %v472, 32
    %v475 = vpop.permute.xlu0 %474
    %vm477 = vcmask 259076
    %478 = vst.msk [vmem:[#allocation2] sm:$0x30] %vm477, %v475
    %v479 = vrot.slane %v472, 4
    %480 = vrot.lane.b32.xlu0 %v479, 32
    %v481 = vpop.permute.xlu0 %480
    %v482 = vsel %vm72, %v481, 0
    %484 = vmatprep.subr.mxu0 0.0
    %485 = vmatpush1.msra.mxu0 %v51
    %486 = vmatprep.subr.mxu0 0.0
    %487 = vmatpush1.msra.mxu0 %v52
    %488 = vmatprep.subr.mxu0 0.0
    %489 = vmatpush1.msra.mxu0 %v53
    %490 = vmatprep.subr.mxu0 0.0
    %491 = vmatpush1.msra.mxu0 %v54
    %492 = vmatprep.subr.mxu0 0.0
    %493 = vmatpush1.msra.mxu0 0.0
    %494 = vmatprep.subr.mxu0 0.0
    %495 = vmatpush1.msra.mxu0 0.0
    %496 = vmatprep.subr.mxu0 0.0
    %497 = vmatpush1.msra.mxu0 0.0
    %498 = vmatprep.subr.mxu0 0.0
    %499 = vmatpush1.msra.mxu0 0.0
    %500 = vmatprep.subr.mxu0 0.0
    %501 = vmatpush1.msra.mxu0 0.0
    %502 = vmatprep.subr.mxu0 0.0
    %503 = vmatpush1.msra.mxu0 0.0
    %504 = vmatprep.subr.mxu0 0.0
    %505 = vmatpush1.msra.mxu0 0.0
    %506 = vmatprep.subr.mxu0 0.0
    %507 = vmatpush1.msra.mxu0 0.0
    %508 = vmatprep.subr.mxu0 0.0
    %509 = vmatpush1.msra.mxu0 0.0
    %510 = vmatprep.subr.mxu0 0.0
    %511 = vmatpush1.msra.mxu0 0.0
    %512 = vmatprep.subr.mxu0 0.0
    %513 = vmatpush1.msra.mxu0 0.0
    %514 = vmatprep.subr.mxu0 0.0
    %515 = vmatpush1.msra.mxu0 0.0
    %516 = vmatprep.subr.mxu0 0.0
    %517 = vmatpush1.msra.mxu0 0.0
    %518 = vmatprep.subr.mxu0 0.0
    %519 = vmatpush1.msra.mxu0 0.0
    %520 = vmatprep.subr.mxu0 0.0
    %521 = vmatpush1.msra.mxu0 0.0
    %522 = vmatprep.subr.mxu0 0.0
    %523 = vmatpush1.msra.mxu0 0.0
    %524 = vmatprep.subr.mxu0 0.0
    %525 = vmatpush1.msra.mxu0 0.0
    %526 = vmatprep.subr.mxu0 0.0
    %527 = vmatpush1.msra.mxu0 0.0
    %528 = vmatprep.subr.mxu0 0.0
    %529 = vmatpush1.msra.mxu0 0.0
    %530 = vmatprep.subr.mxu0 0.0
    %531 = vmatpush1.msra.mxu0 0.0
    %532 = vmatprep.subr.mxu0 0.0
    %533 = vmatpush1.msra.mxu0 0.0
    %534 = vmatprep.subr.mxu0 0.0
    %535 = vmatpush1.msra.mxu0 0.0
    %536 = vmatprep.subr.mxu0 0.0
    %537 = vmatpush1.msra.mxu0 0.0
    %538 = vmatprep.subr.mxu0 0.0
    %539 = vmatpush1.msra.mxu0 0.0
    %540 = vmatprep.subr.mxu0 0.0
    %541 = vmatpush1.msra.mxu0 0.0
    %542 = vmatprep.subr.mxu0 0.0
    %543 = vmatpush1.msra.mxu0 0.0
    %544 = vmatprep.subr.mxu0 0.0
    %545 = vmatpush1.msra.mxu0 0.0
    %546 = vmatprep.subr.mxu0 0.0
    %547 = vmatpush1.msra.mxu0 0.0
    %548 = vmatprep.mubr.f32.mxu0 0.0
    %549 = vmatmul.mubr.f32.gmra.mrb[0].mxu0 %v482
    %v550 = vpop.f32.mrb[0].mxu0
    %v551 = vadd.f32 0.0, %v550
    %v552 = vpop.f32.mrb[0].mxu0
    %553 = vdwg.mxu0
    %v555 = vrot.slane %v551, 2
    %v557 = vadd.f32 %v146, %v555
    %v558 = vxor.u32 %v557, 2147483648
    %v559 = vmul.f32 %v558, 1.442695
    %v560 = vpow.pop %v559
    %v561 = vadd.f32 %v560, 1.0
    %v562 = vrcp.pop %v561
    %v563 = vmul.f32 1.0, %v562
    %v564 = vtanh.pop %v557
    %v566 = vrot.slane %v466, 6
    %v568 = vmul.f32 %v563, %v566
    %570 = vrot.lane.b32.xlu0 %v564, 64
    %v571 = vpop.permute.xlu0 %570
    %v573 = vmul.f32 %v563, %v571
    %575 = vrot.lane.b32.xlu0 %v573, 32
    %v576 = vpop.permute.xlu0 %575
    %v578 = vadd.f32 %v568, %v576
    %v579 = vtanh.pop %v578
    %581 = vrot.lane.b32.xlu0 %v579, 64
    %v582 = vpop.permute.xlu0 %581
    %v584 = vmul.f32 %v563, %v582
    %586 = vrot.lane.b32.xlu0 %v584, 32
    %v587 = vpop.permute.xlu0 %586
    %vm589 = vcmask 261126
    %590 = vst.msk [vmem:[#allocation2] sm:$0xc0] %vm589, %v587
    %v591 = vrot.slane %v584, 6
    %592 = vrot.lane.b32.xlu0 %v591, 32
    %v593 = vpop.permute.xlu0 %592
    %v594 = vsel %vm72, %v593, 0
    %596 = vmatprep.subr.mxu0 0.0
    %597 = vmatpush1.msra.mxu0 %v51
    %598 = vmatprep.subr.mxu0 0.0
    %599 = vmatpush1.msra.mxu0 %v52
    %600 = vmatprep.subr.mxu0 0.0
    %601 = vmatpush1.msra.mxu0 %v53
    %602 = vmatprep.subr.mxu0 0.0
    %603 = vmatpush1.msra.mxu0 %v54
    %604 = vmatprep.subr.mxu0 0.0
    %605 = vmatpush1.msra.mxu0 0.0
    %606 = vmatprep.subr.mxu0 0.0
    %607 = vmatpush1.msra.mxu0 0.0
    %608 = vmatprep.subr.mxu0 0.0
    %609 = vmatpush1.msra.mxu0 0.0
    %610 = vmatprep.subr.mxu0 0.0
    %611 = vmatpush1.msra.mxu0 0.0
    %612 = vmatprep.subr.mxu0 0.0
    %613 = vmatpush1.msra.mxu0 0.0
    %614 = vmatprep.subr.mxu0 0.0
    %615 = vmatpush1.msra.mxu0 0.0
    %616 = vmatprep.subr.mxu0 0.0
    %617 = vmatpush1.msra.mxu0 0.0
    %618 = vmatprep.subr.mxu0 0.0
    %619 = vmatpush1.msra.mxu0 0.0
    %620 = vmatprep.subr.mxu0 0.0
    %621 = vmatpush1.msra.mxu0 0.0
    %622 = vmatprep.subr.mxu0 0.0
    %623 = vmatpush1.msra.mxu0 0.0
    %624 = vmatprep.subr.mxu0 0.0
    %625 = vmatpush1.msra.mxu0 0.0
    %626 = vmatprep.subr.mxu0 0.0
    %627 = vmatpush1.msra.mxu0 0.0
    %628 = vmatprep.subr.mxu0 0.0
    %629 = vmatpush1.msra.mxu0 0.0
    %630 = vmatprep.subr.mxu0 0.0
    %631 = vmatpush1.msra.mxu0 0.0
    %632 = vmatprep.subr.mxu0 0.0
    %633 = vmatpush1.msra.mxu0 0.0
    %634 = vmatprep.subr.mxu0 0.0
    %635 = vmatpush1.msra.mxu0 0.0
    %636 = vmatprep.subr.mxu0 0.0
    %637 = vmatpush1.msra.mxu0 0.0
    %638 = vmatprep.subr.mxu0 0.0
    %639 = vmatpush1.msra.mxu0 0.0
    %640 = vmatprep.subr.mxu0 0.0
    %641 = vmatpush1.msra.mxu0 0.0
    %642 = vmatprep.subr.mxu0 0.0
    %643 = vmatpush1.msra.mxu0 0.0
    %644 = vmatprep.subr.mxu0 0.0
    %645 = vmatpush1.msra.mxu0 0.0
    %646 = vmatprep.subr.mxu0 0.0
    %647 = vmatpush1.msra.mxu0 0.0
    %648 = vmatprep.subr.mxu0 0.0
    %649 = vmatpush1.msra.mxu0 0.0
    %650 = vmatprep.subr.mxu0 0.0
    %651 = vmatpush1.msra.mxu0 0.0
    %652 = vmatprep.subr.mxu0 0.0
    %653 = vmatpush1.msra.mxu0 0.0
    %654 = vmatprep.subr.mxu0 0.0
    %655 = vmatpush1.msra.mxu0 0.0
    %656 = vmatprep.subr.mxu0 0.0
    %657 = vmatpush1.msra.mxu0 0.0
    %658 = vmatprep.subr.mxu0 0.0
    %659 = vmatpush1.msra.mxu0 0.0
    %660 = vmatprep.mubr.f32.mxu0 0.0
    %661 = vmatmul.mubr.f32.gmra.mrb[0].mxu0 %v594
    %v662 = vpop.f32.mrb[0].mxu0
    %v663 = vadd.f32 0.0, %v662
    %v664 = vpop.f32.mrb[0].mxu0
    %665 = vdwg.mxu0
    %v666 = vadd.f32 %v151, %v663
    %v667 = vxor.u32 %v666, 2147483648
    %v668 = vmul.f32 %v667, 1.442695
    %v669 = vpow.pop %v668
    %v670 = vadd.f32 %v669, 1.0
    %v671 = vrcp.pop %v670
    %v672 = vmul.f32 1.0, %v671
    %v673 = vtanh.pop %v666
    %v675 = vrot.slane %v578, 6
    %v677 = vmul.f32 %v672, %v675
    %679 = vrot.lane.b32.xlu0 %v673, 64
    %v680 = vpop.permute.xlu0 %679
    %v682 = vmul.f32 %v672, %v680
    %684 = vrot.lane.b32.xlu0 %v682, 32
    %v685 = vpop.permute.xlu0 %684
    %v687 = vadd.f32 %v677, %v685
    %v688 = vtanh.pop %v687
    %690 = vrot.lane.b32.xlu0 %v688, 64
    %v691 = vpop.permute.xlu0 %690
    %v693 = vmul.f32 %v672, %v691
    %695 = vrot.lane.b32.xlu0 %v693, 32
    %v696 = vpop.permute.xlu0 %695
    %698 = vst.msk [vmem:[#allocation2 + $0x8] sm:$0x3] %vm256, %v696
    %v699 = vsel %vm72, %v696, 0
    %701 = vmatprep.subr.mxu0 0.0
    %702 = vmatpush1.msra.mxu0 %v51
    %703 = vmatprep.subr.mxu0 0.0
    %704 = vmatpush1.msra.mxu0 %v52
    %705 = vmatprep.subr.mxu0 0.0
    %706 = vmatpush1.msra.mxu0 %v53
    %707 = vmatprep.subr.mxu0 0.0
    %708 = vmatpush1.msra.mxu0 %v54
    %709 = vmatprep.subr.mxu0 0.0
    %710 = vmatpush1.msra.mxu0 0.0
    %711 = vmatprep.subr.mxu0 0.0
    %712 = vmatpush1.msra.mxu0 0.0
    %713 = vmatprep.subr.mxu0 0.0
    %714 = vmatpush1.msra.mxu0 0.0
    %715 = vmatprep.subr.mxu0 0.0
    %716 = vmatpush1.msra.mxu0 0.0
    %717 = vmatprep.subr.mxu0 0.0
    %718 = vmatpush1.msra.mxu0 0.0
    %719 = vmatprep.subr.mxu0 0.0
    %720 = vmatpush1.msra.mxu0 0.0
    %721 = vmatprep.subr.mxu0 0.0
    %722 = vmatpush1.msra.mxu0 0.0
    %723 = vmatprep.subr.mxu0 0.0
    %724 = vmatpush1.msra.mxu0 0.0
    %725 = vmatprep.subr.mxu0 0.0
    %726 = vmatpush1.msra.mxu0 0.0
    %727 = vmatprep.subr.mxu0 0.0
    %728 = vmatpush1.msra.mxu0 0.0
    %729 = vmatprep.subr.mxu0 0.0
    %730 = vmatpush1.msra.mxu0 0.0
    %731 = vmatprep.subr.mxu0 0.0
    %732 = vmatpush1.msra.mxu0 0.0
    %733 = vmatprep.subr.mxu0 0.0
    %734 = vmatpush1.msra.mxu0 0.0
    %735 = vmatprep.subr.mxu0 0.0
    %736 = vmatpush1.msra.mxu0 0.0
    %737 = vmatprep.subr.mxu0 0.0
    %738 = vmatpush1.msra.mxu0 0.0
    %739 = vmatprep.subr.mxu0 0.0
    %740 = vmatpush1.msra.mxu0 0.0
    %741 = vmatprep.subr.mxu0 0.0
    %742 = vmatpush1.msra.mxu0 0.0
    %743 = vmatprep.subr.mxu0 0.0
    %744 = vmatpush1.msra.mxu0 0.0
    %745 = vmatprep.subr.mxu0 0.0
    %746 = vmatpush1.msra.mxu0 0.0
    %747 = vmatprep.subr.mxu0 0.0
    %748 = vmatpush1.msra.mxu0 0.0
    %749 = vmatprep.subr.mxu0 0.0
    %750 = vmatpush1.msra.mxu0 0.0
    %751 = vmatprep.subr.mxu0 0.0
    %752 = vmatpush1.msra.mxu0 0.0
    %753 = vmatprep.subr.mxu0 0.0
    %754 = vmatpush1.msra.mxu0 0.0
    %755 = vmatprep.subr.mxu0 0.0
    %756 = vmatpush1.msra.mxu0 0.0
    %757 = vmatprep.subr.mxu0 0.0
    %758 = vmatpush1.msra.mxu0 0.0
    %759 = vmatprep.subr.mxu0 0.0
    %760 = vmatpush1.msra.mxu0 0.0
    %761 = vmatprep.subr.mxu0 0.0
    %762 = vmatpush1.msra.mxu0 0.0
    %763 = vmatprep.subr.mxu0 0.0
    %764 = vmatpush1.msra.mxu0 0.0
    %765 = vmatprep.mubr.f32.mxu0 0.0
    %766 = vmatmul.mubr.f32.gmra.mrb[0].mxu0 %v699
    %v767 = vpop.f32.mrb[0].mxu0
    %v768 = vadd.f32 0.0, %v767
    %v769 = vpop.f32.mrb[0].mxu0
    %770 = vdwg.mxu0
    %v772 = vrot.slane %v768, 6
    %v774 = vadd.f32 %v151, %v772
    %v775 = vxor.u32 %v774, 2147483648
    %v776 = vmul.f32 %v775, 1.442695
    %v777 = vpow.pop %v776
    %v778 = vadd.f32 %v777, 1.0
    %v779 = vrcp.pop %v778
    %v780 = vmul.f32 1.0, %v779
    %v781 = vtanh.pop %v774
    %v783 = vrot.slane %v687, 6
    %v785 = vmul.f32 %v780, %v783
    %787 = vrot.lane.b32.xlu0 %v781, 64
    %v788 = vpop.permute.xlu0 %787
    %v790 = vmul.f32 %v780, %v788
    %792 = vrot.lane.b32.xlu0 %v790, 32
    %v793 = vpop.permute.xlu0 %792
    %v795 = vadd.f32 %v785, %v793
    %v796 = vtanh.pop %v795
    %798 = vrot.lane.b32.xlu0 %v796, 64
    %v799 = vpop.permute.xlu0 %798
    %v801 = vmul.f32 %v780, %v799
    %803 = vrot.lane.b32.xlu0 %v801, 32
    %v804 = vpop.permute.xlu0 %803
    %806 = vst.msk [vmem:[#allocation2 + $0x8] sm:$0xc] %vm365, %v804
    %v807 = vrot.slane %v801, 2
    %808 = vrot.lane.b32.xlu0 %v807, 32
    %v809 = vpop.permute.xlu0 %808
    %v810 = vsel %vm72, %v809, 0
    %812 = vmatprep.subr.mxu0 0.0
    %813 = vmatpush1.msra.mxu0 %v51
    %814 = vmatprep.subr.mxu0 0.0
    %815 = vmatpush1.msra.mxu0 %v52
    %816 = vmatprep.subr.mxu0 0.0
    %817 = vmatpush1.msra.mxu0 %v53
    %818 = vmatprep.subr.mxu0 0.0
    %819 = vmatpush1.msra.mxu0 %v54
    %820 = vmatprep.subr.mxu0 0.0
    %821 = vmatpush1.msra.mxu0 0.0
    %822 = vmatprep.subr.mxu0 0.0
    %823 = vmatpush1.msra.mxu0 0.0
    %824 = vmatprep.subr.mxu0 0.0
    %825 = vmatpush1.msra.mxu0 0.0
    %826 = vmatprep.subr.mxu0 0.0
    %827 = vmatpush1.msra.mxu0 0.0
    %828 = vmatprep.subr.mxu0 0.0
    %829 = vmatpush1.msra.mxu0 0.0
    %830 = vmatprep.subr.mxu0 0.0
    %831 = vmatpush1.msra.mxu0 0.0
    %832 = vmatprep.subr.mxu0 0.0
    %833 = vmatpush1.msra.mxu0 0.0
    %834 = vmatprep.subr.mxu0 0.0
    %835 = vmatpush1.msra.mxu0 0.0
    %836 = vmatprep.subr.mxu0 0.0
    %837 = vmatpush1.msra.mxu0 0.0
    %838 = vmatprep.subr.mxu0 0.0
    %839 = vmatpush1.msra.mxu0 0.0
    %840 = vmatprep.subr.mxu0 0.0
    %841 = vmatpush1.msra.mxu0 0.0
    %842 = vmatprep.subr.mxu0 0.0
    %843 = vmatpush1.msra.mxu0 0.0
    %844 = vmatprep.subr.mxu0 0.0
    %845 = vmatpush1.msra.mxu0 0.0
    %846 = vmatprep.subr.mxu0 0.0
    %847 = vmatpush1.msra.mxu0 0.0
    %848 = vmatprep.subr.mxu0 0.0
    %849 = vmatpush1.msra.mxu0 0.0
    %850 = vmatprep.subr.mxu0 0.0
    %851 = vmatpush1.msra.mxu0 0.0
    %852 = vmatprep.subr.mxu0 0.0
    %853 = vmatpush1.msra.mxu0 0.0
    %854 = vmatprep.subr.mxu0 0.0
    %855 = vmatpush1.msra.mxu0 0.0
    %856 = vmatprep.subr.mxu0 0.0
    %857 = vmatpush1.msra.mxu0 0.0
    %858 = vmatprep.subr.mxu0 0.0
    %859 = vmatpush1.msra.mxu0 0.0
    %860 = vmatprep.subr.mxu0 0.0
    %861 = vmatpush1.msra.mxu0 0.0
    %862 = vmatprep.subr.mxu0 0.0
    %863 = vmatpush1.msra.mxu0 0.0
    %864 = vmatprep.subr.mxu0 0.0
    %865 = vmatpush1.msra.mxu0 0.0
    %866 = vmatprep.subr.mxu0 0.0
    %867 = vmatpush1.msra.mxu0 0.0
    %868 = vmatprep.subr.mxu0 0.0
    %869 = vmatpush1.msra.mxu0 0.0
    %870 = vmatprep.subr.mxu0 0.0
    %871 = vmatpush1.msra.mxu0 0.0
    %872 = vmatprep.subr.mxu0 0.0
    %873 = vmatpush1.msra.mxu0 0.0
    %874 = vmatprep.subr.mxu0 0.0
    %875 = vmatpush1.msra.mxu0 0.0
    %876 = vmatprep.mubr.f32.mxu0 0.0
    %877 = vmatmul.mubr.f32.gmra.mrb[0].mxu0 %v810
    %v878 = vpop.f32.mrb[0].mxu0
    %v879 = vadd.f32 0.0, %v878
    %v880 = vpop.f32.mrb[0].mxu0
    %881 = vdwg.mxu0
    %v883 = vrot.slane %v879, 4
    %v885 = vadd.f32 %v151, %v883
    %v886 = vxor.u32 %v885, 2147483648
    %v887 = vmul.f32 %v886, 1.442695
    %v888 = vpow.pop %v887
    %v889 = vadd.f32 %v888, 1.0
    %v890 = vrcp.pop %v889
    %v891 = vmul.f32 1.0, %v890
    %v892 = vtanh.pop %v885
    %v894 = vrot.slane %v795, 6
    %v896 = vmul.f32 %v891, %v894
    %898 = vrot.lane.b32.xlu0 %v892, 64
    %v899 = vpop.permute.xlu0 %898
    %v901 = vmul.f32 %v891, %v899
    %903 = vrot.lane.b32.xlu0 %v901, 32
    %v904 = vpop.permute.xlu0 %903
    %v906 = vadd.f32 %v896, %v904
    %v907 = vtanh.pop %v906
    %909 = vrot.lane.b32.xlu0 %v907, 64
    %v910 = vpop.permute.xlu0 %909
    %v912 = vmul.f32 %v891, %v910
    %914 = vrot.lane.b32.xlu0 %v912, 32
    %v915 = vpop.permute.xlu0 %914
    %917 = vst.msk [vmem:[#allocation2 + $0x8] sm:$0x30] %vm477, %v915
    %v918 = vrot.slane %v912, 4
    %919 = vrot.lane.b32.xlu0 %v918, 32
    %v920 = vpop.permute.xlu0 %919
    %v921 = vsel %vm72, %v920, 0
    %923 = vmatprep.subr.mxu0 0.0
    %924 = vmatpush1.msra.mxu0 %v51
    %925 = vmatprep.subr.mxu0 0.0
    %926 = vmatpush1.msra.mxu0 %v52
    %927 = vmatprep.subr.mxu0 0.0
    %928 = vmatpush1.msra.mxu0 %v53
    %929 = vmatprep.subr.mxu0 0.0
    %930 = vmatpush1.msra.mxu0 %v54
    %931 = vmatprep.subr.mxu0 0.0
    %932 = vmatpush1.msra.mxu0 0.0
    %933 = vmatprep.subr.mxu0 0.0
    %934 = vmatpush1.msra.mxu0 0.0
    %935 = vmatprep.subr.mxu0 0.0
    %936 = vmatpush1.msra.mxu0 0.0
    %937 = vmatprep.subr.mxu0 0.0
    %938 = vmatpush1.msra.mxu0 0.0
    %939 = vmatprep.subr.mxu0 0.0
    %940 = vmatpush1.msra.mxu0 0.0
    %941 = vmatprep.subr.mxu0 0.0
    %942 = vmatpush1.msra.mxu0 0.0
    %943 = vmatprep.subr.mxu0 0.0
    %944 = vmatpush1.msra.mxu0 0.0
    %945 = vmatprep.subr.mxu0 0.0
    %946 = vmatpush1.msra.mxu0 0.0
    %947 = vmatprep.subr.mxu0 0.0
    %948 = vmatpush1.msra.mxu0 0.0
    %949 = vmatprep.subr.mxu0 0.0
    %950 = vmatpush1.msra.mxu0 0.0
    %951 = vmatprep.subr.mxu0 0.0
    %952 = vmatpush1.msra.mxu0 0.0
    %953 = vmatprep.subr.mxu0 0.0
    %954 = vmatpush1.msra.mxu0 0.0
    %955 = vmatprep.subr.mxu0 0.0
    %956 = vmatpush1.msra.mxu0 0.0
    %957 = vmatprep.subr.mxu0 0.0
    %958 = vmatpush1.msra.mxu0 0.0
    %959 = vmatprep.subr.mxu0 0.0
    %960 = vmatpush1.msra.mxu0 0.0
    %961 = vmatprep.subr.mxu0 0.0
    %962 = vmatpush1.msra.mxu0 0.0
    %963 = vmatprep.subr.mxu0 0.0
    %964 = vmatpush1.msra.mxu0 0.0
    %965 = vmatprep.subr.mxu0 0.0
    %966 = vmatpush1.msra.mxu0 0.0
    %967 = vmatprep.subr.mxu0 0.0
    %968 = vmatpush1.msra.mxu0 0.0
    %969 = vmatprep.subr.mxu0 0.0
    %970 = vmatpush1.msra.mxu0 0.0
    %971 = vmatprep.subr.mxu0 0.0
    %972 = vmatpush1.msra.mxu0 0.0
    %973 = vmatprep.subr.mxu0 0.0
    %974 = vmatpush1.msra.mxu0 0.0
    %975 = vmatprep.subr.mxu0 0.0
    %976 = vmatpush1.msra.mxu0 0.0
    %977 = vmatprep.subr.mxu0 0.0
    %978 = vmatpush1.msra.mxu0 0.0
    %979 = vmatprep.subr.mxu0 0.0
    %980 = vmatpush1.msra.mxu0 0.0
    %981 = vmatprep.subr.mxu0 0.0
    %982 = vmatpush1.msra.mxu0 0.0
    %983 = vmatprep.subr.mxu0 0.0
    %984 = vmatpush1.msra.mxu0 0.0
    %985 = vmatprep.subr.mxu0 0.0
    %986 = vmatpush1.msra.mxu0 0.0
    %987 = vmatprep.mubr.f32.mxu0 0.0
    %988 = vmatmul.mubr.f32.gmra.mrb[0].mxu0 %v921
    %v989 = vpop.f32.mrb[0].mxu0
    %v990 = vadd.f32 0.0, %v989
    %v991 = vpop.f32.mrb[0].mxu0
    %992 = vdwg.mxu0
    %v994 = vrot.slane %v990, 2
    %v996 = vadd.f32 %v151, %v994
    %v997 = vxor.u32 %v996, 2147483648
    %v998 = vmul.f32 %v997, 1.442695
    %v999 = vpow.pop %v998
    %v1000 = vadd.f32 %v999, 1.0
    %v1001 = vrcp.pop %v1000
    %v1002 = vmul.f32 1.0, %v1001
    %v1003 = vtanh.pop %v996
    %v1005 = vrot.slane %v906, 6
    %v1007 = vmul.f32 %v1002, %v1005
    %1009 = vrot.lane.b32.xlu0 %v1003, 64
    %v1010 = vpop.permute.xlu0 %1009
    %v1012 = vmul.f32 %v1002, %v1010
    %1014 = vrot.lane.b32.xlu0 %v1012, 32
    %v1015 = vpop.permute.xlu0 %1014
    %v1017 = vadd.f32 %v1007, %v1015
    %v1018 = vtanh.pop %v1017
    %1020 = vrot.lane.b32.xlu0 %v1018, 64
    %v1021 = vpop.permute.xlu0 %1020
    %v1023 = vmul.f32 %v1002, %v1021
    %1025 = vrot.lane.b32.xlu0 %v1023, 32
    %v1026 = vpop.permute.xlu0 %1025
    %1028 = vst.msk [vmem:[#allocation2 + $0x8] sm:$0xc0] %vm589, %v1026
    %v1029 = vld [vmem:[#allocation2] sm:$0xff]
    %v1030 = vld [vmem:[#allocation2 + $0x8] sm:$0xff]
    %v1031 = vld [vmem:[%s4] sm:$0xff]
    %v1032 = vld [vmem:[%s4 + $0x8] sm:$0xff]
    %v1033 = vld [vmem:[%s4 + $0x10] sm:$0xff]
    %v1034 = vld [vmem:[%s4 + $0x18] sm:$0xff]
    %v1035 = vld [vmem:[%s6] sm:$0x1]
    %v1037 = vlaneseq
    %v1038 = vshrl.u32 %v1037, 7
    %v1039 = vsub.s32 0, %v1038
    %v1040 = vrot.slane %v1035, %v1039
    %v1043 = vsel %vm72, %v1029, 0
    %v1046 = vsel %vm72, %v1030, 0
    %1048 = vmatprep.subr.mxu0 0.0
    %1049 = vmatpush1.msra.mxu0 %v1031
    %1050 = vmatprep.subr.mxu0 0.0
    %1051 = vmatpush1.msra.mxu0 %v1032
    %1052 = vmatprep.subr.mxu0 0.0
    %1053 = vmatpush1.msra.mxu0 %v1033
    %1054 = vmatprep.subr.mxu0 0.0
    %1055 = vmatpush1.msra.mxu0 %v1034
    %1056 = vmatprep.subr.mxu0 0.0
    %1057 = vmatpush1.msra.mxu0 0.0
    %1058 = vmatprep.subr.mxu0 0.0
    %1059 = vmatpush1.msra.mxu0 0.0
    %1060 = vmatprep.subr.mxu0 0.0
    %1061 = vmatpush1.msra.mxu0 0.0
    %1062 = vmatprep.subr.mxu0 0.0
    %1063 = vmatpush1.msra.mxu0 0.0
    %1064 = vmatprep.subr.mxu0 0.0
    %1065 = vmatpush1.msra.mxu0 0.0
    %1066 = vmatprep.subr.mxu0 0.0
    %1067 = vmatpush1.msra.mxu0 0.0
    %1068 = vmatprep.subr.mxu0 0.0
    %1069 = vmatpush1.msra.mxu0 0.0
    %1070 = vmatprep.subr.mxu0 0.0
    %1071 = vmatpush1.msra.mxu0 0.0
    %1072 = vmatprep.subr.mxu0 0.0
    %1073 = vmatpush1.msra.mxu0 0.0
    %1074 = vmatprep.subr.mxu0 0.0
    %1075 = vmatpush1.msra.mxu0 0.0
    %1076 = vmatprep.subr.mxu0 0.0
    %1077 = vmatpush1.msra.mxu0 0.0
    %1078 = vmatprep.subr.mxu0 0.0
    %1079 = vmatpush1.msra.mxu0 0.0
    %1080 = vmatprep.subr.mxu0 0.0
    %1081 = vmatpush1.msra.mxu0 0.0
    %1082 = vmatprep.subr.mxu0 0.0
    %1083 = vmatpush1.msra.mxu0 0.0
    %1084 = vmatprep.subr.mxu0 0.0
    %1085 = vmatpush1.msra.mxu0 0.0
    %1086 = vmatprep.subr.mxu0 0.0
    %1087 = vmatpush1.msra.mxu0 0.0
    %1088 = vmatprep.subr.mxu0 0.0
    %1089 = vmatpush1.msra.mxu0 0.0
    %1090 = vmatprep.subr.mxu0 0.0
    %1091 = vmatpush1.msra.mxu0 0.0
    %1092 = vmatprep.subr.mxu0 0.0
    %1093 = vmatpush1.msra.mxu0 0.0
    %1094 = vmatprep.subr.mxu0 0.0
    %1095 = vmatpush1.msra.mxu0 0.0
    %1096 = vmatprep.subr.mxu0 0.0
    %1097 = vmatpush1.msra.mxu0 0.0
    %1098 = vmatprep.subr.mxu0 0.0
    %1099 = vmatpush1.msra.mxu0 0.0
    %1100 = vmatprep.subr.mxu0 0.0
    %1101 = vmatpush1.msra.mxu0 0.0
    %1102 = vmatprep.subr.mxu0 0.0
    %1103 = vmatpush1.msra.mxu0 0.0
    %1104 = vmatprep.subr.mxu0 0.0
    %1105 = vmatpush1.msra.mxu0 0.0
    %1106 = vmatprep.subr.mxu0 0.0
    %1107 = vmatpush1.msra.mxu0 0.0
    %1108 = vmatprep.subr.mxu0 0.0
    %1109 = vmatpush1.msra.mxu0 0.0
    %1110 = vmatprep.subr.mxu0 0.0
    %1111 = vmatpush1.msra.mxu0 0.0
    %1112 = vmatprep.mubr.f32.mxu0 0.0
    %1113 = vmatmul.mubr.f32.gmra.mrb[0].mxu0 %v1043
    %v1114 = vpop.f32.mrb[0].mxu0
    %v1115 = vadd.f32 %v1040, %v1114
    %v1116 = vpop.f32.mrb[0].mxu0
    %1117 = vmatprep.mubr.f32.mxu0 0.0
    %1118 = vmatmul.mubr.f32.gmra.mrb[0].mxu0 %v1046
    %v1119 = vpop.f32.mrb[0].mxu0
    %v1120 = vadd.f32 %v1040, %v1119
    %v1121 = vpop.f32.mrb[0].mxu0
    %1122 = vdwg.mxu0
    %1123 = vmatprep.subr.mxu0 0.0
    %1124 = vmatpush1.msra.mxu0 %v55
    %1125 = vmatprep.subr.mxu0 0.0
    %1126 = vmatpush1.msra.mxu0 %v56
    %1127 = vmatprep.subr.mxu0 0.0
    %1128 = vmatpush1.msra.mxu0 %v57
    %1129 = vmatprep.subr.mxu0 0.0
    %1130 = vmatpush1.msra.mxu0 %v58
    %1131 = vmatprep.subr.mxu0 0.0
    %1132 = vmatpush1.msra.mxu0 0.0
    %1133 = vmatprep.subr.mxu0 0.0
    %1134 = vmatpush1.msra.mxu0 0.0
    %1135 = vmatprep.subr.mxu0 0.0
    %1136 = vmatpush1.msra.mxu0 0.0
    %1137 = vmatprep.subr.mxu0 0.0
    %1138 = vmatpush1.msra.mxu0 0.0
    %1139 = vmatprep.subr.mxu0 0.0
    %1140 = vmatpush1.msra.mxu0 0.0
    %1141 = vmatprep.subr.mxu0 0.0
    %1142 = vmatpush1.msra.mxu0 0.0
    %1143 = vmatprep.subr.mxu0 0.0
    %1144 = vmatpush1.msra.mxu0 0.0
    %1145 = vmatprep.subr.mxu0 0.0
    %1146 = vmatpush1.msra.mxu0 0.0
    %1147 = vmatprep.subr.mxu0 0.0
    %1148 = vmatpush1.msra.mxu0 0.0
    %1149 = vmatprep.subr.mxu0 0.0
    %1150 = vmatpush1.msra.mxu0 0.0
    %1151 = vmatprep.subr.mxu0 0.0
    %1152 = vmatpush1.msra.mxu0 0.0
    %1153 = vmatprep.subr.mxu0 0.0
    %1154 = vmatpush1.msra.mxu0 0.0
    %1155 = vmatprep.subr.mxu0 0.0
    %1156 = vmatpush1.msra.mxu0 0.0
    %1157 = vmatprep.subr.mxu0 0.0
    %1158 = vmatpush1.msra.mxu0 0.0
    %1159 = vmatprep.subr.mxu0 0.0
    %1160 = vmatpush1.msra.mxu0 0.0
    %1161 = vmatprep.subr.mxu0 0.0
    %1162 = vmatpush1.msra.mxu0 0.0
    %1163 = vmatprep.subr.mxu0 0.0
    %1164 = vmatpush1.msra.mxu0 0.0
    %1165 = vmatprep.subr.mxu0 0.0
    %1166 = vmatpush1.msra.mxu0 0.0
    %1167 = vmatprep.subr.mxu0 0.0
    %1168 = vmatpush1.msra.mxu0 0.0
    %1169 = vmatprep.subr.mxu0 0.0
    %1170 = vmatpush1.msra.mxu0 0.0
    %1171 = vmatprep.subr.mxu0 0.0
    %1172 = vmatpush1.msra.mxu0 0.0
    %1173 = vmatprep.subr.mxu0 0.0
    %1174 = vmatpush1.msra.mxu0 0.0
    %1175 = vmatprep.subr.mxu0 0.0
    %1176 = vmatpush1.msra.mxu0 0.0
    %1177 = vmatprep.subr.mxu0 0.0
    %1178 = vmatpush1.msra.mxu0 0.0
    %1179 = vmatprep.subr.mxu0 0.0
    %1180 = vmatpush1.msra.mxu0 0.0
    %1181 = vmatprep.subr.mxu0 0.0
    %1182 = vmatpush1.msra.mxu0 0.0
    %1183 = vmatprep.subr.mxu0 0.0
    %1184 = vmatpush1.msra.mxu0 0.0
    %1185 = vmatprep.subr.mxu0 0.0
    %1186 = vmatpush1.msra.mxu0 0.0
    %1187 = vmatprep.mubr.f32.mxu0 0.0
    %1188 = vmatmul.mubr.f32.gmra.mrb[0].mxu0 %v155
    %v1189 = vpop.f32.mrb[0].mxu0
    %v1190 = vadd.f32 0.0, %v1189
    %v1191 = vpop.f32.mrb[0].mxu0
    %1192 = vdwg.mxu0
    %v1193 = vadd.f32 %v1115, %v1190
    %v1194 = vxor.u32 %v1193, 2147483648
    %v1195 = vmul.f32 %v1194, 1.442695
    %v1196 = vpow.pop %v1195
    %v1197 = vadd.f32 %v1196, 1.0
    %v1198 = vrcp.pop %v1197
    %v1199 = vmul.f32 1.0, %v1198
    %v1200 = vtanh.pop %v1193
    %v1201 = vmul.f32 %v1199, 0.0
    %1203 = vrot.lane.b32.xlu0 %v1200, 64
    %v1204 = vpop.permute.xlu0 %1203
    %v1206 = vmul.f32 %v1199, %v1204
    %1208 = vrot.lane.b32.xlu0 %v1206, 32
    %v1209 = vpop.permute.xlu0 %1208
    %v1211 = vadd.f32 %v1201, %v1209
    %v1212 = vtanh.pop %v1211
    %1214 = vrot.lane.b32.xlu0 %v1212, 64
    %v1215 = vpop.permute.xlu0 %1214
    %v1217 = vmul.f32 %v1199, %v1215
    %v1220 = vunpack.c.l.s4 1966171168
    %v1221 = vunpack.c.0.s8 %v1220
    %v1222 = vlaneseq
    %v1223 = vshrl.u32 %v1222, 7
    %v1224 = vsub.s32 %v1221, %v1223
    %v1225 = vrot.slane %v1217, %v1224
    %v1226 = vcombine.high %v1225, %v1225
    %v1228 = vunpack.c.l.s4 1966171168
    %v1229 = vunpack.c.0.s8 %v1228
    %v1230 = vlaneseq
    %v1231 = vshrl.u32 %v1230, 7
    %v1232 = vsub.s32 %v1229, %v1231
    %v1233 = vrot.slane %v1225, %v1232
    %v1235 = vunpack.c.l.s4 1966171168
    %v1236 = vunpack.c.0.s8 %v1235
    %v1237 = vlaneseq
    %v1238 = vshrl.u32 %v1237, 7
    %v1239 = vsub.s32 %v1236, %v1238
    %v1240 = vrot.slane %v1226, %v1239
    %v1241 = vlaneseq
    %v1242 = vshrl.u32 %v1241, 7
    %v1243 = vsub.s32 0, %v1242
    %v1244 = vrot.slane %v1233, %v1243
    %v1245 = vlaneseq
    %v1246 = vshrl.u32 %v1245, 7
    %v1247 = vsub.s32 0, %v1246
    %v1248 = vrot.slane %v1240, %v1247
    %1249 = vrot.lane.b32.xlu0 %v1244, 32
    %v1250 = vpop.permute.xlu0 %1249
    %1251 = vrot.lane.b32.xlu0 %v1248, 32
    %v1252 = vpop.permute.xlu0 %1251
    %vm1255 = vcmask 253952
    %1256 = vst.msk [vmem:[#allocation3] sm:$0x1] %vm1255, %v1250
    %1257 = vst.msk [vmem:[#allocation3 + $0x8] sm:$0x1] %vm1255, %v1252
    %1258 = vrot.lane.b32.xlu0 %v1217, 32
    %v1259 = vpop.permute.xlu0 %1258
    %v1260 = vsel %vm72, %v1259, 0
    %1262 = vmatprep.subr.mxu0 0.0
    %1263 = vmatpush1.msra.mxu0 %v55
    %1264 = vmatprep.subr.mxu0 0.0
    %1265 = vmatpush1.msra.mxu0 %v56
    %1266 = vmatprep.subr.mxu0 0.0
    %1267 = vmatpush1.msra.mxu0 %v57
    %1268 = vmatprep.subr.mxu0 0.0
    %1269 = vmatpush1.msra.mxu0 %v58
    %1270 = vmatprep.subr.mxu0 0.0
    %1271 = vmatpush1.msra.mxu0 0.0
    %1272 = vmatprep.subr.mxu0 0.0
    %1273 = vmatpush1.msra.mxu0 0.0
    %1274 = vmatprep.subr.mxu0 0.0
    %1275 = vmatpush1.msra.mxu0 0.0
    %1276 = vmatprep.subr.mxu0 0.0
    %1277 = vmatpush1.msra.mxu0 0.0
    %1278 = vmatprep.subr.mxu0 0.0
    %1279 = vmatpush1.msra.mxu0 0.0
    %1280 = vmatprep.subr.mxu0 0.0
    %1281 = vmatpush1.msra.mxu0 0.0
    %1282 = vmatprep.subr.mxu0 0.0
    %1283 = vmatpush1.msra.mxu0 0.0
    %1284 = vmatprep.subr.mxu0 0.0
    %1285 = vmatpush1.msra.mxu0 0.0
    %1286 = vmatprep.subr.mxu0 0.0
    %1287 = vmatpush1.msra.mxu0 0.0
    %1288 = vmatprep.subr.mxu0 0.0
    %1289 = vmatpush1.msra.mxu0 0.0
    %1290 = vmatprep.subr.mxu0 0.0
    %1291 = vmatpush1.msra.mxu0 0.0
    %1292 = vmatprep.subr.mxu0 0.0
    %1293 = vmatpush1.msra.mxu0 0.0
    %1294 = vmatprep.subr.mxu0 0.0
    %1295 = vmatpush1.msra.mxu0 0.0
    %1296 = vmatprep.subr.mxu0 0.0
    %1297 = vmatpush1.msra.mxu0 0.0
    %1298 = vmatprep.subr.mxu0 0.0
    %1299 = vmatpush1.msra.mxu0 0.0
    %1300 = vmatprep.subr.mxu0 0.0
    %1301 = vmatpush1.msra.mxu0 0.0
    %1302 = vmatprep.subr.mxu0 0.0
    %1303 = vmatpush1.msra.mxu0 0.0
    %1304 = vmatprep.subr.mxu0 0.0
    %1305 = vmatpush1.msra.mxu0 0.0
    %1306 = vmatprep.subr.mxu0 0.0
    %1307 = vmatpush1.msra.mxu0 0.0
    %1308 = vmatprep.subr.mxu0 0.0
    %1309 = vmatpush1.msra.mxu0 0.0
    %1310 = vmatprep.subr.mxu0 0.0
    %1311 = vmatpush1.msra.mxu0 0.0
    %1312 = vmatprep.subr.mxu0 0.0
    %1313 = vmatpush1.msra.mxu0 0.0
    %1314 = vmatprep.subr.mxu0 0.0
    %1315 = vmatpush1.msra.mxu0 0.0
    %1316 = vmatprep.subr.mxu0 0.0
    %1317 = vmatpush1.msra.mxu0 0.0
    %1318 = vmatprep.subr.mxu0 0.0
    %1319 = vmatpush1.msra.mxu0 0.0
    %1320 = vmatprep.subr.mxu0 0.0
    %1321 = vmatpush1.msra.mxu0 0.0
    %1322 = vmatprep.subr.mxu0 0.0
    %1323 = vmatpush1.msra.mxu0 0.0
    %1324 = vmatprep.subr.mxu0 0.0
    %1325 = vmatpush1.msra.mxu0 0.0
    %1326 = vmatprep.mubr.f32.mxu0 0.0
    %1327 = vmatmul.mubr.f32.gmra.mrb[0].mxu0 %v1260
    %v1328 = vpop.f32.mrb[0].mxu0
    %v1329 = vadd.f32 0.0, %v1328
    %v1330 = vpop.f32.mrb[0].mxu0
    %1331 = vdwg.mxu0
    %v1333 = vrot.slane %v1329, 6
    %v1335 = vadd.f32 %v1115, %v1333
    %v1336 = vxor.u32 %v1335, 2147483648
    %v1337 = vmul.f32 %v1336, 1.442695
    %v1338 = vpow.pop %v1337
    %v1339 = vadd.f32 %v1338, 1.0
    %v1340 = vrcp.pop %v1339
    %v1341 = vmul.f32 1.0, %v1340
    %v1342 = vtanh.pop %v1335
    %v1344 = vrot.slane %v1211, 6
    %v1346 = vmul.f32 %v1341, %v1344
    %1348 = vrot.lane.b32.xlu0 %v1342, 64
    %v1349 = vpop.permute.xlu0 %1348
    %v1351 = vmul.f32 %v1341, %v1349
    %1353 = vrot.lane.b32.xlu0 %v1351, 32
    %v1354 = vpop.permute.xlu0 %1353
    %v1356 = vadd.f32 %v1346, %v1354
    %v1357 = vtanh.pop %v1356
    %1359 = vrot.lane.b32.xlu0 %v1357, 64
    %v1360 = vpop.permute.xlu0 %1359
    %v1362 = vmul.f32 %v1341, %v1360
    %v1365 = vunpack.c.l.s4 1966171168
    %v1366 = vunpack.c.0.s8 %v1365
    %v1367 = vlaneseq
    %v1368 = vshrl.u32 %v1367, 7
    %v1369 = vsub.s32 %v1366, %v1368
    %v1370 = vrot.slane %v1362, %v1369
    %v1371 = vcombine.high %v1370, %v1370
    %v1373 = vunpack.c.l.s4 1966171168
    %v1374 = vunpack.c.0.s8 %v1373
    %v1375 = vlaneseq
    %v1376 = vshrl.u32 %v1375, 7
    %v1377 = vsub.s32 %v1374, %v1376
    %v1378 = vrot.slane %v1370, %v1377
    %v1380 = vunpack.c.l.s4 1966171168
    %v1381 = vunpack.c.0.s8 %v1380
    %v1382 = vlaneseq
    %v1383 = vshrl.u32 %v1382, 7
    %v1384 = vsub.s32 %v1381, %v1383
    %v1385 = vrot.slane %v1371, %v1384
    %v1386 = vcombine.high %v1378, %v1378
    %v1387 = vcombine.high %v1385, %v1385
    %v1388 = vlaneseq
    %v1389 = vshrl.u32 %v1388, 7
    %v1390 = vsub.s32 0, %v1389
    %v1391 = vrot.slane %v1386, %v1390
    %v1392 = vlaneseq
    %v1393 = vshrl.u32 %v1392, 7
    %v1394 = vsub.s32 0, %v1393
    %v1395 = vrot.slane %v1387, %v1394
    %1396 = vrot.lane.b32.xlu0 %v1391, 32
    %v1397 = vpop.permute.xlu0 %1396
    %1398 = vrot.lane.b32.xlu0 %v1395, 32
    %v1399 = vpop.permute.xlu0 %1398
    %1402 = vst.msk [vmem:[#allocation3 + $0x1] sm:$0x1] %vm1255, %v1397
    %1403 = vst.msk [vmem:[#allocation3 + $0x9] sm:$0x1] %vm1255, %v1399
    %v1404 = vrot.slane %v1362, 2
    %1405 = vrot.lane.b32.xlu0 %v1404, 32
    %v1406 = vpop.permute.xlu0 %1405
    %v1407 = vsel %vm72, %v1406, 0
    %1409 = vmatprep.subr.mxu0 0.0
    %1410 = vmatpush1.msra.mxu0 %v55
    %1411 = vmatprep.subr.mxu0 0.0
    %1412 = vmatpush1.msra.mxu0 %v56
    %1413 = vmatprep.subr.mxu0 0.0
    %1414 = vmatpush1.msra.mxu0 %v57
    %1415 = vmatprep.subr.mxu0 0.0
    %1416 = vmatpush1.msra.mxu0 %v58
    %1417 = vmatprep.subr.mxu0 0.0
    %1418 = vmatpush1.msra.mxu0 0.0
    %1419 = vmatprep.subr.mxu0 0.0
    %1420 = vmatpush1.msra.mxu0 0.0
    %1421 = vmatprep.subr.mxu0 0.0
    %1422 = vmatpush1.msra.mxu0 0.0
    %1423 = vmatprep.subr.mxu0 0.0
    %1424 = vmatpush1.msra.mxu0 0.0
    %1425 = vmatprep.subr.mxu0 0.0
    %1426 = vmatpush1.msra.mxu0 0.0
    %1427 = vmatprep.subr.mxu0 0.0
    %1428 = vmatpush1.msra.mxu0 0.0
    %1429 = vmatprep.subr.mxu0 0.0
    %1430 = vmatpush1.msra.mxu0 0.0
    %1431 = vmatprep.subr.mxu0 0.0
    %1432 = vmatpush1.msra.mxu0 0.0
    %1433 = vmatprep.subr.mxu0 0.0
    %1434 = vmatpush1.msra.mxu0 0.0
    %1435 = vmatprep.subr.mxu0 0.0
    %1436 = vmatpush1.msra.mxu0 0.0
    %1437 = vmatprep.subr.mxu0 0.0
    %1438 = vmatpush1.msra.mxu0 0.0
    %1439 = vmatprep.subr.mxu0 0.0
    %1440 = vmatpush1.msra.mxu0 0.0
    %1441 = vmatprep.subr.mxu0 0.0
    %1442 = vmatpush1.msra.mxu0 0.0
    %1443 = vmatprep.subr.mxu0 0.0
    %1444 = vmatpush1.msra.mxu0 0.0
    %1445 = vmatprep.subr.mxu0 0.0
    %1446 = vmatpush1.msra.mxu0 0.0
    %1447 = vmatprep.subr.mxu0 0.0
    %1448 = vmatpush1.msra.mxu0 0.0
    %1449 = vmatprep.subr.mxu0 0.0
    %1450 = vmatpush1.msra.mxu0 0.0
    %1451 = vmatprep.subr.mxu0 0.0
    %1452 = vmatpush1.msra.mxu0 0.0
    %1453 = vmatprep.subr.mxu0 0.0
    %1454 = vmatpush1.msra.mxu0 0.0
    %1455 = vmatprep.subr.mxu0 0.0
    %1456 = vmatpush1.msra.mxu0 0.0
    %1457 = vmatprep.subr.mxu0 0.0
    %1458 = vmatpush1.msra.mxu0 0.0
    %1459 = vmatprep.subr.mxu0 0.0
    %1460 = vmatpush1.msra.mxu0 0.0
    %1461 = vmatprep.subr.mxu0 0.0
    %1462 = vmatpush1.msra.mxu0 0.0
    %1463 = vmatprep.subr.mxu0 0.0
    %1464 = vmatpush1.msra.mxu0 0.0
    %1465 = vmatprep.subr.mxu0 0.0
    %1466 = vmatpush1.msra.mxu0 0.0
    %1467 = vmatprep.subr.mxu0 0.0
    %1468 = vmatpush1.msra.mxu0 0.0
    %1469 = vmatprep.subr.mxu0 0.0
    %1470 = vmatpush1.msra.mxu0 0.0
    %1471 = vmatprep.subr.mxu0 0.0
    %1472 = vmatpush1.msra.mxu0 0.0
    %1473 = vmatprep.mubr.f32.mxu0 0.0
    %1474 = vmatmul.mubr.f32.gmra.mrb[0].mxu0 %v1407
    %v1475 = vpop.f32.mrb[0].mxu0
    %v1476 = vadd.f32 0.0, %v1475
    %v1477 = vpop.f32.mrb[0].mxu0
    %1478 = vdwg.mxu0
    %v1480 = vrot.slane %v1476, 4
    %v1482 = vadd.f32 %v1115, %v1480
    %v1483 = vxor.u32 %v1482, 2147483648
    %v1484 = vmul.f32 %v1483, 1.442695
    %v1485 = vpow.pop %v1484
    %v1486 = vadd.f32 %v1485, 1.0
    %v1487 = vrcp.pop %v1486
    %v1488 = vmul.f32 1.0, %v1487
    %v1489 = vtanh.pop %v1482
    %v1491 = vrot.slane %v1356, 6
    %v1493 = vmul.f32 %v1488, %v1491
    %1495 = vrot.lane.b32.xlu0 %v1489, 64
    %v1496 = vpop.permute.xlu0 %1495
    %v1498 = vmul.f32 %v1488, %v1496
    %1500 = vrot.lane.b32.xlu0 %v1498, 32
    %v1501 = vpop.permute.xlu0 %1500
    %v1503 = vadd.f32 %v1493, %v1501
    %v1504 = vtanh.pop %v1503
    %1506 = vrot.lane.b32.xlu0 %v1504, 64
    %v1507 = vpop.permute.xlu0 %1506
    %v1509 = vmul.f32 %v1488, %v1507
    %v1511 = vcombine.high %v1509, %v1509
    %v1513 = vunpack.c.l.s4 1966171168
    %v1514 = vunpack.c.0.s8 %v1513
    %v1515 = vlaneseq
    %v1516 = vshrl.u32 %v1515, 7
    %v1517 = vsub.s32 %v1514, %v1516
    %v1518 = vrot.slane %v1511, %v1517
    %v1519 = vcombine.high %v1518, %v1518
    %v1521 = vunpack.c.l.s4 1966171168
    %v1522 = vunpack.c.0.s8 %v1521
    %v1523 = vlaneseq
    %v1524 = vshrl.u32 %v1523, 7
    %v1525 = vsub.s32 %v1522, %v1524
    %v1526 = vrot.slane %v1518, %v1525
    %v1528 = vunpack.c.l.s4 1966171168
    %v1529 = vunpack.c.0.s8 %v1528
    %v1530 = vlaneseq
    %v1531 = vshrl.u32 %v1530, 7
    %v1532 = vsub.s32 %v1529, %v1531
    %v1533 = vrot.slane %v1519, %v1532
    %v1534 = vlaneseq
    %v1535 = vshrl.u32 %v1534, 7
    %v1536 = vsub.s32 0, %v1535
    %v1537 = vrot.slane %v1526, %v1536
    %v1538 = vlaneseq
    %v1539 = vshrl.u32 %v1538, 7
    %v1540 = vsub.s32 0, %v1539
    %v1541 = vrot.slane %v1533, %v1540
    %1542 = vrot.lane.b32.xlu0 %v1537, 32
    %v1543 = vpop.permute.xlu0 %1542
    %1544 = vrot.lane.b32.xlu0 %v1541, 32
    %v1545 = vpop.permute.xlu0 %1544
    %1548 = vst.msk [vmem:[#allocation3 + $0x2] sm:$0x1] %vm1255, %v1543
    %1549 = vst.msk [vmem:[#allocation3 + $0xa] sm:$0x1] %vm1255, %v1545
    %v1550 = vrot.slane %v1509, 4
    %1551 = vrot.lane.b32.xlu0 %v1550, 32
    %v1552 = vpop.permute.xlu0 %1551
    %v1553 = vsel %vm72, %v1552, 0
    %1555 = vmatprep.subr.mxu0 0.0
    %1556 = vmatpush1.msra.mxu0 %v55
    %1557 = vmatprep.subr.mxu0 0.0
    %1558 = vmatpush1.msra.mxu0 %v56
    %1559 = vmatprep.subr.mxu0 0.0
    %1560 = vmatpush1.msra.mxu0 %v57
    %1561 = vmatprep.subr.mxu0 0.0
    %1562 = vmatpush1.msra.mxu0 %v58
    %1563 = vmatprep.subr.mxu0 0.0
    %1564 = vmatpush1.msra.mxu0 0.0
    %1565 = vmatprep.subr.mxu0 0.0
    %1566 = vmatpush1.msra.mxu0 0.0
    %1567 = vmatprep.subr.mxu0 0.0
    %1568 = vmatpush1.msra.mxu0 0.0
    %1569 = vmatprep.subr.mxu0 0.0
    %1570 = vmatpush1.msra.mxu0 0.0
    %1571 = vmatprep.subr.mxu0 0.0
    %1572 = vmatpush1.msra.mxu0 0.0
    %1573 = vmatprep.subr.mxu0 0.0
    %1574 = vmatpush1.msra.mxu0 0.0
    %1575 = vmatprep.subr.mxu0 0.0
    %1576 = vmatpush1.msra.mxu0 0.0
    %1577 = vmatprep.subr.mxu0 0.0
    %1578 = vmatpush1.msra.mxu0 0.0
    %1579 = vmatprep.subr.mxu0 0.0
    %1580 = vmatpush1.msra.mxu0 0.0
    %1581 = vmatprep.subr.mxu0 0.0
    %1582 = vmatpush1.msra.mxu0 0.0
    %1583 = vmatprep.subr.mxu0 0.0
    %1584 = vmatpush1.msra.mxu0 0.0
    %1585 = vmatprep.subr.mxu0 0.0
    %1586 = vmatpush1.msra.mxu0 0.0
    %1587 = vmatprep.subr.mxu0 0.0
    %1588 = vmatpush1.msra.mxu0 0.0
    %1589 = vmatprep.subr.mxu0 0.0
    %1590 = vmatpush1.msra.mxu0 0.0
    %1591 = vmatprep.subr.mxu0 0.0
    %1592 = vmatpush1.msra.mxu0 0.0
    %1593 = vmatprep.subr.mxu0 0.0
    %1594 = vmatpush1.msra.mxu0 0.0
    %1595 = vmatprep.subr.mxu0 0.0
    %1596 = vmatpush1.msra.mxu0 0.0
    %1597 = vmatprep.subr.mxu0 0.0
    %1598 = vmatpush1.msra.mxu0 0.0
    %1599 = vmatprep.subr.mxu0 0.0
    %1600 = vmatpush1.msra.mxu0 0.0
    %1601 = vmatprep.subr.mxu0 0.0
    %1602 = vmatpush1.msra.mxu0 0.0
    %1603 = vmatprep.subr.mxu0 0.0
    %1604 = vmatpush1.msra.mxu0 0.0
    %1605 = vmatprep.subr.mxu0 0.0
    %1606 = vmatpush1.msra.mxu0 0.0
    %1607 = vmatprep.subr.mxu0 0.0
    %1608 = vmatpush1.msra.mxu0 0.0
    %1609 = vmatprep.subr.mxu0 0.0
    %1610 = vmatpush1.msra.mxu0 0.0
    %1611 = vmatprep.subr.mxu0 0.0
    %1612 = vmatpush1.msra.mxu0 0.0
    %1613 = vmatprep.subr.mxu0 0.0
    %1614 = vmatpush1.msra.mxu0 0.0
    %1615 = vmatprep.subr.mxu0 0.0
    %1616 = vmatpush1.msra.mxu0 0.0
    %1617 = vmatprep.subr.mxu0 0.0
    %1618 = vmatpush1.msra.mxu0 0.0
    %1619 = vmatprep.mubr.f32.mxu0 0.0
    %1620 = vmatmul.mubr.f32.gmra.mrb[0].mxu0 %v1553
    %v1621 = vpop.f32.mrb[0].mxu0
    %v1622 = vadd.f32 0.0, %v1621
    %v1623 = vpop.f32.mrb[0].mxu0
    %1624 = vdwg.mxu0
    %v1626 = vrot.slane %v1622, 2
    %v1628 = vadd.f32 %v1115, %v1626
    %v1629 = vxor.u32 %v1628, 2147483648
    %v1630 = vmul.f32 %v1629, 1.442695
    %v1631 = vpow.pop %v1630
    %v1632 = vadd.f32 %v1631, 1.0
    %v1633 = vrcp.pop %v1632
    %v1634 = vmul.f32 1.0, %v1633
    %v1635 = vtanh.pop %v1628
    %v1637 = vrot.slane %v1503, 6
    %v1639 = vmul.f32 %v1634, %v1637
    %1641 = vrot.lane.b32.xlu0 %v1635, 64
    %v1642 = vpop.permute.xlu0 %1641
    %v1644 = vmul.f32 %v1634, %v1642
    %1646 = vrot.lane.b32.xlu0 %v1644, 32
    %v1647 = vpop.permute.xlu0 %1646
    %v1649 = vadd.f32 %v1639, %v1647
    %v1650 = vtanh.pop %v1649
    %1652 = vrot.lane.b32.xlu0 %v1650, 64
    %v1653 = vpop.permute.xlu0 %1652
    %v1655 = vmul.f32 %v1634, %v1653
    %v1657 = vcombine.high %v1655, %v1655
    %v1659 = vunpack.c.l.s4 1966171168
    %v1660 = vunpack.c.0.s8 %v1659
    %v1661 = vlaneseq
    %v1662 = vshrl.u32 %v1661, 7
    %v1663 = vsub.s32 %v1660, %v1662
    %v1664 = vrot.slane %v1657, %v1663
    %v1665 = vcombine.high %v1664, %v1664
    %v1667 = vunpack.c.l.s4 1966171168
    %v1668 = vunpack.c.0.s8 %v1667
    %v1669 = vlaneseq
    %v1670 = vshrl.u32 %v1669, 7
    %v1671 = vsub.s32 %v1668, %v1670
    %v1672 = vrot.slane %v1664, %v1671
    %v1674 = vunpack.c.l.s4 1966171168
    %v1675 = vunpack.c.0.s8 %v1674
    %v1676 = vlaneseq
    %v1677 = vshrl.u32 %v1676, 7
    %v1678 = vsub.s32 %v1675, %v1677
    %v1679 = vrot.slane %v1665, %v1678
    %v1680 = vcombine.high %v1672, %v1672
    %v1681 = vcombine.high %v1679, %v1679
    %v1682 = vlaneseq
    %v1683 = vshrl.u32 %v1682, 7
    %v1684 = vsub.s32 0, %v1683
    %v1685 = vrot.slane %v1680, %v1684
    %v1686 = vlaneseq
    %v1687 = vshrl.u32 %v1686, 7
    %v1688 = vsub.s32 0, %v1687
    %v1689 = vrot.slane %v1681, %v1688
    %1690 = vrot.lane.b32.xlu0 %v1685, 32
    %v1691 = vpop.permute.xlu0 %1690
    %1692 = vrot.lane.b32.xlu0 %v1689, 32
    %v1693 = vpop.permute.xlu0 %1692
    %1696 = vst.msk [vmem:[#allocation3 + $0x3] sm:$0x1] %vm1255, %v1691
    %1697 = vst.msk [vmem:[#allocation3 + $0xb] sm:$0x1] %vm1255, %v1693
    %v1698 = vrot.slane %v1655, 6
    %1699 = vrot.lane.b32.xlu0 %v1698, 32
    %v1700 = vpop.permute.xlu0 %1699
    %v1701 = vsel %vm72, %v1700, 0
    %1703 = vmatprep.subr.mxu0 0.0
    %1704 = vmatpush1.msra.mxu0 %v55
    %1705 = vmatprep.subr.mxu0 0.0
    %1706 = vmatpush1.msra.mxu0 %v56
    %1707 = vmatprep.subr.mxu0 0.0
    %1708 = vmatpush1.msra.mxu0 %v57
    %1709 = vmatprep.subr.mxu0 0.0
    %1710 = vmatpush1.msra.mxu0 %v58
    %1711 = vmatprep.subr.mxu0 0.0
    %1712 = vmatpush1.msra.mxu0 0.0
    %1713 = vmatprep.subr.mxu0 0.0
    %1714 = vmatpush1.msra.mxu0 0.0
    %1715 = vmatprep.subr.mxu0 0.0
    %1716 = vmatpush1.msra.mxu0 0.0
    %1717 = vmatprep.subr.mxu0 0.0
    %1718 = vmatpush1.msra.mxu0 0.0
    %1719 = vmatprep.subr.mxu0 0.0
    %1720 = vmatpush1.msra.mxu0 0.0
    %1721 = vmatprep.subr.mxu0 0.0
    %1722 = vmatpush1.msra.mxu0 0.0
    %1723 = vmatprep.subr.mxu0 0.0
    %1724 = vmatpush1.msra.mxu0 0.0
    %1725 = vmatprep.subr.mxu0 0.0
    %1726 = vmatpush1.msra.mxu0 0.0
    %1727 = vmatprep.subr.mxu0 0.0
    %1728 = vmatpush1.msra.mxu0 0.0
    %1729 = vmatprep.subr.mxu0 0.0
    %1730 = vmatpush1.msra.mxu0 0.0
    %1731 = vmatprep.subr.mxu0 0.0
    %1732 = vmatpush1.msra.mxu0 0.0
    %1733 = vmatprep.subr.mxu0 0.0
    %1734 = vmatpush1.msra.mxu0 0.0
    %1735 = vmatprep.subr.mxu0 0.0
    %1736 = vmatpush1.msra.mxu0 0.0
    %1737 = vmatprep.subr.mxu0 0.0
    %1738 = vmatpush1.msra.mxu0 0.0
    %1739 = vmatprep.subr.mxu0 0.0
    %1740 = vmatpush1.msra.mxu0 0.0
    %1741 = vmatprep.subr.mxu0 0.0
    %1742 = vmatpush1.msra.mxu0 0.0
    %1743 = vmatprep.subr.mxu0 0.0
    %1744 = vmatpush1.msra.mxu0 0.0
    %1745 = vmatprep.subr.mxu0 0.0
    %1746 = vmatpush1.msra.mxu0 0.0
    %1747 = vmatprep.subr.mxu0 0.0
    %1748 = vmatpush1.msra.mxu0 0.0
    %1749 = vmatprep.subr.mxu0 0.0
    %1750 = vmatpush1.msra.mxu0 0.0
    %1751 = vmatprep.subr.mxu0 0.0
    %1752 = vmatpush1.msra.mxu0 0.0
    %1753 = vmatprep.subr.mxu0 0.0
    %1754 = vmatpush1.msra.mxu0 0.0
    %1755 = vmatprep.subr.mxu0 0.0
    %1756 = vmatpush1.msra.mxu0 0.0
    %1757 = vmatprep.subr.mxu0 0.0
    %1758 = vmatpush1.msra.mxu0 0.0
    %1759 = vmatprep.subr.mxu0 0.0
    %1760 = vmatpush1.msra.mxu0 0.0
    %1761 = vmatprep.subr.mxu0 0.0
    %1762 = vmatpush1.msra.mxu0 0.0
    %1763 = vmatprep.subr.mxu0 0.0
    %1764 = vmatpush1.msra.mxu0 0.0
    %1765 = vmatprep.subr.mxu0 0.0
    %1766 = vmatpush1.msra.mxu0 0.0
    %1767 = vmatprep.mubr.f32.mxu0 0.0
    %1768 = vmatmul.mubr.f32.gmra.mrb[0].mxu0 %v1701
    %v1769 = vpop.f32.mrb[0].mxu0
    %v1770 = vadd.f32 0.0, %v1769
    %v1771 = vpop.f32.mrb[0].mxu0
    %1772 = vdwg.mxu0
    %v1773 = vadd.f32 %v1120, %v1770
    %v1774 = vxor.u32 %v1773, 2147483648
    %v1775 = vmul.f32 %v1774, 1.442695
    %v1776 = vpow.pop %v1775
    %v1777 = vadd.f32 %v1776, 1.0
    %v1778 = vrcp.pop %v1777
    %v1779 = vmul.f32 1.0, %v1778
    %v1780 = vtanh.pop %v1773
    %v1782 = vrot.slane %v1649, 6
    %v1784 = vmul.f32 %v1779, %v1782
    %1786 = vrot.lane.b32.xlu0 %v1780, 64
    %v1787 = vpop.permute.xlu0 %1786
    %v1789 = vmul.f32 %v1779, %v1787
    %1791 = vrot.lane.b32.xlu0 %v1789, 32
    %v1792 = vpop.permute.xlu0 %1791
    %v1794 = vadd.f32 %v1784, %v1792
    %v1795 = vtanh.pop %v1794
    %1797 = vrot.lane.b32.xlu0 %v1795, 64
    %v1798 = vpop.permute.xlu0 %1797
    %v1800 = vmul.f32 %v1779, %v1798
    %v1803 = vunpack.c.l.s4 1966171168
    %v1804 = vunpack.c.0.s8 %v1803
    %v1805 = vlaneseq
    %v1806 = vshrl.u32 %v1805, 7
    %v1807 = vsub.s32 %v1804, %v1806
    %v1808 = vrot.slane %v1800, %v1807
    %v1809 = vcombine.high %v1808, %v1808
    %v1811 = vunpack.c.l.s4 1966171168
    %v1812 = vunpack.c.0.s8 %v1811
    %v1813 = vlaneseq
    %v1814 = vshrl.u32 %v1813, 7
    %v1815 = vsub.s32 %v1812, %v1814
    %v1816 = vrot.slane %v1808, %v1815
    %v1818 = vunpack.c.l.s4 1966171168
    %v1819 = vunpack.c.0.s8 %v1818
    %v1820 = vlaneseq
    %v1821 = vshrl.u32 %v1820, 7
    %v1822 = vsub.s32 %v1819, %v1821
    %v1823 = vrot.slane %v1809, %v1822
    %v1824 = vlaneseq
    %v1825 = vshrl.u32 %v1824, 7
    %v1826 = vsub.s32 0, %v1825
    %v1827 = vrot.slane %v1816, %v1826
    %v1828 = vlaneseq
    %v1829 = vshrl.u32 %v1828, 7
    %v1830 = vsub.s32 0, %v1829
    %v1831 = vrot.slane %v1823, %v1830
    %1832 = vrot.lane.b32.xlu0 %v1827, 32
    %v1833 = vpop.permute.xlu0 %1832
    %1834 = vrot.lane.b32.xlu0 %v1831, 32
    %v1835 = vpop.permute.xlu0 %1834
    %1838 = vst.msk [vmem:[#allocation3 + $0x4] sm:$0x1] %vm1255, %v1833
    %1839 = vst.msk [vmem:[#allocation3 + $0xc] sm:$0x1] %vm1255, %v1835
    %1840 = vrot.lane.b32.xlu0 %v1800, 32
    %v1841 = vpop.permute.xlu0 %1840
    %v1842 = vsel %vm72, %v1841, 0
    %1844 = vmatprep.subr.mxu0 0.0
    %1845 = vmatpush1.msra.mxu0 %v55
    %1846 = vmatprep.subr.mxu0 0.0
    %1847 = vmatpush1.msra.mxu0 %v56
    %1848 = vmatprep.subr.mxu0 0.0
    %1849 = vmatpush1.msra.mxu0 %v57
    %1850 = vmatprep.subr.mxu0 0.0
    %1851 = vmatpush1.msra.mxu0 %v58
    %1852 = vmatprep.subr.mxu0 0.0
    %1853 = vmatpush1.msra.mxu0 0.0
    %1854 = vmatprep.subr.mxu0 0.0
    %1855 = vmatpush1.msra.mxu0 0.0
    %1856 = vmatprep.subr.mxu0 0.0
    %1857 = vmatpush1.msra.mxu0 0.0
    %1858 = vmatprep.subr.mxu0 0.0
    %1859 = vmatpush1.msra.mxu0 0.0
    %1860 = vmatprep.subr.mxu0 0.0
    %1861 = vmatpush1.msra.mxu0 0.0
    %1862 = vmatprep.subr.mxu0 0.0
    %1863 = vmatpush1.msra.mxu0 0.0
    %1864 = vmatprep.subr.mxu0 0.0
    %1865 = vmatpush1.msra.mxu0 0.0
    %1866 = vmatprep.subr.mxu0 0.0
    %1867 = vmatpush1.msra.mxu0 0.0
    %1868 = vmatprep.subr.mxu0 0.0
    %1869 = vmatpush1.msra.mxu0 0.0
    %1870 = vmatprep.subr.mxu0 0.0
    %1871 = vmatpush1.msra.mxu0 0.0
    %1872 = vmatprep.subr.mxu0 0.0
    %1873 = vmatpush1.msra.mxu0 0.0
    %1874 = vmatprep.subr.mxu0 0.0
    %1875 = vmatpush1.msra.mxu0 0.0
    %1876 = vmatprep.subr.mxu0 0.0
    %1877 = vmatpush1.msra.mxu0 0.0
    %1878 = vmatprep.subr.mxu0 0.0
    %1879 = vmatpush1.msra.mxu0 0.0
    %1880 = vmatprep.subr.mxu0 0.0
    %1881 = vmatpush1.msra.mxu0 0.0
    %1882 = vmatprep.subr.mxu0 0.0
    %1883 = vmatpush1.msra.mxu0 0.0
    %1884 = vmatprep.subr.mxu0 0.0
    %1885 = vmatpush1.msra.mxu0 0.0
    %1886 = vmatprep.subr.mxu0 0.0
    %1887 = vmatpush1.msra.mxu0 0.0
    %1888 = vmatprep.subr.mxu0 0.0
    %1889 = vmatpush1.msra.mxu0 0.0
    %1890 = vmatprep.subr.mxu0 0.0
    %1891 = vmatpush1.msra.mxu0 0.0
    %1892 = vmatprep.subr.mxu0 0.0
    %1893 = vmatpush1.msra.mxu0 0.0
    %1894 = vmatprep.subr.mxu0 0.0
    %1895 = vmatpush1.msra.mxu0 0.0
    %1896 = vmatprep.subr.mxu0 0.0
    %1897 = vmatpush1.msra.mxu0 0.0
    %1898 = vmatprep.subr.mxu0 0.0
    %1899 = vmatpush1.msra.mxu0 0.0
    %1900 = vmatprep.subr.mxu0 0.0
    %1901 = vmatpush1.msra.mxu0 0.0
    %1902 = vmatprep.subr.mxu0 0.0
    %1903 = vmatpush1.msra.mxu0 0.0
    %1904 = vmatprep.subr.mxu0 0.0
    %1905 = vmatpush1.msra.mxu0 0.0
    %1906 = vmatprep.subr.mxu0 0.0
    %1907 = vmatpush1.msra.mxu0 0.0
    %1908 = vmatprep.mubr.f32.mxu0 0.0
    %1909 = vmatmul.mubr.f32.gmra.mrb[0].mxu0 %v1842
    %v1910 = vpop.f32.mrb[0].mxu0
    %v1911 = vadd.f32 0.0, %v1910
    %v1912 = vpop.f32.mrb[0].mxu0
    %1913 = vdwg.mxu0
    %v1915 = vrot.slane %v1911, 6
    %v1917 = vadd.f32 %v1120, %v1915
    %v1918 = vxor.u32 %v1917, 2147483648
    %v1919 = vmul.f32 %v1918, 1.442695
    %v1920 = vpow.pop %v1919
    %v1921 = vadd.f32 %v1920, 1.0
    %v1922 = vrcp.pop %v1921
    %v1923 = vmul.f32 1.0, %v1922
    %v1924 = vtanh.pop %v1917
    %v1926 = vrot.slane %v1794, 6
    %v1928 = vmul.f32 %v1923, %v1926
    %1930 = vrot.lane.b32.xlu0 %v1924, 64
    %v1931 = vpop.permute.xlu0 %1930
    %v1933 = vmul.f32 %v1923, %v1931
    %1935 = vrot.lane.b32.xlu0 %v1933, 32
    %v1936 = vpop.permute.xlu0 %1935
    %v1938 = vadd.f32 %v1928, %v1936
    %v1939 = vtanh.pop %v1938
    %1941 = vrot.lane.b32.xlu0 %v1939, 64
    %v1942 = vpop.permute.xlu0 %1941
    %v1944 = vmul.f32 %v1923, %v1942
    %v1947 = vunpack.c.l.s4 1966171168
    %v1948 = vunpack.c.0.s8 %v1947
    %v1949 = vlaneseq
    %v1950 = vshrl.u32 %v1949, 7
    %v1951 = vsub.s32 %v1948, %v1950
    %v1952 = vrot.slane %v1944, %v1951
    %v1953 = vcombine.high %v1952, %v1952
    %v1955 = vunpack.c.l.s4 1966171168
    %v1956 = vunpack.c.0.s8 %v1955
    %v1957 = vlaneseq
    %v1958 = vshrl.u32 %v1957, 7
    %v1959 = vsub.s32 %v1956, %v1958
    %v1960 = vrot.slane %v1952, %v1959
    %v1962 = vunpack.c.l.s4 1966171168
    %v1963 = vunpack.c.0.s8 %v1962
    %v1964 = vlaneseq
    %v1965 = vshrl.u32 %v1964, 7
    %v1966 = vsub.s32 %v1963, %v1965
    %v1967 = vrot.slane %v1953, %v1966
    %v1968 = vcombine.high %v1960, %v1960
    %v1969 = vcombine.high %v1967, %v1967
    %v1970 = vlaneseq
    %v1971 = vshrl.u32 %v1970, 7
    %v1972 = vsub.s32 0, %v1971
    %v1973 = vrot.slane %v1968, %v1972
    %v1974 = vlaneseq
    %v1975 = vshrl.u32 %v1974, 7
    %v1976 = vsub.s32 0, %v1975
    %v1977 = vrot.slane %v1969, %v1976
    %1978 = vrot.lane.b32.xlu0 %v1973, 32
    %v1979 = vpop.permute.xlu0 %1978
    %1980 = vrot.lane.b32.xlu0 %v1977, 32
    %v1981 = vpop.permute.xlu0 %1980
    %1984 = vst.msk [vmem:[#allocation3 + $0x5] sm:$0x1] %vm1255, %v1979
    %1985 = vst.msk [vmem:[#allocation3 + $0xd] sm:$0x1] %vm1255, %v1981
    %v1986 = vrot.slane %v1944, 2
    %1987 = vrot.lane.b32.xlu0 %v1986, 32
    %v1988 = vpop.permute.xlu0 %1987
    %v1989 = vsel %vm72, %v1988, 0
    %1991 = vmatprep.subr.mxu0 0.0
    %1992 = vmatpush1.msra.mxu0 %v55
    %1993 = vmatprep.subr.mxu0 0.0
    %1994 = vmatpush1.msra.mxu0 %v56
    %1995 = vmatprep.subr.mxu0 0.0
    %1996 = vmatpush1.msra.mxu0 %v57
    %1997 = vmatprep.subr.mxu0 0.0
    %1998 = vmatpush1.msra.mxu0 %v58
    %1999 = vmatprep.subr.mxu0 0.0
    %2000 = vmatpush1.msra.mxu0 0.0
    %2001 = vmatprep.subr.mxu0 0.0
    %2002 = vmatpush1.msra.mxu0 0.0
    %2003 = vmatprep.subr.mxu0 0.0
    %2004 = vmatpush1.msra.mxu0 0.0
    %2005 = vmatprep.subr.mxu0 0.0
    %2006 = vmatpush1.msra.mxu0 0.0
    %2007 = vmatprep.subr.mxu0 0.0
    %2008 = vmatpush1.msra.mxu0 0.0
    %2009 = vmatprep.subr.mxu0 0.0
    %2010 = vmatpush1.msra.mxu0 0.0
    %2011 = vmatprep.subr.mxu0 0.0
    %2012 = vmatpush1.msra.mxu0 0.0
    %2013 = vmatprep.subr.mxu0 0.0
    %2014 = vmatpush1.msra.mxu0 0.0
    %2015 = vmatprep.subr.mxu0 0.0
    %2016 = vmatpush1.msra.mxu0 0.0
    %2017 = vmatprep.subr.mxu0 0.0
    %2018 = vmatpush1.msra.mxu0 0.0
    %2019 = vmatprep.subr.mxu0 0.0
    %2020 = vmatpush1.msra.mxu0 0.0
    %2021 = vmatprep.subr.mxu0 0.0
    %2022 = vmatpush1.msra.mxu0 0.0
    %2023 = vmatprep.subr.mxu0 0.0
    %2024 = vmatpush1.msra.mxu0 0.0
    %2025 = vmatprep.subr.mxu0 0.0
    %2026 = vmatpush1.msra.mxu0 0.0
    %2027 = vmatprep.subr.mxu0 0.0
    %2028 = vmatpush1.msra.mxu0 0.0
    %2029 = vmatprep.subr.mxu0 0.0
    %2030 = vmatpush1.msra.mxu0 0.0
    %2031 = vmatprep.subr.mxu0 0.0
    %2032 = vmatpush1.msra.mxu0 0.0
    %2033 = vmatprep.subr.mxu0 0.0
    %2034 = vmatpush1.msra.mxu0 0.0
    %2035 = vmatprep.subr.mxu0 0.0
    %2036 = vmatpush1.msra.mxu0 0.0
    %2037 = vmatprep.subr.mxu0 0.0
    %2038 = vmatpush1.msra.mxu0 0.0
    %2039 = vmatprep.subr.mxu0 0.0
    %2040 = vmatpush1.msra.mxu0 0.0
    %2041 = vmatprep.subr.mxu0 0.0
    %2042 = vmatpush1.msra.mxu0 0.0
    %2043 = vmatprep.subr.mxu0 0.0
    %2044 = vmatpush1.msra.mxu0 0.0
    %2045 = vmatprep.subr.mxu0 0.0
    %2046 = vmatpush1.msra.mxu0 0.0
    %2047 = vmatprep.subr.mxu0 0.0
    %2048 = vmatpush1.msra.mxu0 0.0
    %2049 = vmatprep.subr.mxu0 0.0
    %2050 = vmatpush1.msra.mxu0 0.0
    %2051 = vmatprep.subr.mxu0 0.0
    %2052 = vmatpush1.msra.mxu0 0.0
    %2053 = vmatprep.subr.mxu0 0.0
    %2054 = vmatpush1.msra.mxu0 0.0
    %2055 = vmatprep.mubr.f32.mxu0 0.0
    %2056 = vmatmul.mubr.f32.gmra.mrb[0].mxu0 %v1989
    %v2057 = vpop.f32.mrb[0].mxu0
    %v2058 = vadd.f32 0.0, %v2057
    %v2059 = vpop.f32.mrb[0].mxu0
    %2060 = vdwg.mxu0
    %v2062 = vrot.slane %v2058, 4
    %v2064 = vadd.f32 %v1120, %v2062
    %v2065 = vxor.u32 %v2064, 2147483648
    %v2066 = vmul.f32 %v2065, 1.442695
    %v2067 = vpow.pop %v2066
    %v2068 = vadd.f32 %v2067, 1.0
    %v2069 = vrcp.pop %v2068
    %v2070 = vmul.f32 1.0, %v2069
    %v2071 = vtanh.pop %v2064
    %v2073 = vrot.slane %v1938, 6
    %v2075 = vmul.f32 %v2070, %v2073
    %2077 = vrot.lane.b32.xlu0 %v2071, 64
    %v2078 = vpop.permute.xlu0 %2077
    %v2080 = vmul.f32 %v2070, %v2078
    %2082 = vrot.lane.b32.xlu0 %v2080, 32
    %v2083 = vpop.permute.xlu0 %2082
    %v2085 = vadd.f32 %v2075, %v2083
    %v2086 = vtanh.pop %v2085
    %2088 = vrot.lane.b32.xlu0 %v2086, 64
    %v2089 = vpop.permute.xlu0 %2088
    %v2091 = vmul.f32 %v2070, %v2089
    %v2093 = vcombine.high %v2091, %v2091
    %v2095 = vunpack.c.l.s4 1966171168
    %v2096 = vunpack.c.0.s8 %v2095
    %v2097 = vlaneseq
    %v2098 = vshrl.u32 %v2097, 7
    %v2099 = vsub.s32 %v2096, %v2098
    %v2100 = vrot.slane %v2093, %v2099
    %v2101 = vcombine.high %v2100, %v2100
    %v2103 = vunpack.c.l.s4 1966171168
    %v2104 = vunpack.c.0.s8 %v2103
    %v2105 = vlaneseq
    %v2106 = vshrl.u32 %v2105, 7
    %v2107 = vsub.s32 %v2104, %v2106
    %v2108 = vrot.slane %v2100, %v2107
    %v2110 = vunpack.c.l.s4 1966171168
    %v2111 = vunpack.c.0.s8 %v2110
    %v2112 = vlaneseq
    %v2113 = vshrl.u32 %v2112, 7
    %v2114 = vsub.s32 %v2111, %v2113
    %v2115 = vrot.slane %v2101, %v2114
    %v2116 = vlaneseq
    %v2117 = vshrl.u32 %v2116, 7
    %v2118 = vsub.s32 0, %v2117
    %v2119 = vrot.slane %v2108, %v2118
    %v2120 = vlaneseq
    %v2121 = vshrl.u32 %v2120, 7
    %v2122 = vsub.s32 0, %v2121
    %v2123 = vrot.slane %v2115, %v2122
    %2124 = vrot.lane.b32.xlu0 %v2119, 32
    %v2125 = vpop.permute.xlu0 %2124
    %2126 = vrot.lane.b32.xlu0 %v2123, 32
    %v2127 = vpop.permute.xlu0 %2126
    %2130 = vst.msk [vmem:[#allocation3 + $0x6] sm:$0x1] %vm1255, %v2125
    %2131 = vst.msk [vmem:[#allocation3 + $0xe] sm:$0x1] %vm1255, %v2127
    %v2132 = vrot.slane %v2091, 4
    %2133 = vrot.lane.b32.xlu0 %v2132, 32
    %v2134 = vpop.permute.xlu0 %2133
    %v2135 = vsel %vm72, %v2134, 0
    %2137 = vmatprep.subr.mxu0 0.0
    %2138 = vmatpush1.msra.mxu0 %v55
    %2139 = vmatprep.subr.mxu0 0.0
    %2140 = vmatpush1.msra.mxu0 %v56
    %2141 = vmatprep.subr.mxu0 0.0
    %2142 = vmatpush1.msra.mxu0 %v57
    %2143 = vmatprep.subr.mxu0 0.0
    %2144 = vmatpush1.msra.mxu0 %v58
    %2145 = vmatprep.subr.mxu0 0.0
    %2146 = vmatpush1.msra.mxu0 0.0
    %2147 = vmatprep.subr.mxu0 0.0
    %2148 = vmatpush1.msra.mxu0 0.0
    %2149 = vmatprep.subr.mxu0 0.0
    %2150 = vmatpush1.msra.mxu0 0.0
    %2151 = vmatprep.subr.mxu0 0.0
    %2152 = vmatpush1.msra.mxu0 0.0
    %2153 = vmatprep.subr.mxu0 0.0
    %2154 = vmatpush1.msra.mxu0 0.0
    %2155 = vmatprep.subr.mxu0 0.0
    %2156 = vmatpush1.msra.mxu0 0.0
    %2157 = vmatprep.subr.mxu0 0.0
    %2158 = vmatpush1.msra.mxu0 0.0
    %2159 = vmatprep.subr.mxu0 0.0
    %2160 = vmatpush1.msra.mxu0 0.0
    %2161 = vmatprep.subr.mxu0 0.0
    %2162 = vmatpush1.msra.mxu0 0.0
    %2163 = vmatprep.subr.mxu0 0.0
    %2164 = vmatpush1.msra.mxu0 0.0
    %2165 = vmatprep.subr.mxu0 0.0
    %2166 = vmatpush1.msra.mxu0 0.0
    %2167 = vmatprep.subr.mxu0 0.0
    %2168 = vmatpush1.msra.mxu0 0.0
    %2169 = vmatprep.subr.mxu0 0.0
    %2170 = vmatpush1.msra.mxu0 0.0
    %2171 = vmatprep.subr.mxu0 0.0
    %2172 = vmatpush1.msra.mxu0 0.0
    %2173 = vmatprep.subr.mxu0 0.0
    %2174 = vmatpush1.msra.mxu0 0.0
    %2175 = vmatprep.subr.mxu0 0.0
    %2176 = vmatpush1.msra.mxu0 0.0
    %2177 = vmatprep.subr.mxu0 0.0
    %2178 = vmatpush1.msra.mxu0 0.0
    %2179 = vmatprep.subr.mxu0 0.0
    %2180 = vmatpush1.msra.mxu0 0.0
    %2181 = vmatprep.subr.mxu0 0.0
    %2182 = vmatpush1.msra.mxu0 0.0
    %2183 = vmatprep.subr.mxu0 0.0
    %2184 = vmatpush1.msra.mxu0 0.0
    %2185 = vmatprep.subr.mxu0 0.0
    %2186 = vmatpush1.msra.mxu0 0.0
    %2187 = vmatprep.subr.mxu0 0.0
    %2188 = vmatpush1.msra.mxu0 0.0
    %2189 = vmatprep.subr.mxu0 0.0
    %2190 = vmatpush1.msra.mxu0 0.0
    %2191 = vmatprep.subr.mxu0 0.0
    %2192 = vmatpush1.msra.mxu0 0.0
    %2193 = vmatprep.subr.mxu0 0.0
    %2194 = vmatpush1.msra.mxu0 0.0
    %2195 = vmatprep.subr.mxu0 0.0
    %2196 = vmatpush1.msra.mxu0 0.0
    %2197 = vmatprep.subr.mxu0 0.0
    %2198 = vmatpush1.msra.mxu0 0.0
    %2199 = vmatprep.subr.mxu0 0.0
    %2200 = vmatpush1.msra.mxu0 0.0
    %2201 = vmatprep.mubr.f32.mxu0 0.0
    %2202 = vmatmul.mubr.f32.gmra.mrb[0].mxu0 %v2135
    %v2203 = vpop.f32.mrb[0].mxu0
    %v2204 = vadd.f32 0.0, %v2203
    %v2205 = vpop.f32.mrb[0].mxu0
    %2206 = vdwg.mxu0
    %v2208 = vrot.slane %v2204, 2
    %v2210 = vadd.f32 %v1120, %v2208
    %v2211 = vxor.u32 %v2210, 2147483648
    %v2212 = vmul.f32 %v2211, 1.442695
    %v2213 = vpow.pop %v2212
    %v2214 = vadd.f32 %v2213, 1.0
    %v2215 = vrcp.pop %v2214
    %v2216 = vmul.f32 1.0, %v2215
    %v2217 = vtanh.pop %v2210
    %v2219 = vrot.slane %v2085, 6
    %v2221 = vmul.f32 %v2216, %v2219
    %2223 = vrot.lane.b32.xlu0 %v2217, 64
    %v2224 = vpop.permute.xlu0 %2223
    %v2226 = vmul.f32 %v2216, %v2224
    %2228 = vrot.lane.b32.xlu0 %v2226, 32
    %v2229 = vpop.permute.xlu0 %2228
    %v2231 = vadd.f32 %v2221, %v2229
    %v2232 = vtanh.pop %v2231
    %2234 = vrot.lane.b32.xlu0 %v2232, 64
    %v2235 = vpop.permute.xlu0 %2234
    %v2237 = vmul.f32 %v2216, %v2235
    %v2239 = vcombine.high %v2237, %v2237
    %v2241 = vunpack.c.l.s4 1966171168
    %v2242 = vunpack.c.0.s8 %v2241
    %v2243 = vlaneseq
    %v2244 = vshrl.u32 %v2243, 7
    %v2245 = vsub.s32 %v2242, %v2244
    %v2246 = vrot.slane %v2239, %v2245
    %v2247 = vcombine.high %v2246, %v2246
    %v2249 = vunpack.c.l.s4 1966171168
    %v2250 = vunpack.c.0.s8 %v2249
    %v2251 = vlaneseq
    %v2252 = vshrl.u32 %v2251, 7
    %v2253 = vsub.s32 %v2250, %v2252
    %v2254 = vrot.slane %v2246, %v2253
    %v2256 = vunpack.c.l.s4 1966171168
    %v2257 = vunpack.c.0.s8 %v2256
    %v2258 = vlaneseq
    %v2259 = vshrl.u32 %v2258, 7
    %v2260 = vsub.s32 %v2257, %v2259
    %v2261 = vrot.slane %v2247, %v2260
    %v2262 = vcombine.high %v2254, %v2254
    %v2263 = vcombine.high %v2261, %v2261
    %v2264 = vlaneseq
    %v2265 = vshrl.u32 %v2264, 7
    %v2266 = vsub.s32 0, %v2265
    %v2267 = vrot.slane %v2262, %v2266
    %v2268 = vlaneseq
    %v2269 = vshrl.u32 %v2268, 7
    %v2270 = vsub.s32 0, %v2269
    %v2271 = vrot.slane %v2263, %v2270
    %2272 = vrot.lane.b32.xlu0 %v2267, 32
    %v2273 = vpop.permute.xlu0 %2272
    %2274 = vrot.lane.b32.xlu0 %v2271, 32
    %v2275 = vpop.permute.xlu0 %2274
    %2278 = vst.msk [vmem:[#allocation3 + $0x7] sm:$0x1] %vm1255, %v2273
    %2279 = vst.msk [vmem:[#allocation3 + $0xf] sm:$0x1] %vm1255, %v2275
    %v2280 = vld [vmem:[#allocation3] sm:$0xff]
    %v2281 = vld [vmem:[#allocation3 + $0x8] sm:$0xff]
    %v2282 = vld [vmem:[%s7] sm:$0xff]
    %v2283 = vld [vmem:[%s7 + $0x8] sm:$0xff]
    %v2284 = vld [vmem:[%s7 + $0x10] sm:$0xff]
    %v2285 = vld [vmem:[%s7 + $0x18] sm:$0xff]
    %v2287 = vsel %vm72, %v2280, 0
    %v2290 = vsel %vm72, %v2281, 0
    %2292 = vmatprep.subr.mxu0 0.0
    %2293 = vmatpush1.msra.mxu0 %v2282
    %2294 = vmatprep.subr.mxu0 0.0
    %2295 = vmatpush1.msra.mxu0 %v2283
    %2296 = vmatprep.subr.mxu0 0.0
    %2297 = vmatpush1.msra.mxu0 %v2284
    %2298 = vmatprep.subr.mxu0 0.0
    %2299 = vmatpush1.msra.mxu0 %v2285
    %2300 = vmatprep.subr.mxu0 0.0
    %2301 = vmatpush1.msra.mxu0 0.0
    %2302 = vmatprep.subr.mxu0 0.0
    %2303 = vmatpush1.msra.mxu0 0.0
    %2304 = vmatprep.subr.mxu0 0.0
    %2305 = vmatpush1.msra.mxu0 0.0
    %2306 = vmatprep.subr.mxu0 0.0
    %2307 = vmatpush1.msra.mxu0 0.0
    %2308 = vmatprep.subr.mxu0 0.0
    %2309 = vmatpush1.msra.mxu0 0.0
    %2310 = vmatprep.subr.mxu0 0.0
    %2311 = vmatpush1.msra.mxu0 0.0
    %2312 = vmatprep.subr.mxu0 0.0
    %2313 = vmatpush1.msra.mxu0 0.0
    %2314 = vmatprep.subr.mxu0 0.0
    %2315 = vmatpush1.msra.mxu0 0.0
    %2316 = vmatprep.subr.mxu0 0.0
    %2317 = vmatpush1.msra.mxu0 0.0
    %2318 = vmatprep.subr.mxu0 0.0
    %2319 = vmatpush1.msra.mxu0 0.0
    %2320 = vmatprep.subr.mxu0 0.0
    %2321 = vmatpush1.msra.mxu0 0.0
    %2322 = vmatprep.subr.mxu0 0.0
    %2323 = vmatpush1.msra.mxu0 0.0
    %2324 = vmatprep.subr.mxu0 0.0
    %2325 = vmatpush1.msra.mxu0 0.0
    %2326 = vmatprep.subr.mxu0 0.0
    %2327 = vmatpush1.msra.mxu0 0.0
    %2328 = vmatprep.subr.mxu0 0.0
    %2329 = vmatpush1.msra.mxu0 0.0
    %2330 = vmatprep.subr.mxu0 0.0
    %2331 = vmatpush1.msra.mxu0 0.0
    %2332 = vmatprep.subr.mxu0 0.0
    %2333 = vmatpush1.msra.mxu0 0.0
    %2334 = vmatprep.subr.mxu0 0.0
    %2335 = vmatpush1.msra.mxu0 0.0
    %2336 = vmatprep.subr.mxu0 0.0
    %2337 = vmatpush1.msra.mxu0 0.0
    %2338 = vmatprep.subr.mxu0 0.0
    %2339 = vmatpush1.msra.mxu0 0.0
    %2340 = vmatprep.subr.mxu0 0.0
    %2341 = vmatpush1.msra.mxu0 0.0
    %2342 = vmatprep.subr.mxu0 0.0
    %2343 = vmatpush1.msra.mxu0 0.0
    %2344 = vmatprep.subr.mxu0 0.0
    %2345 = vmatpush1.msra.mxu0 0.0
    %2346 = vmatprep.subr.mxu0 0.0
    %2347 = vmatpush1.msra.mxu0 0.0
    %2348 = vmatprep.subr.mxu0 0.0
    %2349 = vmatpush1.msra.mxu0 0.0
    %2350 = vmatprep.subr.mxu0 0.0
    %2351 = vmatpush1.msra.mxu0 0.0
    %2352 = vmatprep.subr.mxu0 0.0
    %2353 = vmatpush1.msra.mxu0 0.0
    %2354 = vmatprep.subr.mxu0 0.0
    %2355 = vmatpush1.msra.mxu0 0.0
    %2356 = vmatprep.mubr.f32.mxu0 0.0
    %2357 = vmatmul.mubr.f32.gmra.mrb[0].mxu0 %v2287
    %v2358 = vpop.f32.mrb[0].mxu0
    %v2359 = vadd.f32 0.0, %v2358
    %v2360 = vpop.f32.mrb[0].mxu0
    %2361 = vmatprep.mubr.f32.mxu0 0.0
    %2362 = vmatmul.mubr.f32.gmra.mrb[0].mxu0 %v2290
    %v2363 = vpop.f32.mrb[0].mxu0
    %v2364 = vadd.f32 0.0, %v2363
    %v2365 = vpop.f32.mrb[0].mxu0
    %2366 = vdwg.mxu0
    %v2367 = vtanh.pop %v2359
    %v2368 = vtanh.pop %v2364
    %v2369 = vld [vmem:[%s8] sm:$0xff]
    %v2370 = vld [vmem:[%s8 + $0x8] sm:$0xff]
    %v2371 = vld [vmem:[%s8 + $0x10] sm:$0xff]
    %v2372 = vld [vmem:[%s8 + $0x18] sm:$0xff]
    %v2374 = vsel %vm72, %v2367, 0
    %v2377 = vsel %vm72, %v2368, 0
    %2379 = vmatprep.subr.mxu0 0.0
    %2380 = vmatpush1.msra.mxu0 %v2369
    %2381 = vmatprep.subr.mxu0 0.0
    %2382 = vmatpush1.msra.mxu0 %v2370
    %2383 = vmatprep.subr.mxu0 0.0
    %2384 = vmatpush1.msra.mxu0 %v2371
    %2385 = vmatprep.subr.mxu0 0.0
    %2386 = vmatpush1.msra.mxu0 %v2372
    %2387 = vmatprep.subr.mxu0 0.0
    %2388 = vmatpush1.msra.mxu0 0.0
    %2389 = vmatprep.subr.mxu0 0.0
    %2390 = vmatpush1.msra.mxu0 0.0
    %2391 = vmatprep.subr.mxu0 0.0
    %2392 = vmatpush1.msra.mxu0 0.0
    %2393 = vmatprep.subr.mxu0 0.0
    %2394 = vmatpush1.msra.mxu0 0.0
    %2395 = vmatprep.subr.mxu0 0.0
    %2396 = vmatpush1.msra.mxu0 0.0
    %2397 = vmatprep.subr.mxu0 0.0
    %2398 = vmatpush1.msra.mxu0 0.0
    %2399 = vmatprep.subr.mxu0 0.0
    %2400 = vmatpush1.msra.mxu0 0.0
    %2401 = vmatprep.subr.mxu0 0.0
    %2402 = vmatpush1.msra.mxu0 0.0
    %2403 = vmatprep.subr.mxu0 0.0
    %2404 = vmatpush1.msra.mxu0 0.0
    %2405 = vmatprep.subr.mxu0 0.0
    %2406 = vmatpush1.msra.mxu0 0.0
    %2407 = vmatprep.subr.mxu0 0.0
    %2408 = vmatpush1.msra.mxu0 0.0
    %2409 = vmatprep.subr.mxu0 0.0
    %2410 = vmatpush1.msra.mxu0 0.0
    %2411 = vmatprep.subr.mxu0 0.0
    %2412 = vmatpush1.msra.mxu0 0.0
    %2413 = vmatprep.subr.mxu0 0.0
    %2414 = vmatpush1.msra.mxu0 0.0
    %2415 = vmatprep.subr.mxu0 0.0
    %2416 = vmatpush1.msra.mxu0 0.0
    %2417 = vmatprep.subr.mxu0 0.0
    %2418 = vmatpush1.msra.mxu0 0.0
    %2419 = vmatprep.subr.mxu0 0.0
    %2420 = vmatpush1.msra.mxu0 0.0
    %2421 = vmatprep.subr.mxu0 0.0
    %2422 = vmatpush1.msra.mxu0 0.0
    %2423 = vmatprep.subr.mxu0 0.0
    %2424 = vmatpush1.msra.mxu0 0.0
    %2425 = vmatprep.subr.mxu0 0.0
    %2426 = vmatpush1.msra.mxu0 0.0
    %2427 = vmatprep.subr.mxu0 0.0
    %2428 = vmatpush1.msra.mxu0 0.0
    %2429 = vmatprep.subr.mxu0 0.0
    %2430 = vmatpush1.msra.mxu0 0.0
    %2431 = vmatprep.subr.mxu0 0.0
    %2432 = vmatpush1.msra.mxu0 0.0
    %2433 = vmatprep.subr.mxu0 0.0
    %2434 = vmatpush1.msra.mxu0 0.0
    %2435 = vmatprep.subr.mxu0 0.0
    %2436 = vmatpush1.msra.mxu0 0.0
    %2437 = vmatprep.subr.mxu0 0.0
    %2438 = vmatpush1.msra.mxu0 0.0
    %2439 = vmatprep.subr.mxu0 0.0
    %2440 = vmatpush1.msra.mxu0 0.0
    %2441 = vmatprep.subr.mxu0 0.0
    %2442 = vmatpush1.msra.mxu0 0.0
    %2443 = vmatprep.mubr.f32.mxu0 0.0
    %2444 = vmatmul.mubr.f32.gmra.mrb[0].mxu0 %v2374
    %v2445 = vpop.f32.mrb[0].mxu0
    %v2446 = vadd.f32 0.0, %v2445
    %v2447 = vpop.f32.mrb[0].mxu0
    %2448 = vmatprep.mubr.f32.mxu0 0.0
    %2449 = vmatmul.mubr.f32.gmra.mrb[0].mxu0 %v2377
    %v2450 = vpop.f32.mrb[0].mxu0
    %v2451 = vadd.f32 0.0, %v2450
    %v2452 = vpop.f32.mrb[0].mxu0
    %2453 = vdwg.mxu0
    %vm2454 = vcmask 64512
    %v2455 = vsel %vm2454, %v2446, -inf
    %v2456 = vrot.slane %v2455, 4
    %v2457 = vmax.f32 %v2455, %v2456
    %v2458 = vrot.slane %v2457, 2
    %v2459 = vmax.f32 %v2457, %v2458
    %v2460 = vrot.slane %v2459, 1
    %v2461 = vmax.f32 %v2459, %v2460
    %v2462 = vsub.f32 %v2446, %v2461
    %v2463 = vmul.f32 %v2462, 1.442695
    %v2464 = vpow.pop %v2463
    %v2465 = vsel %vm2454, %v2464, 0.0
    %v2466 = vrot.slane %v2465, 4
    %v2467 = vadd.f32 %v2465, %v2466
    %v2468 = vrot.slane %v2467, 2
    %v2469 = vadd.f32 %v2467, %v2468
    %v2470 = vrot.slane %v2469, 1
    %v2471 = vadd.f32 %v2469, %v2470
    %v2472 = vrcp.pop %v2471
    %v2473 = vmul.f32 %v2464, %v2472
    %2474 = vxpose.xlu0.b32.start [1/16] %v2473, 128
    %2475 = vxpose.xlu0.b32.cont [2/16] 0.0, 128
    %2476 = vxpose.xlu0.b32.cont [3/16] 0.0, 128
    %2477 = vxpose.xlu0.b32.cont [4/16] 0.0, 128
    %2478 = vxpose.xlu0.b32.cont [5/16] 0.0, 128
    %2479 = vxpose.xlu0.b32.cont [6/16] 0.0, 128
    %2480 = vxpose.xlu0.b32.cont [7/16] 0.0, 128
    %2481 = vxpose.xlu0.b32.cont [8/16] 0.0, 128
    %2482 = vxpose.xlu0.b32.cont [9/16] 0.0, 128
    %2483 = vxpose.xlu0.b32.cont [10/16] 0.0, 128
    %2484 = vxpose.xlu0.b32.cont [11/16] 0.0, 128
    %2485 = vxpose.xlu0.b32.cont [12/16] 0.0, 128
    %2486 = vxpose.xlu0.b32.cont [13/16] 0.0, 128
    %2487 = vxpose.xlu0.b32.cont [14/16] 0.0, 128
    %2488 = vxpose.xlu0.b32.cont [15/16] 0.0, 128
    %2489 = vxpose.xlu0.b32.end [16/16] 0.0, 128
    %v2490 = vpop.trf.xlu0
    %v2491 = vpop.trf.xlu0
    %v2492 = vpop.trf.xlu0
    %v2493 = vpop.trf.xlu0
    %v2494 = vpop.trf.xlu0
    %v2495 = vpop.trf.xlu0
    %v2496 = vpop.trf.xlu0
    %v2497 = vpop.trf.xlu0
    %v2498 = vpop.trf.xlu0
    %v2499 = vpop.trf.xlu0
    %v2500 = vpop.trf.xlu0
    %v2501 = vpop.trf.xlu0
    %v2502 = vpop.trf.xlu0
    %v2503 = vpop.trf.xlu0
    %v2504 = vpop.trf.xlu0
    %v2505 = vpop.trf.xlu0
    %v2507 = vsel %vm2454, %v2490, 0
    %2509 = vmatprep.subr.mxu0 0.0
    %2510 = vmatpush1.msra.mxu0 %v2280
    %2511 = vmatprep.subr.mxu0 0.0
    %2512 = vmatpush1.msra.mxu0 0.0
    %2513 = vmatprep.subr.mxu0 0.0
    %2514 = vmatpush1.msra.mxu0 0.0
    %2515 = vmatprep.subr.mxu0 0.0
    %2516 = vmatpush1.msra.mxu0 0.0
    %2517 = vmatprep.subr.mxu0 0.0
    %2518 = vmatpush1.msra.mxu0 0.0
    %2519 = vmatprep.subr.mxu0 0.0
    %2520 = vmatpush1.msra.mxu0 0.0
    %2521 = vmatprep.subr.mxu0 0.0
    %2522 = vmatpush1.msra.mxu0 0.0
    %2523 = vmatprep.subr.mxu0 0.0
    %2524 = vmatpush1.msra.mxu0 0.0
    %2525 = vmatprep.subr.mxu0 0.0
    %2526 = vmatpush1.msra.mxu0 0.0
    %2527 = vmatprep.subr.mxu0 0.0
    %2528 = vmatpush1.msra.mxu0 0.0
    %2529 = vmatprep.subr.mxu0 0.0
    %2530 = vmatpush1.msra.mxu0 0.0
    %2531 = vmatprep.subr.mxu0 0.0
    %2532 = vmatpush1.msra.mxu0 0.0
    %2533 = vmatprep.subr.mxu0 0.0
    %2534 = vmatpush1.msra.mxu0 0.0
    %2535 = vmatprep.subr.mxu0 0.0
    %2536 = vmatpush1.msra.mxu0 0.0
    %2537 = vmatprep.subr.mxu0 0.0
    %2538 = vmatpush1.msra.mxu0 0.0
    %2539 = vmatprep.subr.mxu0 0.0
    %2540 = vmatpush1.msra.mxu0 0.0
    %2541 = vmatprep.subr.mxu0 0.0
    %2542 = vmatpush1.msra.mxu0 0.0
    %2543 = vmatprep.subr.mxu0 0.0
    %2544 = vmatpush1.msra.mxu0 0.0
    %2545 = vmatprep.subr.mxu0 0.0
    %2546 = vmatpush1.msra.mxu0 0.0
    %2547 = vmatprep.subr.mxu0 0.0
    %2548 = vmatpush1.msra.mxu0 0.0
    %2549 = vmatprep.subr.mxu0 0.0
    %2550 = vmatpush1.msra.mxu0 0.0
    %2551 = vmatprep.subr.mxu0 0.0
    %2552 = vmatpush1.msra.mxu0 0.0
    %2553 = vmatprep.subr.mxu0 0.0
    %2554 = vmatpush1.msra.mxu0 0.0
    %2555 = vmatprep.subr.mxu0 0.0
    %2556 = vmatpush1.msra.mxu0 0.0
    %2557 = vmatprep.subr.mxu0 0.0
    %2558 = vmatpush1.msra.mxu0 0.0
    %2559 = vmatprep.subr.mxu0 0.0
    %2560 = vmatpush1.msra.mxu0 0.0
    %2561 = vmatprep.subr.mxu0 0.0
    %2562 = vmatpush1.msra.mxu0 0.0
    %2563 = vmatprep.subr.mxu0 0.0
    %2564 = vmatpush1.msra.mxu0 0.0
    %2565 = vmatprep.subr.mxu0 0.0
    %2566 = vmatpush1.msra.mxu0 0.0
    %2567 = vmatprep.subr.mxu0 0.0
    %2568 = vmatpush1.msra.mxu0 0.0
    %2569 = vmatprep.subr.mxu0 0.0
    %2570 = vmatpush1.msra.mxu0 0.0
    %2571 = vmatprep.subr.mxu0 0.0
    %2572 = vmatpush1.msra.mxu0 0.0
    %2573 = vmatprep.mubr.f32.mxu0 0.0
    %2574 = vmatmul.mubr.f32.gmra.mrb[0].mxu0 %v2507
    %v2575 = vpop.f32.mrb[0].mxu0
    %v2576 = vadd.f32 0.0, %v2575
    %v2577 = vpop.f32.mrb[0].mxu0
    %2578 = vdwg.mxu0
    %v2579 = vsel %vm2454, %v2451, -inf
    %v2580 = vrot.slane %v2579, 4
    %v2581 = vmax.f32 %v2579, %v2580
    %v2582 = vrot.slane %v2581, 2
    %v2583 = vmax.f32 %v2581, %v2582
    %v2584 = vrot.slane %v2583, 1
    %v2585 = vmax.f32 %v2583, %v2584
    %v2586 = vsub.f32 %v2451, %v2585
    %v2587 = vmul.f32 %v2586, 1.442695
    %v2588 = vpow.pop %v2587
    %v2589 = vsel %vm2454, %v2588, 0.0
    %v2590 = vrot.slane %v2589, 4
    %v2591 = vadd.f32 %v2589, %v2590
    %v2592 = vrot.slane %v2591, 2
    %v2593 = vadd.f32 %v2591, %v2592
    %v2594 = vrot.slane %v2593, 1
    %v2595 = vadd.f32 %v2593, %v2594
    %v2596 = vrcp.pop %v2595
    %v2597 = vmul.f32 %v2588, %v2596
    %2598 = vxpose.xlu0.b32.start [1/16] %v2597, 128
    %2599 = vxpose.xlu0.b32.cont [2/16] 0.0, 128
    %2600 = vxpose.xlu0.b32.cont [3/16] 0.0, 128
    %2601 = vxpose.xlu0.b32.cont [4/16] 0.0, 128
    %2602 = vxpose.xlu0.b32.cont [5/16] 0.0, 128
    %2603 = vxpose.xlu0.b32.cont [6/16] 0.0, 128
    %2604 = vxpose.xlu0.b32.cont [7/16] 0.0, 128
    %2605 = vxpose.xlu0.b32.cont [8/16] 0.0, 128
    %2606 = vxpose.xlu0.b32.cont [9/16] 0.0, 128
    %2607 = vxpose.xlu0.b32.cont [10/16] 0.0, 128
    %2608 = vxpose.xlu0.b32.cont [11/16] 0.0, 128
    %2609 = vxpose.xlu0.b32.cont [12/16] 0.0, 128
    %2610 = vxpose.xlu0.b32.cont [13/16] 0.0, 128
    %2611 = vxpose.xlu0.b32.cont [14/16] 0.0, 128
    %2612 = vxpose.xlu0.b32.cont [15/16] 0.0, 128
    %2613 = vxpose.xlu0.b32.end [16/16] 0.0, 128
    %v2614 = vpop.trf.xlu0
    %v2615 = vpop.trf.xlu0
    %v2616 = vpop.trf.xlu0
    %v2617 = vpop.trf.xlu0
    %v2618 = vpop.trf.xlu0
    %v2619 = vpop.trf.xlu0
    %v2620 = vpop.trf.xlu0
    %v2621 = vpop.trf.xlu0
    %v2622 = vpop.trf.xlu0
    %v2623 = vpop.trf.xlu0
    %v2624 = vpop.trf.xlu0
    %v2625 = vpop.trf.xlu0
    %v2626 = vpop.trf.xlu0
    %v2627 = vpop.trf.xlu0
    %v2628 = vpop.trf.xlu0
    %v2629 = vpop.trf.xlu0
    %v2631 = vsel %vm2454, %v2614, 0
    %2633 = vmatprep.subr.mxu0 0.0
    %2634 = vmatpush1.msra.mxu0 %v2281
    %2635 = vmatprep.subr.mxu0 0.0
    %2636 = vmatpush1.msra.mxu0 0.0
    %2637 = vmatprep.subr.mxu0 0.0
    %2638 = vmatpush1.msra.mxu0 0.0
    %2639 = vmatprep.subr.mxu0 0.0
    %2640 = vmatpush1.msra.mxu0 0.0
    %2641 = vmatprep.subr.mxu0 0.0
    %2642 = vmatpush1.msra.mxu0 0.0
    %2643 = vmatprep.subr.mxu0 0.0
    %2644 = vmatpush1.msra.mxu0 0.0
    %2645 = vmatprep.subr.mxu0 0.0
    %2646 = vmatpush1.msra.mxu0 0.0
    %2647 = vmatprep.subr.mxu0 0.0
    %2648 = vmatpush1.msra.mxu0 0.0
    %2649 = vmatprep.subr.mxu0 0.0
    %2650 = vmatpush1.msra.mxu0 0.0
    %2651 = vmatprep.subr.mxu0 0.0
    %2652 = vmatpush1.msra.mxu0 0.0
    %2653 = vmatprep.subr.mxu0 0.0
    %2654 = vmatpush1.msra.mxu0 0.0
    %2655 = vmatprep.subr.mxu0 0.0
    %2656 = vmatpush1.msra.mxu0 0.0
    %2657 = vmatprep.subr.mxu0 0.0
    %2658 = vmatpush1.msra.mxu0 0.0
    %2659 = vmatprep.subr.mxu0 0.0
    %2660 = vmatpush1.msra.mxu0 0.0
    %2661 = vmatprep.subr.mxu0 0.0
    %2662 = vmatpush1.msra.mxu0 0.0
    %2663 = vmatprep.subr.mxu0 0.0
    %2664 = vmatpush1.msra.mxu0 0.0
    %2665 = vmatprep.subr.mxu0 0.0
    %2666 = vmatpush1.msra.mxu0 0.0
    %2667 = vmatprep.subr.mxu0 0.0
    %2668 = vmatpush1.msra.mxu0 0.0
    %2669 = vmatprep.subr.mxu0 0.0
    %2670 = vmatpush1.msra.mxu0 0.0
    %2671 = vmatprep.subr.mxu0 0.0
    %2672 = vmatpush1.msra.mxu0 0.0
    %2673 = vmatprep.subr.mxu0 0.0
    %2674 = vmatpush1.msra.mxu0 0.0
    %2675 = vmatprep.subr.mxu0 0.0
    %2676 = vmatpush1.msra.mxu0 0.0
    %2677 = vmatprep.subr.mxu0 0.0
    %2678 = vmatpush1.msra.mxu0 0.0
    %2679 = vmatprep.subr.mxu0 0.0
    %2680 = vmatpush1.msra.mxu0 0.0
    %2681 = vmatprep.subr.mxu0 0.0
    %2682 = vmatpush1.msra.mxu0 0.0
    %2683 = vmatprep.subr.mxu0 0.0
    %2684 = vmatpush1.msra.mxu0 0.0
    %2685 = vmatprep.subr.mxu0 0.0
    %2686 = vmatpush1.msra.mxu0 0.0
    %2687 = vmatprep.subr.mxu0 0.0
    %2688 = vmatpush1.msra.mxu0 0.0
    %2689 = vmatprep.subr.mxu0 0.0
    %2690 = vmatpush1.msra.mxu0 0.0
    %2691 = vmatprep.subr.mxu0 0.0
    %2692 = vmatpush1.msra.mxu0 0.0
    %2693 = vmatprep.subr.mxu0 0.0
    %2694 = vmatpush1.msra.mxu0 0.0
    %2695 = vmatprep.subr.mxu0 0.0
    %2696 = vmatpush1.msra.mxu0 0.0
    %2697 = vmatprep.mubr.f32.mxu0 0.0
    %2698 = vmatmul.mubr.f32.gmra.mrb[0].mxu0 %v2631
    %v2699 = vpop.f32.mrb[0].mxu0
    %v2700 = vadd.f32 0.0, %v2699
    %v2701 = vpop.f32.mrb[0].mxu0
    %2702 = vdwg.mxu0
    %v2703 = vld [vmem:[%s9] sm:$0xff]
    %v2704 = vld [vmem:[%s9 + $0x8] sm:$0xff]
    %v2705 = vld [vmem:[%s9 + $0x10] sm:$0xff]
    %v2706 = vld [vmem:[%s9 + $0x18] sm:$0xff]
    %v2707 = vld [vmem:[%s9 + $0x20] sm:$0xff]
    %v2708 = vld [vmem:[%s9 + $0x28] sm:$0xff]
    %v2709 = vld [vmem:[%s9 + $0x30] sm:$0xff]
    %v2710 = vld [vmem:[%s9 + $0x38] sm:$0xff]
    %v2713 = vrot.slane %v2576, 1
    %vm2714 = vcmask 1041409
    %v2715 = vsel %vm2714, %v2700, %v2713
    %v2716 = vsel %vm72, %v2715, 0
    %2718 = vmatprep.subr.mxu0 0.0
    %2719 = vmatpush1.msra.mxu0 %v2707
    %2720 = vmatprep.subr.mxu0 0.0
    %2721 = vmatpush1.msra.mxu0 %v2708
    %2722 = vmatprep.subr.mxu0 0.0
    %2723 = vmatpush1.msra.mxu0 %v2709
    %2724 = vmatprep.subr.mxu0 0.0
    %2725 = vmatpush1.msra.mxu0 %v2710
    %2726 = vmatprep.subr.mxu0 0.0
    %2727 = vmatpush1.msra.mxu0 0.0
    %2728 = vmatprep.subr.mxu0 0.0
    %2729 = vmatpush1.msra.mxu0 0.0
    %2730 = vmatprep.subr.mxu0 0.0
    %2731 = vmatpush1.msra.mxu0 0.0
    %2732 = vmatprep.subr.mxu0 0.0
    %2733 = vmatpush1.msra.mxu0 0.0
    %2734 = vmatprep.subr.mxu0 0.0
    %2735 = vmatpush1.msra.mxu0 0.0
    %2736 = vmatprep.subr.mxu0 0.0
    %2737 = vmatpush1.msra.mxu0 0.0
    %2738 = vmatprep.subr.mxu0 0.0
    %2739 = vmatpush1.msra.mxu0 0.0
    %2740 = vmatprep.subr.mxu0 0.0
    %2741 = vmatpush1.msra.mxu0 0.0
    %2742 = vmatprep.subr.mxu0 0.0
    %2743 = vmatpush1.msra.mxu0 0.0
    %2744 = vmatprep.subr.mxu0 0.0
    %2745 = vmatpush1.msra.mxu0 0.0
    %2746 = vmatprep.subr.mxu0 0.0
    %2747 = vmatpush1.msra.mxu0 0.0
    %2748 = vmatprep.subr.mxu0 0.0
    %2749 = vmatpush1.msra.mxu0 0.0
    %2750 = vmatprep.subr.mxu0 0.0
    %2751 = vmatpush1.msra.mxu0 0.0
    %2752 = vmatprep.subr.mxu0 0.0
    %2753 = vmatpush1.msra.mxu0 0.0
    %2754 = vmatprep.subr.mxu0 0.0
    %2755 = vmatpush1.msra.mxu0 0.0
    %2756 = vmatprep.subr.mxu0 0.0
    %2757 = vmatpush1.msra.mxu0 0.0
    %2758 = vmatprep.subr.mxu0 0.0
    %2759 = vmatpush1.msra.mxu0 0.0
    %2760 = vmatprep.subr.mxu0 0.0
    %2761 = vmatpush1.msra.mxu0 0.0
    %2762 = vmatprep.subr.mxu0 0.0
    %2763 = vmatpush1.msra.mxu0 0.0
    %2764 = vmatprep.subr.mxu0 0.0
    %2765 = vmatpush1.msra.mxu0 0.0
    %2766 = vmatprep.subr.mxu0 0.0
    %2767 = vmatpush1.msra.mxu0 0.0
    %2768 = vmatprep.subr.mxu0 0.0
    %2769 = vmatpush1.msra.mxu0 0.0
    %2770 = vmatprep.subr.mxu0 0.0
    %2771 = vmatpush1.msra.mxu0 0.0
    %2772 = vmatprep.subr.mxu0 0.0
    %2773 = vmatpush1.msra.mxu0 0.0
    %2774 = vmatprep.subr.mxu0 0.0
    %2775 = vmatpush1.msra.mxu0 0.0
    %2776 = vmatprep.subr.mxu0 0.0
    %2777 = vmatpush1.msra.mxu0 0.0
    %2778 = vmatprep.subr.mxu0 0.0
    %2779 = vmatpush1.msra.mxu0 0.0
    %2780 = vmatprep.subr.mxu0 0.0
    %2781 = vmatpush1.msra.mxu0 0.0
    %2782 = vmatprep.mubr.f32.mxu0 0.0
    %2783 = vmatmul.mubr.f32.gmra.mrb[0].mxu0 %v2716
    %v2784 = vpop.f32.mrb[0].mxu0
    %v2785 = vadd.f32 0.0, %v2784
    %v2786 = vpop.f32.mrb[0].mxu0
    %2787 = vdwg.mxu0
    %v2788 = vrot.slane %v2700, 7
    %v2789 = vsel %vm2714, %v2788, %v2576
    %v2790 = vsel %vm72, %v2789, 0
    %2792 = vmatprep.subr.mxu0 0.0
    %2793 = vmatpush1.msra.mxu0 %v2703
    %2794 = vmatprep.subr.mxu0 0.0
    %2795 = vmatpush1.msra.mxu0 %v2704
    %2796 = vmatprep.subr.mxu0 0.0
    %2797 = vmatpush1.msra.mxu0 %v2705
    %2798 = vmatprep.subr.mxu0 0.0
    %2799 = vmatpush1.msra.mxu0 %v2706
    %2800 = vmatprep.subr.mxu0 0.0
    %2801 = vmatpush1.msra.mxu0 0.0
    %2802 = vmatprep.subr.mxu0 0.0
    %2803 = vmatpush1.msra.mxu0 0.0
    %2804 = vmatprep.subr.mxu0 0.0
    %2805 = vmatpush1.msra.mxu0 0.0
    %2806 = vmatprep.subr.mxu0 0.0
    %2807 = vmatpush1.msra.mxu0 0.0
    %2808 = vmatprep.subr.mxu0 0.0
    %2809 = vmatpush1.msra.mxu0 0.0
    %2810 = vmatprep.subr.mxu0 0.0
    %2811 = vmatpush1.msra.mxu0 0.0
    %2812 = vmatprep.subr.mxu0 0.0
    %2813 = vmatpush1.msra.mxu0 0.0
    %2814 = vmatprep.subr.mxu0 0.0
    %2815 = vmatpush1.msra.mxu0 0.0
    %2816 = vmatprep.subr.mxu0 0.0
    %2817 = vmatpush1.msra.mxu0 0.0
    %2818 = vmatprep.subr.mxu0 0.0
    %2819 = vmatpush1.msra.mxu0 0.0
    %2820 = vmatprep.subr.mxu0 0.0
    %2821 = vmatpush1.msra.mxu0 0.0
    %2822 = vmatprep.subr.mxu0 0.0
    %2823 = vmatpush1.msra.mxu0 0.0
    %2824 = vmatprep.subr.mxu0 0.0
    %2825 = vmatpush1.msra.mxu0 0.0
    %2826 = vmatprep.subr.mxu0 0.0
    %2827 = vmatpush1.msra.mxu0 0.0
    %2828 = vmatprep.subr.mxu0 0.0
    %2829 = vmatpush1.msra.mxu0 0.0
    %2830 = vmatprep.subr.mxu0 0.0
    %2831 = vmatpush1.msra.mxu0 0.0
    %2832 = vmatprep.subr.mxu0 0.0
    %2833 = vmatpush1.msra.mxu0 0.0
    %2834 = vmatprep.subr.mxu0 0.0
    %2835 = vmatpush1.msra.mxu0 0.0
    %2836 = vmatprep.subr.mxu0 0.0
    %2837 = vmatpush1.msra.mxu0 0.0
    %2838 = vmatprep.subr.mxu0 0.0
    %2839 = vmatpush1.msra.mxu0 0.0
    %2840 = vmatprep.subr.mxu0 0.0
    %2841 = vmatpush1.msra.mxu0 0.0
    %2842 = vmatprep.subr.mxu0 0.0
    %2843 = vmatpush1.msra.mxu0 0.0
    %2844 = vmatprep.subr.mxu0 0.0
    %2845 = vmatpush1.msra.mxu0 0.0
    %2846 = vmatprep.subr.mxu0 0.0
    %2847 = vmatpush1.msra.mxu0 0.0
    %2848 = vmatprep.subr.mxu0 0.0
    %2849 = vmatpush1.msra.mxu0 0.0
    %2850 = vmatprep.subr.mxu0 0.0
    %2851 = vmatpush1.msra.mxu0 0.0
    %2852 = vmatprep.subr.mxu0 0.0
    %2853 = vmatpush1.msra.mxu0 0.0
    %2854 = vmatprep.subr.mxu0 0.0
    %2855 = vmatpush1.msra.mxu0 0.0
    %2856 = vmatprep.mubr.f32.mxu0 0.0
    %2857 = vmatmul.mubr.f32.gmra.mrb[0].mxu0 %v2790
    %v2858 = vpop.f32.mrb[0].mxu0
    %v2859 = vadd.f32 %v2785, %v2858
    %v2860 = vpop.f32.mrb[0].mxu0
    %2861 = vdwg.mxu0
    %v2862 = vld [vmem:[%s9 + $0x40] sm:$0xff]
    %v2863 = vld [vmem:[%s9 + $0x48] sm:$0xff]
    %v2864 = vld [vmem:[%s9 + $0x50] sm:$0xff]
    %v2865 = vld [vmem:[%s9 + $0x58] sm:$0xff]
    %v2866 = vrot.slane %v2576, 2
    %v2867 = vrot.slane %v2700, 1
    %v2868 = vsel %vm2714, %v2867, %v2866
    %v2869 = vsel %vm72, %v2868, 0
    %2871 = vmatprep.subr.mxu0 0.0
    %2872 = vmatpush1.msra.mxu0 %v2862
    %2873 = vmatprep.subr.mxu0 0.0
    %2874 = vmatpush1.msra.mxu0 %v2863
    %2875 = vmatprep.subr.mxu0 0.0
    %2876 = vmatpush1.msra.mxu0 %v2864
    %2877 = vmatprep.subr.mxu0 0.0
    %2878 = vmatpush1.msra.mxu0 %v2865
    %2879 = vmatprep.subr.mxu0 0.0
    %2880 = vmatpush1.msra.mxu0 0.0
    %2881 = vmatprep.subr.mxu0 0.0
    %2882 = vmatpush1.msra.mxu0 0.0
    %2883 = vmatprep.subr.mxu0 0.0
    %2884 = vmatpush1.msra.mxu0 0.0
    %2885 = vmatprep.subr.mxu0 0.0
    %2886 = vmatpush1.msra.mxu0 0.0
    %2887 = vmatprep.subr.mxu0 0.0
    %2888 = vmatpush1.msra.mxu0 0.0
    %2889 = vmatprep.subr.mxu0 0.0
    %2890 = vmatpush1.msra.mxu0 0.0
    %2891 = vmatprep.subr.mxu0 0.0
    %2892 = vmatpush1.msra.mxu0 0.0
    %2893 = vmatprep.subr.mxu0 0.0
    %2894 = vmatpush1.msra.mxu0 0.0
    %2895 = vmatprep.subr.mxu0 0.0
    %2896 = vmatpush1.msra.mxu0 0.0
    %2897 = vmatprep.subr.mxu0 0.0
    %2898 = vmatpush1.msra.mxu0 0.0
    %2899 = vmatprep.subr.mxu0 0.0
    %2900 = vmatpush1.msra.mxu0 0.0
    %2901 = vmatprep.subr.mxu0 0.0
    %2902 = vmatpush1.msra.mxu0 0.0
    %2903 = vmatprep.subr.mxu0 0.0
    %2904 = vmatpush1.msra.mxu0 0.0
    %2905 = vmatprep.subr.mxu0 0.0
    %2906 = vmatpush1.msra.mxu0 0.0
    %2907 = vmatprep.subr.mxu0 0.0
    %2908 = vmatpush1.msra.mxu0 0.0
    %2909 = vmatprep.subr.mxu0 0.0
    %2910 = vmatpush1.msra.mxu0 0.0
    %2911 = vmatprep.subr.mxu0 0.0
    %2912 = vmatpush1.msra.mxu0 0.0
    %2913 = vmatprep.subr.mxu0 0.0
    %2914 = vmatpush1.msra.mxu0 0.0
    %2915 = vmatprep.subr.mxu0 0.0
    %2916 = vmatpush1.msra.mxu0 0.0
    %2917 = vmatprep.subr.mxu0 0.0
    %2918 = vmatpush1.msra.mxu0 0.0
    %2919 = vmatprep.subr.mxu0 0.0
    %2920 = vmatpush1.msra.mxu0 0.0
    %2921 = vmatprep.subr.mxu0 0.0
    %2922 = vmatpush1.msra.mxu0 0.0
    %2923 = vmatprep.subr.mxu0 0.0
    %2924 = vmatpush1.msra.mxu0 0.0
    %2925 = vmatprep.subr.mxu0 0.0
    %2926 = vmatpush1.msra.mxu0 0.0
    %2927 = vmatprep.subr.mxu0 0.0
    %2928 = vmatpush1.msra.mxu0 0.0
    %2929 = vmatprep.subr.mxu0 0.0
    %2930 = vmatpush1.msra.mxu0 0.0
    %2931 = vmatprep.subr.mxu0 0.0
    %2932 = vmatpush1.msra.mxu0 0.0
    %2933 = vmatprep.subr.mxu0 0.0
    %2934 = vmatpush1.msra.mxu0 0.0
    %2935 = vmatprep.mubr.f32.mxu0 0.0
    %2936 = vmatmul.mubr.f32.gmra.mrb[0].mxu0 %v2869
    %v2937 = vpop.f32.mrb[0].mxu0
    %v2938 = vadd.f32 0.0, %v2937
    %v2939 = vpop.f32.mrb[0].mxu0
    %2940 = vdwg.mxu0
    %v2941 = vadd.f32 %v2859, %v2938
    %v2942 = vld [vmem:[%s9 + $0x60] sm:$0xff]
    %v2943 = vld [vmem:[%s9 + $0x68] sm:$0xff]
    %v2944 = vld [vmem:[%s9 + $0x70] sm:$0xff]
    %v2945 = vld [vmem:[%s9 + $0x78] sm:$0xff]
    %v2946 = vrot.slane %v2576, 3
    %v2947 = vrot.slane %v2700, 2
    %v2948 = vsel %vm2714, %v2947, %v2946
    %v2949 = vsel %vm72, %v2948, 0
    %2951 = vmatprep.subr.mxu0 0.0
    %2952 = vmatpush1.msra.mxu0 %v2942
    %2953 = vmatprep.subr.mxu0 0.0
    %2954 = vmatpush1.msra.mxu0 %v2943
    %2955 = vmatprep.subr.mxu0 0.0
    %2956 = vmatpush1.msra.mxu0 %v2944
    %2957 = vmatprep.subr.mxu0 0.0
    %2958 = vmatpush1.msra.mxu0 %v2945
    %2959 = vmatprep.subr.mxu0 0.0
    %2960 = vmatpush1.msra.mxu0 0.0
    %2961 = vmatprep.subr.mxu0 0.0
    %2962 = vmatpush1.msra.mxu0 0.0
    %2963 = vmatprep.subr.mxu0 0.0
    %2964 = vmatpush1.msra.mxu0 0.0
    %2965 = vmatprep.subr.mxu0 0.0
    %2966 = vmatpush1.msra.mxu0 0.0
    %2967 = vmatprep.subr.mxu0 0.0
    %2968 = vmatpush1.msra.mxu0 0.0
    %2969 = vmatprep.subr.mxu0 0.0
    %2970 = vmatpush1.msra.mxu0 0.0
    %2971 = vmatprep.subr.mxu0 0.0
    %2972 = vmatpush1.msra.mxu0 0.0
    %2973 = vmatprep.subr.mxu0 0.0
    %2974 = vmatpush1.msra.mxu0 0.0
    %2975 = vmatprep.subr.mxu0 0.0
    %2976 = vmatpush1.msra.mxu0 0.0
    %2977 = vmatprep.subr.mxu0 0.0
    %2978 = vmatpush1.msra.mxu0 0.0
    %2979 = vmatprep.subr.mxu0 0.0
    %2980 = vmatpush1.msra.mxu0 0.0
    %2981 = vmatprep.subr.mxu0 0.0
    %2982 = vmatpush1.msra.mxu0 0.0
    %2983 = vmatprep.subr.mxu0 0.0
    %2984 = vmatpush1.msra.mxu0 0.0
    %2985 = vmatprep.subr.mxu0 0.0
    %2986 = vmatpush1.msra.mxu0 0.0
    %2987 = vmatprep.subr.mxu0 0.0
    %2988 = vmatpush1.msra.mxu0 0.0
    %2989 = vmatprep.subr.mxu0 0.0
    %2990 = vmatpush1.msra.mxu0 0.0
    %2991 = vmatprep.subr.mxu0 0.0
    %2992 = vmatpush1.msra.mxu0 0.0
    %2993 = vmatprep.subr.mxu0 0.0
    %2994 = vmatpush1.msra.mxu0 0.0
    %2995 = vmatprep.subr.mxu0 0.0
    %2996 = vmatpush1.msra.mxu0 0.0
    %2997 = vmatprep.subr.mxu0 0.0
    %2998 = vmatpush1.msra.mxu0 0.0
    %2999 = vmatprep.subr.mxu0 0.0
    %3000 = vmatpush1.msra.mxu0 0.0
    %3001 = vmatprep.subr.mxu0 0.0
    %3002 = vmatpush1.msra.mxu0 0.0
    %3003 = vmatprep.subr.mxu0 0.0
    %3004 = vmatpush1.msra.mxu0 0.0
    %3005 = vmatprep.subr.mxu0 0.0
    %3006 = vmatpush1.msra.mxu0 0.0
    %3007 = vmatprep.subr.mxu0 0.0
    %3008 = vmatpush1.msra.mxu0 0.0
    %3009 = vmatprep.subr.mxu0 0.0
    %3010 = vmatpush1.msra.mxu0 0.0
    %3011 = vmatprep.subr.mxu0 0.0
    %3012 = vmatpush1.msra.mxu0 0.0
    %3013 = vmatprep.subr.mxu0 0.0
    %3014 = vmatpush1.msra.mxu0 0.0
    %3015 = vmatprep.mubr.f32.mxu0 0.0
    %3016 = vmatmul.mubr.f32.gmra.mrb[0].mxu0 %v2949
    %v3017 = vpop.f32.mrb[0].mxu0
    %v3018 = vadd.f32 0.0, %v3017
    %v3019 = vpop.f32.mrb[0].mxu0
    %3020 = vdwg.mxu0
    %v3021 = vadd.f32 %v2941, %v3018
    %v3022 = vld [vmem:[%s9 + $0x80] sm:$0xff]
    %v3023 = vld [vmem:[%s9 + $0x88] sm:$0xff]
    %v3024 = vld [vmem:[%s9 + $0x90] sm:$0xff]
    %v3025 = vld [vmem:[%s9 + $0x98] sm:$0xff]
    %v3026 = vrot.slane %v2576, 4
    %v3027 = vrot.slane %v2700, 3
    %v3028 = vsel %vm2714, %v3027, %v3026
    %v3029 = vsel %vm72, %v3028, 0
    %3031 = vmatprep.subr.mxu0 0.0
    %3032 = vmatpush1.msra.mxu0 %v3022
    %3033 = vmatprep.subr.mxu0 0.0
    %3034 = vmatpush1.msra.mxu0 %v3023
    %3035 = vmatprep.subr.mxu0 0.0
    %3036 = vmatpush1.msra.mxu0 %v3024
    %3037 = vmatprep.subr.mxu0 0.0
    %3038 = vmatpush1.msra.mxu0 %v3025
    %3039 = vmatprep.subr.mxu0 0.0
    %3040 = vmatpush1.msra.mxu0 0.0
    %3041 = vmatprep.subr.mxu0 0.0
    %3042 = vmatpush1.msra.mxu0 0.0
    %3043 = vmatprep.subr.mxu0 0.0
    %3044 = vmatpush1.msra.mxu0 0.0
    %3045 = vmatprep.subr.mxu0 0.0
    %3046 = vmatpush1.msra.mxu0 0.0
    %3047 = vmatprep.subr.mxu0 0.0
    %3048 = vmatpush1.msra.mxu0 0.0
    %3049 = vmatprep.subr.mxu0 0.0
    %3050 = vmatpush1.msra.mxu0 0.0
    %3051 = vmatprep.subr.mxu0 0.0
    %3052 = vmatpush1.msra.mxu0 0.0
    %3053 = vmatprep.subr.mxu0 0.0
    %3054 = vmatpush1.msra.mxu0 0.0
    %3055 = vmatprep.subr.mxu0 0.0
    %3056 = vmatpush1.msra.mxu0 0.0
    %3057 = vmatprep.subr.mxu0 0.0
    %3058 = vmatpush1.msra.mxu0 0.0
    %3059 = vmatprep.subr.mxu0 0.0
    %3060 = vmatpush1.msra.mxu0 0.0
    %3061 = vmatprep.subr.mxu0 0.0
    %3062 = vmatpush1.msra.mxu0 0.0
    %3063 = vmatprep.subr.mxu0 0.0
    %3064 = vmatpush1.msra.mxu0 0.0
    %3065 = vmatprep.subr.mxu0 0.0
    %3066 = vmatpush1.msra.mxu0 0.0
    %3067 = vmatprep.subr.mxu0 0.0
    %3068 = vmatpush1.msra.mxu0 0.0
    %3069 = vmatprep.subr.mxu0 0.0
    %3070 = vmatpush1.msra.mxu0 0.0
    %3071 = vmatprep.subr.mxu0 0.0
    %3072 = vmatpush1.msra.mxu0 0.0
    %3073 = vmatprep.subr.mxu0 0.0
    %3074 = vmatpush1.msra.mxu0 0.0
    %3075 = vmatprep.subr.mxu0 0.0
    %3076 = vmatpush1.msra.mxu0 0.0
    %3077 = vmatprep.subr.mxu0 0.0
    %3078 = vmatpush1.msra.mxu0 0.0
    %3079 = vmatprep.subr.mxu0 0.0
    %3080 = vmatpush1.msra.mxu0 0.0
    %3081 = vmatprep.subr.mxu0 0.0
    %3082 = vmatpush1.msra.mxu0 0.0
    %3083 = vmatprep.subr.mxu0 0.0
    %3084 = vmatpush1.msra.mxu0 0.0
    %3085 = vmatprep.subr.mxu0 0.0
    %3086 = vmatpush1.msra.mxu0 0.0
    %3087 = vmatprep.subr.mxu0 0.0
    %3088 = vmatpush1.msra.mxu0 0.0
    %3089 = vmatprep.subr.mxu0 0.0
    %3090 = vmatpush1.msra.mxu0 0.0
    %3091 = vmatprep.subr.mxu0 0.0
    %3092 = vmatpush1.msra.mxu0 0.0
    %3093 = vmatprep.subr.mxu0 0.0
    %3094 = vmatpush1.msra.mxu0 0.0
    %3095 = vmatprep.mubr.f32.mxu0 0.0
    %3096 = vmatmul.mubr.f32.gmra.mrb[0].mxu0 %v3029
    %v3097 = vpop.f32.mrb[0].mxu0
    %v3098 = vadd.f32 0.0, %v3097
    %v3099 = vpop.f32.mrb[0].mxu0
    %3100 = vdwg.mxu0
    %v3101 = vadd.f32 %v3021, %v3098
    %v3102 = vld [vmem:[%s9 + $0xa0] sm:$0xff]
    %v3103 = vld [vmem:[%s9 + $0xa8] sm:$0xff]
    %v3104 = vld [vmem:[%s9 + $0xb0] sm:$0xff]
    %v3105 = vld [vmem:[%s9 + $0xb8] sm:$0xff]
    %v3106 = vrot.slane %v2576, 5
    %v3107 = vrot.slane %v2700, 4
    %v3108 = vsel %vm2714, %v3107, %v3106
    %v3109 = vsel %vm72, %v3108, 0
    %3111 = vmatprep.subr.mxu0 0.0
    %3112 = vmatpush1.msra.mxu0 %v3102
    %3113 = vmatprep.subr.mxu0 0.0
    %3114 = vmatpush1.msra.mxu0 %v3103
    %3115 = vmatprep.subr.mxu0 0.0
    %3116 = vmatpush1.msra.mxu0 %v3104
    %3117 = vmatprep.subr.mxu0 0.0
    %3118 = vmatpush1.msra.mxu0 %v3105
    %3119 = vmatprep.subr.mxu0 0.0
    %3120 = vmatpush1.msra.mxu0 0.0
    %3121 = vmatprep.subr.mxu0 0.0
    %3122 = vmatpush1.msra.mxu0 0.0
    %3123 = vmatprep.subr.mxu0 0.0
    %3124 = vmatpush1.msra.mxu0 0.0
    %3125 = vmatprep.subr.mxu0 0.0
    %3126 = vmatpush1.msra.mxu0 0.0
    %3127 = vmatprep.subr.mxu0 0.0
    %3128 = vmatpush1.msra.mxu0 0.0
    %3129 = vmatprep.subr.mxu0 0.0
    %3130 = vmatpush1.msra.mxu0 0.0
    %3131 = vmatprep.subr.mxu0 0.0
    %3132 = vmatpush1.msra.mxu0 0.0
    %3133 = vmatprep.subr.mxu0 0.0
    %3134 = vmatpush1.msra.mxu0 0.0
    %3135 = vmatprep.subr.mxu0 0.0
    %3136 = vmatpush1.msra.mxu0 0.0
    %3137 = vmatprep.subr.mxu0 0.0
    %3138 = vmatpush1.msra.mxu0 0.0
    %3139 = vmatprep.subr.mxu0 0.0
    %3140 = vmatpush1.msra.mxu0 0.0
    %3141 = vmatprep.subr.mxu0 0.0
    %3142 = vmatpush1.msra.mxu0 0.0
    %3143 = vmatprep.subr.mxu0 0.0
    %3144 = vmatpush1.msra.mxu0 0.0
    %3145 = vmatprep.subr.mxu0 0.0
    %3146 = vmatpush1.msra.mxu0 0.0
    %3147 = vmatprep.subr.mxu0 0.0
    %3148 = vmatpush1.msra.mxu0 0.0
    %3149 = vmatprep.subr.mxu0 0.0
    %3150 = vmatpush1.msra.mxu0 0.0
    %3151 = vmatprep.subr.mxu0 0.0
    %3152 = vmatpush1.msra.mxu0 0.0
    %3153 = vmatprep.subr.mxu0 0.0
    %3154 = vmatpush1.msra.mxu0 0.0
    %3155 = vmatprep.subr.mxu0 0.0
    %3156 = vmatpush1.msra.mxu0 0.0
    %3157 = vmatprep.subr.mxu0 0.0
    %3158 = vmatpush1.msra.mxu0 0.0
    %3159 = vmatprep.subr.mxu0 0.0
    %3160 = vmatpush1.msra.mxu0 0.0
    %3161 = vmatprep.subr.mxu0 0.0
    %3162 = vmatpush1.msra.mxu0 0.0
    %3163 = vmatprep.subr.mxu0 0.0
    %3164 = vmatpush1.msra.mxu0 0.0
    %3165 = vmatprep.subr.mxu0 0.0
    %3166 = vmatpush1.msra.mxu0 0.0
    %3167 = vmatprep.subr.mxu0 0.0
    %3168 = vmatpush1.msra.mxu0 0.0
    %3169 = vmatprep.subr.mxu0 0.0
    %3170 = vmatpush1.msra.mxu0 0.0
    %3171 = vmatprep.subr.mxu0 0.0
    %3172 = vmatpush1.msra.mxu0 0.0
    %3173 = vmatprep.subr.mxu0 0.0
    %3174 = vmatpush1.msra.mxu0 0.0
    %3175 = vmatprep.mubr.f32.mxu0 0.0
    %3176 = vmatmul.mubr.f32.gmra.mrb[0].mxu0 %v3109
    %v3177 = vpop.f32.mrb[0].mxu0
    %v3178 = vadd.f32 0.0, %v3177
    %v3179 = vpop.f32.mrb[0].mxu0
    %3180 = vdwg.mxu0
    %v3181 = vadd.f32 %v3101, %v3178
    %v3182 = vld [vmem:[%s9 + $0xc0] sm:$0xff]
    %v3183 = vld [vmem:[%s9 + $0xc8] sm:$0xff]
    %v3184 = vld [vmem:[%s9 + $0xd0] sm:$0xff]
    %v3185 = vld [vmem:[%s9 + $0xd8] sm:$0xff]
    %v3186 = vrot.slane %v2576, 6
    %v3187 = vrot.slane %v2700, 5
    %v3188 = vsel %vm2714, %v3187, %v3186
    %v3189 = vsel %vm72, %v3188, 0
    %3191 = vmatprep.subr.mxu0 0.0
    %3192 = vmatpush1.msra.mxu0 %v3182
    %3193 = vmatprep.subr.mxu0 0.0
    %3194 = vmatpush1.msra.mxu0 %v3183
    %3195 = vmatprep.subr.mxu0 0.0
    %3196 = vmatpush1.msra.mxu0 %v3184
    %3197 = vmatprep.subr.mxu0 0.0
    %3198 = vmatpush1.msra.mxu0 %v3185
    %3199 = vmatprep.subr.mxu0 0.0
    %3200 = vmatpush1.msra.mxu0 0.0
    %3201 = vmatprep.subr.mxu0 0.0
    %3202 = vmatpush1.msra.mxu0 0.0
    %3203 = vmatprep.subr.mxu0 0.0
    %3204 = vmatpush1.msra.mxu0 0.0
    %3205 = vmatprep.subr.mxu0 0.0
    %3206 = vmatpush1.msra.mxu0 0.0
    %3207 = vmatprep.subr.mxu0 0.0
    %3208 = vmatpush1.msra.mxu0 0.0
    %3209 = vmatprep.subr.mxu0 0.0
    %3210 = vmatpush1.msra.mxu0 0.0
    %3211 = vmatprep.subr.mxu0 0.0
    %3212 = vmatpush1.msra.mxu0 0.0
    %3213 = vmatprep.subr.mxu0 0.0
    %3214 = vmatpush1.msra.mxu0 0.0
    %3215 = vmatprep.subr.mxu0 0.0
    %3216 = vmatpush1.msra.mxu0 0.0
    %3217 = vmatprep.subr.mxu0 0.0
    %3218 = vmatpush1.msra.mxu0 0.0
    %3219 = vmatprep.subr.mxu0 0.0
    %3220 = vmatpush1.msra.mxu0 0.0
    %3221 = vmatprep.subr.mxu0 0.0
    %3222 = vmatpush1.msra.mxu0 0.0
    %3223 = vmatprep.subr.mxu0 0.0
    %3224 = vmatpush1.msra.mxu0 0.0
    %3225 = vmatprep.subr.mxu0 0.0
    %3226 = vmatpush1.msra.mxu0 0.0
    %3227 = vmatprep.subr.mxu0 0.0
    %3228 = vmatpush1.msra.mxu0 0.0
    %3229 = vmatprep.subr.mxu0 0.0
    %3230 = vmatpush1.msra.mxu0 0.0
    %3231 = vmatprep.subr.mxu0 0.0
    %3232 = vmatpush1.msra.mxu0 0.0
    %3233 = vmatprep.subr.mxu0 0.0
    %3234 = vmatpush1.msra.mxu0 0.0
    %3235 = vmatprep.subr.mxu0 0.0
    %3236 = vmatpush1.msra.mxu0 0.0
    %3237 = vmatprep.subr.mxu0 0.0
    %3238 = vmatpush1.msra.mxu0 0.0
    %3239 = vmatprep.subr.mxu0 0.0
    %3240 = vmatpush1.msra.mxu0 0.0
    %3241 = vmatprep.subr.mxu0 0.0
    %3242 = vmatpush1.msra.mxu0 0.0
    %3243 = vmatprep.subr.mxu0 0.0
    %3244 = vmatpush1.msra.mxu0 0.0
    %3245 = vmatprep.subr.mxu0 0.0
    %3246 = vmatpush1.msra.mxu0 0.0
    %3247 = vmatprep.subr.mxu0 0.0
    %3248 = vmatpush1.msra.mxu0 0.0
    %3249 = vmatprep.subr.mxu0 0.0
    %3250 = vmatpush1.msra.mxu0 0.0
    %3251 = vmatprep.subr.mxu0 0.0
    %3252 = vmatpush1.msra.mxu0 0.0
    %3253 = vmatprep.subr.mxu0 0.0
    %3254 = vmatpush1.msra.mxu0 0.0
    %3255 = vmatprep.mubr.f32.mxu0 0.0
    %3256 = vmatmul.mubr.f32.gmra.mrb[0].mxu0 %v3189
    %v3257 = vpop.f32.mrb[0].mxu0
    %v3258 = vadd.f32 0.0, %v3257
    %v3259 = vpop.f32.mrb[0].mxu0
    %3260 = vdwg.mxu0
    %v3261 = vadd.f32 %v3181, %v3258
    %v3262 = vld [vmem:[%s9 + $0xe0] sm:$0xff]
    %v3263 = vld [vmem:[%s9 + $0xe8] sm:$0xff]
    %v3264 = vld [vmem:[%s9 + $0xf0] sm:$0xff]
    %v3265 = vld [vmem:[%s9 + $0xf8] sm:$0xff]
    %v3266 = vrot.slane %v2576, 7
    %v3267 = vrot.slane %v2700, 6
    %v3268 = vsel %vm2714, %v3267, %v3266
    %v3269 = vsel %vm72, %v3268, 0
    %3271 = vmatprep.subr.mxu0 0.0
    %3272 = vmatpush1.msra.mxu0 %v3262
    %3273 = vmatprep.subr.mxu0 0.0
    %3274 = vmatpush1.msra.mxu0 %v3263
    %3275 = vmatprep.subr.mxu0 0.0
    %3276 = vmatpush1.msra.mxu0 %v3264
    %3277 = vmatprep.subr.mxu0 0.0
    %3278 = vmatpush1.msra.mxu0 %v3265
    %3279 = vmatprep.subr.mxu0 0.0
    %3280 = vmatpush1.msra.mxu0 0.0
    %3281 = vmatprep.subr.mxu0 0.0
    %3282 = vmatpush1.msra.mxu0 0.0
    %3283 = vmatprep.subr.mxu0 0.0
    %3284 = vmatpush1.msra.mxu0 0.0
    %3285 = vmatprep.subr.mxu0 0.0
    %3286 = vmatpush1.msra.mxu0 0.0
    %3287 = vmatprep.subr.mxu0 0.0
    %3288 = vmatpush1.msra.mxu0 0.0
    %3289 = vmatprep.subr.mxu0 0.0
    %3290 = vmatpush1.msra.mxu0 0.0
    %3291 = vmatprep.subr.mxu0 0.0
    %3292 = vmatpush1.msra.mxu0 0.0
    %3293 = vmatprep.subr.mxu0 0.0
    %3294 = vmatpush1.msra.mxu0 0.0
    %3295 = vmatprep.subr.mxu0 0.0
    %3296 = vmatpush1.msra.mxu0 0.0
    %3297 = vmatprep.subr.mxu0 0.0
    %3298 = vmatpush1.msra.mxu0 0.0
    %3299 = vmatprep.subr.mxu0 0.0
    %3300 = vmatpush1.msra.mxu0 0.0
    %3301 = vmatprep.subr.mxu0 0.0
    %3302 = vmatpush1.msra.mxu0 0.0
    %3303 = vmatprep.subr.mxu0 0.0
    %3304 = vmatpush1.msra.mxu0 0.0
    %3305 = vmatprep.subr.mxu0 0.0
    %3306 = vmatpush1.msra.mxu0 0.0
    %3307 = vmatprep.subr.mxu0 0.0
    %3308 = vmatpush1.msra.mxu0 0.0
    %3309 = vmatprep.subr.mxu0 0.0
    %3310 = vmatpush1.msra.mxu0 0.0
    %3311 = vmatprep.subr.mxu0 0.0
    %3312 = vmatpush1.msra.mxu0 0.0
    %3313 = vmatprep.subr.mxu0 0.0
    %3314 = vmatpush1.msra.mxu0 0.0
    %3315 = vmatprep.subr.mxu0 0.0
    %3316 = vmatpush1.msra.mxu0 0.0
    %3317 = vmatprep.subr.mxu0 0.0
    %3318 = vmatpush1.msra.mxu0 0.0
    %3319 = vmatprep.subr.mxu0 0.0
    %3320 = vmatpush1.msra.mxu0 0.0
    %3321 = vmatprep.subr.mxu0 0.0
    %3322 = vmatpush1.msra.mxu0 0.0
    %3323 = vmatprep.subr.mxu0 0.0
    %3324 = vmatpush1.msra.mxu0 0.0
    %3325 = vmatprep.subr.mxu0 0.0
    %3326 = vmatpush1.msra.mxu0 0.0
    %3327 = vmatprep.subr.mxu0 0.0
    %3328 = vmatpush1.msra.mxu0 0.0
    %3329 = vmatprep.subr.mxu0 0.0
    %3330 = vmatpush1.msra.mxu0 0.0
    %3331 = vmatprep.subr.mxu0 0.0
    %3332 = vmatpush1.msra.mxu0 0.0
    %3333 = vmatprep.subr.mxu0 0.0
    %3334 = vmatpush1.msra.mxu0 0.0
    %3335 = vmatprep.mubr.f32.mxu0 0.0
    %3336 = vmatmul.mubr.f32.gmra.mrb[0].mxu0 %v3269
    %v3337 = vpop.f32.mrb[0].mxu0
    %v3338 = vadd.f32 0.0, %v3337
    %v3339 = vpop.f32.mrb[0].mxu0
    %3340 = vdwg.mxu0
    %v3341 = vadd.f32 %v3261, %v3338
    %v3342 = vld [vmem:[%s10] sm:$0x1]
    %v3344 = vlaneseq
    %v3345 = vshrl.u32 %v3344, 7
    %v3346 = vsub.s32 0, %v3345
    %v3347 = vrot.slane %v3342, %v3346
    %v3349 = vadd.f32 %v3341, %v3347
    %v3350 = vmax.f32 %v3349, 0.0
    %v3351 = vld [vmem:[%s11] sm:$0xff]
    %v3352 = vld [vmem:[%s11 + $0x8] sm:$0xff]
    %v3353 = vld [vmem:[%s11 + $0x10] sm:$0xff]
    %v3354 = vld [vmem:[%s11 + $0x18] sm:$0xff]
    %v3355 = vld [vmem:[%s12] sm:$0x1]
    %v3357 = vlaneseq
    %v3358 = vshrl.u32 %v3357, 7
    %v3359 = vsub.s32 0, %v3358
    %v3360 = vrot.slane %v3355, %v3359
    %v3363 = vsel %vm72, %v3350, 0
    %3365 = vmatprep.subr.mxu0 0.0
    %3366 = vmatpush1.msra.mxu0 %v3351
    %3367 = vmatprep.subr.mxu0 0.0
    %3368 = vmatpush1.msra.mxu0 %v3352
    %3369 = vmatprep.subr.mxu0 0.0
    %3370 = vmatpush1.msra.mxu0 %v3353
    %3371 = vmatprep.subr.mxu0 0.0
    %3372 = vmatpush1.msra.mxu0 %v3354
    %3373 = vmatprep.subr.mxu0 0.0
    %3374 = vmatpush1.msra.mxu0 0.0
    %3375 = vmatprep.subr.mxu0 0.0
    %3376 = vmatpush1.msra.mxu0 0.0
    %3377 = vmatprep.subr.mxu0 0.0
    %3378 = vmatpush1.msra.mxu0 0.0
    %3379 = vmatprep.subr.mxu0 0.0
    %3380 = vmatpush1.msra.mxu0 0.0
    %3381 = vmatprep.subr.mxu0 0.0
    %3382 = vmatpush1.msra.mxu0 0.0
    %3383 = vmatprep.subr.mxu0 0.0
    %3384 = vmatpush1.msra.mxu0 0.0
    %3385 = vmatprep.subr.mxu0 0.0
    %3386 = vmatpush1.msra.mxu0 0.0
    %3387 = vmatprep.subr.mxu0 0.0
    %3388 = vmatpush1.msra.mxu0 0.0
    %3389 = vmatprep.subr.mxu0 0.0
    %3390 = vmatpush1.msra.mxu0 0.0
    %3391 = vmatprep.subr.mxu0 0.0
    %3392 = vmatpush1.msra.mxu0 0.0
    %3393 = vmatprep.subr.mxu0 0.0
    %3394 = vmatpush1.msra.mxu0 0.0
    %3395 = vmatprep.subr.mxu0 0.0
    %3396 = vmatpush1.msra.mxu0 0.0
    %3397 = vmatprep.subr.mxu0 0.0
    %3398 = vmatpush1.msra.mxu0 0.0
    %3399 = vmatprep.subr.mxu0 0.0
    %3400 = vmatpush1.msra.mxu0 0.0
    %3401 = vmatprep.subr.mxu0 0.0
    %3402 = vmatpush1.msra.mxu0 0.0
    %3403 = vmatprep.subr.mxu0 0.0
    %3404 = vmatpush1.msra.mxu0 0.0
    %3405 = vmatprep.subr.mxu0 0.0
    %3406 = vmatpush1.msra.mxu0 0.0
    %3407 = vmatprep.subr.mxu0 0.0
    %3408 = vmatpush1.msra.mxu0 0.0
    %3409 = vmatprep.subr.mxu0 0.0
    %3410 = vmatpush1.msra.mxu0 0.0
    %3411 = vmatprep.subr.mxu0 0.0
    %3412 = vmatpush1.msra.mxu0 0.0
    %3413 = vmatprep.subr.mxu0 0.0
    %3414 = vmatpush1.msra.mxu0 0.0
    %3415 = vmatprep.subr.mxu0 0.0
    %3416 = vmatpush1.msra.mxu0 0.0
    %3417 = vmatprep.subr.mxu0 0.0
    %3418 = vmatpush1.msra.mxu0 0.0
    %3419 = vmatprep.subr.mxu0 0.0
    %3420 = vmatpush1.msra.mxu0 0.0
    %3421 = vmatprep.subr.mxu0 0.0
    %3422 = vmatpush1.msra.mxu0 0.0
    %3423 = vmatprep.subr.mxu0 0.0
    %3424 = vmatpush1.msra.mxu0 0.0
    %3425 = vmatprep.subr.mxu0 0.0
    %3426 = vmatpush1.msra.mxu0 0.0
    %3427 = vmatprep.subr.mxu0 0.0
    %3428 = vmatpush1.msra.mxu0 0.0
    %3429 = vmatprep.mubr.f32.mxu0 0.0
    %3430 = vmatmul.mubr.f32.gmra.mrb[0].mxu0 %v3363
    %v3431 = vpop.f32.mrb[0].mxu0
    %v3432 = vadd.f32 %v3360, %v3431
    %v3433 = vpop.f32.mrb[0].mxu0
    %3434 = vdwg.mxu0
    %v3435 = vld [vmem:[%s13] sm:$0x3]
    %vm3436 = vcmask 58368
    %v3437 = vsel %vm3436, %v3432, -inf
    %3438 = vmax.xlane.f32.xlu0 %v3437
    %v3439 = vpop.xlane.xlu0 %3438
    %v3440 = vsub.f32 %v3432, %v3439
    %v3441 = vmul.f32 %v3440, 1.442695
    %v3442 = vpow.pop %v3441
    %v3443 = vsel %vm3436, %v3442, 0.0
    %3444 = vadd.xlane.f32.xlu0 %v3443
    %v3445 = vpop.xlane.xlu0 %3444
    %v3446 = vrcp.pop %v3445
    %v3447 = vmul.f32 %v3442, %v3446
    %3448 = vst.msk [vmem:[#allocation6] sm:$0x3] %vm3436, %v3447
    %v3449 = vlaneseq
    %v3450 = vand.u32 %v3449, 127
    %v3451 = vsel %vm3436, %v3435, -inf
    %3452 = vmax.xlane.f32.xlu0 %v3451
    %v3453 = vpop.xlane.xlu0 %3452
    %vm3454 = vcmp.eq.f32.partialorder %v3435, %v3453
    %v3455 = vsel %vm3454, %v3450, 8
    %v3456 = vsel %vm3436, %v3455, 2147483647
    %v3457 = vand.u32 %v3456, 65535
    %v3458 = vshra.s32 %v3456, 16
    %v3459 = vcvt.s32.f32 %v3457
    %v3460 = vcvt.s32.f32 %v3458
    %3461 = vmin.xlane.f32.xlu0 %v3460
    %v3462 = vpop.xlane.xlu0 %3461
    %vm3463 = vcmp.eq.f32.partialorder %v3460, %v3462
    %v3464 = vsel %vm3463, %v3459, inf
    %3465 = vmin.xlane.f32.xlu0 %v3464
    %v3466 = vpop.xlane.xlu0 %3465
    %v3467 = vcvt.f32.s32 %v3466
    %v3468 = vcvt.f32.s32 %v3462
    %v3469 = vshll.u32 %v3468, 16
    %v3470 = vadd.s32 %v3469, %v3467
    %vm3471 = vcmp.eq.s32.totalorder %v3450, %v3470
    %v3472 = vsel %vm3471, 1, 0
    %v3473 = vcvt.s32.f32 %v3472
    %v3474 = vlog2.pop %v3445
    %v3475 = vmul.f32 %v3474, 0.6931472
    %v3476 = vadd.f32 %v3475, %v3439
    %v3477 = vmul.f32 %v3473, %v3432
    %v3478 = vsel %vm3436, %v3477, 0.0
    %3479 = vadd.xlane.f32.xlu0 %v3478
    %v3480 = vpop.xlane.xlu0 %3479
    %v3481 = vsub.f32 %v3476, %v3480
    %vm3482 = vcmask 1041408
    %v3483 = vsel %vm3482, %v3481, 0.0
    %v3484 = vrot.slane %v3483, 4
    %v3485 = vadd.f32 %v3483, %v3484
    %v3486 = vrot.slane %v3485, 2
    %v3487 = vadd.f32 %v3485, %v3486
    %v3488 = vrot.slane %v3487, 1
    %v3489 = vadd.f32 %v3487, %v3488
    %v3490 = vrcp.pop 2.0
    %v3491 = vmul.f32 %v3489, %v3490
    %vm3492 = vcmask 0
    %3493 = vst.msk [vmem:[#allocation4] sm:$0x1] %vm3492, %v3491
    // Predicated region
    $region58: #{text_sentiment_rnn_forward.1} parent=1 // pred_check
      _
    $region59: #{text_sentiment_rnn_forward.1} parent=1 // pred_check_branch
      %3495 = sbr.rel (0) target = $region61
    $region60: #{text_sentiment_rnn_forward.1} parent=1 // pred_region
      %s3497 = ssub.s32 16, 16
      %3498 = vsyncadd [#allocation5], %s3497
      %s3500 = sshll.u32 [#allocation4], 4
      %s3501 = int_to_ptr.vmem [resolvable:$true] %s3500
      %3503 = dma.vmem_to_hbm [thread:$0]  %s3501, 16, %s14, [#allocation5]
    $region61: #{text_sentiment_rnn_forward.1} parent=1 // pred_fallthru
      _
    // Predicated region
    $region62: #{text_sentiment_rnn_forward.1} parent=1 // pred_check
      _
    $region63: #{text_sentiment_rnn_forward.1} parent=1 // pred_check_branch
      %3505 = sbr.rel (0) target = $region65
    $region64: #{text_sentiment_rnn_forward.1} parent=1 // pred_region
      %s3507 = ssub.s32 32, 32
      %3508 = vsyncadd [#allocation7], %s3507
      %s3510 = sshll.u32 [#allocation6], 4
      %s3511 = int_to_ptr.vmem [resolvable:$true] %s3510
      %3513 = dma.vmem_to_hbm [thread:$0]  %s3511, 32, %s15, [#allocation7]
    $region65: #{text_sentiment_rnn_forward.1} parent=1 // pred_fallthru
      _
    // Predicated region
    $region66: #{text_sentiment_rnn_forward.1} parent=1 // pred_check
      _
    $region67: #{text_sentiment_rnn_forward.1} parent=1 // pred_check_branch
      %3515 = sbr.rel (0) target = $region69
    $region68: #{text_sentiment_rnn_forward.1} parent=1 // pred_region
      %3516 = dma.done [#allocation5], 16
    $region69: #{text_sentiment_rnn_forward.1} parent=1 // pred_fallthru
      _
    // Predicated region
    $region70: #{text_sentiment_rnn_forward.1} parent=1 // pred_check
      _
    $region71: #{text_sentiment_rnn_forward.1} parent=1 // pred_check_branch
      %3518 = sbr.rel (0) target = $region73
    $region72: #{text_sentiment_rnn_forward.1} parent=1 // pred_region
      %3519 = dma.done [#allocation7], 32
    $region73: #{text_sentiment_rnn_forward.1} parent=1 // pred_fallthru
      _
    %3520 = vsyncpa [#allocation5], 1
    %3521 = vsyncpa [#allocation7], 1

</llo_original>
